<compile_context>
chip_gen: v7x
topology: tpu7x:2x2x1
jax: 0.10.0
libtpu: 0.0.40
codegen_flags: <defaults>
</compile_context>

<pallas_src>
import functools

import numpy as np
import jax
import jax.numpy as jnp
from jax.experimental import pallas as pl
from jax.experimental.pallas import tpu as pltpu


@functools.lru_cache(maxsize=None)
def _conv_tap_masks(H, W):
    """[49, H*W] f32 validity masks for the 7x7 / pad-3 conv taps (cached)."""
    HW = H * W
    hh = np.arange(H)[:, None]
    ww = np.arange(W)[None, :]
    masks = np.zeros((49, HW), dtype=np.float32)
    m = 0
    for i in range(7):
        for j in range(7):
            valid = ((hh + i - 3 >= 0) & (hh + i - 3 < H)
                     & (ww + j - 3 >= 0) & (ww + j - 3 < W))
            masks[m] = valid.reshape(HW).astype(np.float32)
            m += 1
    return masks


def _make_cbam_kernel(H, W):
    HW = H * W

    def kernel(x_ref, w1t_ref, w2t_ref, wm_ref, sel_ref, o_ref):
        x = x_ref[...]                               # [Bb, C, HW]
        Bb = x.shape[0]
        c = x.shape[1]

        # ---- Channel attention ------------------------------------------
        avg_c = jnp.sum(x, axis=2) * (1.0 / HW)      # [Bb, C]  (lane reduce)
        max_c = jnp.max(x, axis=2)                   # [Bb, C]
        pooled = jnp.concatenate([avg_c, max_c], axis=0)          # [2*Bb, C]

        # shared MLP for both pooled vectors -> two MXU matmuls
        h = jnp.dot(pooled, w1t_ref[...], preferred_element_type=jnp.float32)
        h = jnp.maximum(h, 0.0)                      # [2*Bb, Cr]
        z = jnp.dot(h, w2t_ref[...], preferred_element_type=jnp.float32)
        zsum = z[:Bb, :] + z[Bb:, :]                 # [Bb, C]
        ca = 1.0 / (1.0 + jnp.exp(-zsum))            # exact sigmoid (tiny tensor)

        out1 = x * ca[:, :, None]                    # [Bb, C, HW]

        # ---- Spatial attention ------------------------------------------
        # Channel-average pool on the MXU: sel is a [Bb, Bb*C] 0/1 block-row
        # selector, so sel @ out1_flat == per-batch sum over channels.
        avg_sp = jnp.dot(sel_ref[...], out1.reshape(Bb * c, HW),
                         preferred_element_type=jnp.float32) * (1.0 / c)
        max_sp = jnp.max(out1, axis=1)               # [Bb, HW] (sublane reduce)
        packed = jnp.concatenate([avg_sp, max_sp], axis=0)        # [2*Bb, HW]

        # 7x7 conv (pad 3) as 49 shifted MACs; one XLU lane roll per tap on
        # the packed (avg,max) maps; boundary handling baked into wm rows.
        acc_a = jnp.zeros((Bb, HW), jnp.float32)
        acc_x = jnp.zeros((Bb, HW), jnp.float32)
        m = 0
        for i in range(7):
            for j in range(7):
                off = (i - 3) * W + (j - 3)
                shift = (-off) % HW
                r = packed if shift == 0 else pltpu.roll(packed, shift, 1)
                acc_a = acc_a + wm_ref[m:m + 1, :] * r[:Bb, :]
                acc_x = acc_x + wm_ref[49 + m:50 + m, :] * r[Bb:, :]
                m += 1

        # approximate reciprocal only on the large spatial map (EUP, ~free)
        sa = pl.reciprocal(1.0 + jnp.exp(-(acc_a + acc_x)), approx=True)
        o_ref[...] = out1 * sa[:, None, :]

    return kernel


def _vmem_limit_bytes():
    """Generation-aware scoped-VMEM limit, well inside physical VMEM."""
    try:
        phys = int(pltpu.get_tpu_info().vmem_capacity_bytes)
    except Exception:
        phys = 64 * 1024 * 1024           # v7x-sized conservative fallback
    return min(int(phys * 0.70), 96 * 1024 * 1024)


def _pick_batch_block(B, C, HW, vmem_limit):
    """Images per grid step.

    Prefer multiples of 8 (full sublanes in the 49-tap loop) and >=2 grid
    steps (both v7x TensorCores).  The budget counts the 4 in/out pipeline
    buffers plus ~3 live full-size temporaries and the (padded) tap table.
    """
    img = C * HW * 4
    table = 2 * 104 * HW * 4              # [98,HW] pads to 104 sublanes, x2 buffers
    budget = vmem_limit - table - (2 << 20)   # margin: weights/selector/small temps
    cap = max(1, budget // (7 * img))
    if cap >= 8 and B >= 8:
        cap8 = (cap // 8) * 8
        bb = max(8, ((B // 2) // 8) * 8)  # ~half the batch, multiple of 8
        return int(min(bb, cap8))
    target = B if B < 2 else (B + 1) // 2     # >=2 grid steps when B allows
    return int(max(1, min(target, cap)))


@jax.jit
def cbam_pallas(x, w_fc1, w_fc2, w_sa):
    """x: [B, C, H, W] f32.  w_fc1: [Cr, C], w_fc2: [C, Cr], w_sa: [2, 7, 7]."""
    B, C, H, W = x.shape
    Cr = w_fc1.shape[0]
    HW = H * W
    # TODO(synk): support C % 8 != 0 / H*W % 128 != 0 (needs -inf-aware padded
    # max pools and count-correct means); e.g. 14x14 / 7x7 feature maps.
    assert C % 8 == 0 and HW % 128 == 0, "CBAM kernel requires C%8==0 and H*W%128==0"

    vmem_limit = _vmem_limit_bytes()
    Bb = _pick_batch_block(B, C, HW, vmem_limit)
    nb = pl.cdiv(B, Bb)
    B_pad = nb * Bb

    x2d = x.reshape(B, C, HW)
    if B_pad != B:   # pad so no grid step touches undefined batch rows
        x2d = jnp.concatenate(
            [x2d, jnp.zeros((B_pad - B, C, HW), x2d.dtype)], axis=0)

    w1t = jnp.asarray(w_fc1).T                                   # [C, Cr]
    w2t = jnp.asarray(w_fc2).T                                   # [Cr, C]

    taps = jnp.reshape(jnp.asarray(w_sa), (2, 49))               # [2, 49]
    masks = jnp.asarray(_conv_tap_masks(H, W))                   # [49, HW]
    wm = jnp.concatenate([taps[0][:, None] * masks,              # rows 0..48  = avg
                          taps[1][:, None] * masks], axis=0)     # rows 49..97 = max

    sel = jnp.asarray(np.repeat(np.eye(Bb, dtype=np.float32), C, axis=1))  # [Bb, Bb*C]

    out2d = pl.pallas_call(
        _make_cbam_kernel(H, W),
        out_shape=jax.ShapeDtypeStruct((B_pad, C, HW), jnp.float32),
        grid=(nb,),
        in_specs=[
            pl.BlockSpec((Bb, C, HW), lambda b: (b, 0, 0)),
            pl.BlockSpec((C, Cr), lambda b: (0, 0)),
            pl.BlockSpec((Cr, C), lambda b: (0, 0)),
            pl.BlockSpec((98, HW), lambda b: (0, 0)),
            pl.BlockSpec((Bb, Bb * C), lambda b: (0, 0)),
        ],
        out_specs=pl.BlockSpec((Bb, C, HW), lambda b: (b, 0, 0)),
        compiler_params=pltpu.CompilerParams(
            dimension_semantics=("parallel",),
            vmem_limit_bytes=int(vmem_limit)),
    )(x2d, w1t, w2t, wm, sel)

    return out2d[:B].reshape(B, C, H, W)


def cbam_reference(x, w_fc1, w_fc2, w_sa):
    """Pure-JAX reference mirroring the PyTorch module."""
    hi = jax.lax.Precision.HIGHEST
    avg = jnp.mean(x, axis=(2, 3))
    mx = jnp.max(x, axis=(2, 3))

    def fc(v):
        h = jax.nn.relu(jnp.dot(v, w_fc1.T, precision=hi))
        return jnp.dot(h, w_fc2.T, precision=hi)

    ca = jax.nn.sigmoid(fc(avg) + fc(mx))[:, :, None, None]
    out1 = x * ca

    avg_sp = jnp.mean(out1, axis=1, keepdims=True)
    max_sp = jnp.max(out1, axis=1, keepdims=True)
    cat = jnp.concatenate([avg_sp, max_sp], axis=1)               # [B, 2, H, W]
    conv = jax.lax.conv_general_dilated(
        cat, w_sa[None], window_strides=(1, 1), padding=((3, 3), (3, 3)),
        dimension_numbers=("NCHW", "OIHW", "NCHW"), precision=hi)
    return out1 * jax.nn.sigmoid(conv)


if __name__ == "__main__":
    B, C, H, W = 2, 32, 16, 16
    reduction, ksize = 16, 7
    Cr = C // reduction

    key = jax.random.PRNGKey(0)
    kx, k1, k2, k3 = jax.random.split(key, 4)
    x = jax.random.normal(kx, (B, C, H, W), jnp.float32)
    w_fc1 = jax.random.normal(k1, (Cr, C), jnp.float32) * (1.0 / np.sqrt(C))
    w_fc2 = jax.random.normal(k2, (C, Cr), jnp.float32) * (1.0 / np.sqrt(Cr))
    w_sa = jax.random.normal(k3, (2, ksize, ksize), jnp.float32) * (1.0 / np.sqrt(2 * ksize * ksize))

    out = jax.block_until_ready(cbam_pallas(x, w_fc1, w_fc2, w_sa))
    ref = jax.block_until_ready(cbam_reference(x, w_fc1, w_fc2, w_sa))

    err = float(jnp.max(jnp.abs(out - ref)))
    assert out.shape == (B, C, H, W)
    # Only the spatial sigmoid uses the EUP approximate reciprocal now; error
    # is expected well below this bound.
    assert err < 2e-2, f"max abs error too large: {err}"
    print("KERNEL_OK")
</pallas_src>

<mosaic_0001>
module attributes {stable_mosaic.version = 11 : i64} {
  func.func @kernel(%arg0: i32, %arg1: memref<1x32x256xf32, #tpu.memory_space<vmem>>, %arg2: memref<32x2xf32, #tpu.memory_space<vmem>>, %arg3: memref<2x32xf32, #tpu.memory_space<vmem>>, %arg4: memref<98x256xf32, #tpu.memory_space<vmem>>, %arg5: memref<1x32xf32, #tpu.memory_space<vmem>>, %arg6: memref<1x32x256xf32, #tpu.memory_space<vmem>>) attributes {dimension_semantics = [#tpu.dimension_semantics<parallel>], iteration_bounds = array<i64: 2>, scalar_prefetch = 0 : i64, scratch_operands = 0 : i64, tpu.core_type = #tpu.core_type<tc>, window_params = [{transform_indices = @transform_0, window_bounds = array<i64: 1, 32, 256>}, {pipeline_mode = #tpu.pipeline_mode<synchronous>, transform_indices = @transform_1, window_bounds = array<i64: 32, 2>}, {pipeline_mode = #tpu.pipeline_mode<synchronous>, transform_indices = @transform_2, window_bounds = array<i64: 2, 32>}, {pipeline_mode = #tpu.pipeline_mode<synchronous>, transform_indices = @transform_3, window_bounds = array<i64: 98, 256>}, {pipeline_mode = #tpu.pipeline_mode<synchronous>, transform_indices = @transform_4, window_bounds = array<i64: 1, 32>}, {transform_indices = @transform_5, window_bounds = array<i64: 1, 32, 256>}]} {
    %c0 = arith.constant 0 : index
    %c0_0 = arith.constant 0 : index
    %c0_1 = arith.constant 0 : index
    %0 = vector.load %arg1[%c0, %c0_0, %c0_1] : memref<1x32x256xf32, #tpu.memory_space<vmem>>, vector<1x32x256xf32>
    %cst = arith.constant dense<0.000000e+00> : vector<1x32xf32>
    %1 = vector.multi_reduction <add>, %0, %cst [2] : vector<1x32x256xf32> to vector<1x32xf32>
    %cst_2 = arith.constant 3.906250e-03 : f32
    %2 = vector.broadcast %cst_2 : f32 to vector<1x32xf32>
    %3 = arith.mulf %1, %2 : vector<1x32xf32>
    %cst_3 = arith.constant dense<0xFF800000> : vector<1x32xf32>
    %4 = vector.multi_reduction <maximumf>, %0, %cst_3 [2] : vector<1x32x256xf32> to vector<1x32xf32>
    %5 = tpu.concatenate %3, %4 in 0 : vector<1x32xf32>, vector<1x32xf32> -> vector<2x32xf32>
    %c0_4 = arith.constant 0 : index
    %c0_5 = arith.constant 0 : index
    %6 = vector.load %arg2[%c0_4, %c0_5] : memref<32x2xf32, #tpu.memory_space<vmem>>, vector<32x2xf32>
    %cst_6 = arith.constant dense<0.000000e+00> : vector<2x2xf32>
    %7 = tpu.matmul %5, %6, %cst_6 {dimension_numbers = #tpu.dot_dimension_numbers<[1], [0], [0], [1], [0, 0, 1, 1], [], []>} : vector<2x32xf32>, vector<32x2xf32>, vector<2x2xf32> -> vector<2x2xf32>
    %cst_7 = arith.constant 0.000000e+00 : f32
    %8 = vector.broadcast %cst_7 : f32 to vector<2x2xf32>
    %9 = arith.maximumf %7, %8 : vector<2x2xf32>
    %c0_8 = arith.constant 0 : index
    %c0_9 = arith.constant 0 : index
    %10 = vector.load %arg3[%c0_8, %c0_9] : memref<2x32xf32, #tpu.memory_space<vmem>>, vector<2x32xf32>
    %cst_10 = arith.constant dense<0.000000e+00> : vector<2x32xf32>
    %11 = tpu.matmul %9, %10, %cst_10 {dimension_numbers = #tpu.dot_dimension_numbers<[1], [0], [0], [1], [0, 0, 1, 1], [], []>} : vector<2x2xf32>, vector<2x32xf32>, vector<2x32xf32> -> vector<2x32xf32>
    %12 = vector.extract_strided_slice %11 {offsets = [0, 0], sizes = [1, 32], strides = [1, 1]} : vector<2x32xf32> to vector<1x32xf32>
    %13 = vector.extract_strided_slice %11 {offsets = [1, 0], sizes = [1, 32], strides = [1, 1]} : vector<2x32xf32> to vector<1x32xf32>
    %14 = arith.addf %12, %13 : vector<1x32xf32>
    %cst_11 = arith.constant 0.000000e+00 : f32
    %15 = vector.broadcast %cst_11 : f32 to vector<1x32xf32>
    %16 = arith.subf %15, %14 : vector<1x32xf32>
    %17 = math.exp %16 : vector<1x32xf32>
    %cst_12 = arith.constant 1.000000e+00 : f32
    %18 = vector.broadcast %cst_12 : f32 to vector<1x32xf32>
    %19 = arith.addf %18, %17 : vector<1x32xf32>
    %cst_13 = arith.constant 1.000000e+00 : f32
    %20 = vector.broadcast %cst_13 : f32 to vector<1x32xf32>
    %21 = arith.divf %20, %19 : vector<1x32xf32>
    %22 = vector.shape_cast %21 : vector<1x32xf32> to vector<1x32x1xf32>
    %23 = vector.broadcast %22 : vector<1x32x1xf32> to vector<1x32x256xf32>
    %24 = arith.mulf %0, %23 : vector<1x32x256xf32>
    %c0_14 = arith.constant 0 : index
    %c0_15 = arith.constant 0 : index
    %25 = vector.load %arg5[%c0_14, %c0_15] : memref<1x32xf32, #tpu.memory_space<vmem>>, vector<1x32xf32>
    %26 = vector.shape_cast %24 : vector<1x32x256xf32> to vector<32x256xf32>
    %cst_16 = arith.constant dense<0.000000e+00> : vector<1x256xf32>
    %27 = tpu.matmul %25, %26, %cst_16 {dimension_numbers = #tpu.dot_dimension_numbers<[1], [0], [0], [1], [0, 0, 1, 1], [], []>} : vector<1x32xf32>, vector<32x256xf32>, vector<1x256xf32> -> vector<1x256xf32>
    %cst_17 = arith.constant 3.125000e-02 : f32
    %28 = vector.broadcast %cst_17 : f32 to vector<1x256xf32>
    %29 = arith.mulf %27, %28 : vector<1x256xf32>
    %cst_18 = arith.constant dense<0xFF800000> : vector<1x256xf32>
    %30 = vector.multi_reduction <maximumf>, %24, %cst_18 [1] : vector<1x32x256xf32> to vector<1x256xf32>
    %31 = tpu.concatenate %29, %30 in 0 : vector<1x256xf32>, vector<1x256xf32> -> vector<2x256xf32>
    %cst_19 = arith.constant 0.000000e+00 : f32
    %32 = vector.broadcast %cst_19 : f32 to vector<1x256xf32>
    %cst_20 = arith.constant 0.000000e+00 : f32
    %33 = vector.broadcast %cst_20 : f32 to vector<1x256xf32>
    %c51_i32 = arith.constant 51 : i32
    %34 = tpu.dynamic_rotate %31 by %c51_i32 dim 1 : vector<2x256xf32>, i32 -> vector<2x256xf32>
    %c0_21 = arith.constant 0 : index
    %c0_22 = arith.constant 0 : index
    %35 = vector.load %arg4[%c0_21, %c0_22] : memref<98x256xf32, #tpu.memory_space<vmem>>, vector<1x256xf32>
    %36 = vector.extract_strided_slice %34 {offsets = [0, 0], sizes = [1, 256], strides = [1, 1]} : vector<2x256xf32> to vector<1x256xf32>
    %37 = arith.mulf %35, %36 : vector<1x256xf32>
    %38 = arith.addf %32, %37 : vector<1x256xf32>
    %c49 = arith.constant 49 : index
    %c0_23 = arith.constant 0 : index
    %39 = vector.load %arg4[%c49, %c0_23] : memref<98x256xf32, #tpu.memory_space<vmem>>, vector<1x256xf32>
    %40 = vector.extract_strided_slice %34 {offsets = [1, 0], sizes = [1, 256], strides = [1, 1]} : vector<2x256xf32> to vector<1x256xf32>
    %41 = arith.mulf %39, %40 : vector<1x256xf32>
    %42 = arith.addf %33, %41 : vector<1x256xf32>
    %c50_i32 = arith.constant 50 : i32
    %43 = tpu.dynamic_rotate %31 by %c50_i32 dim 1 : vector<2x256xf32>, i32 -> vector<2x256xf32>
    %c1 = arith.constant 1 : index
    %c0_24 = arith.constant 0 : index
    %44 = vector.load %arg4[%c1, %c0_24] : memref<98x256xf32, #tpu.memory_space<vmem>>, vector<1x256xf32>
    %45 = vector.extract_strided_slice %43 {offsets = [0, 0], sizes = [1, 256], strides = [1, 1]} : vector<2x256xf32> to vector<1x256xf32>
    %46 = arith.mulf %44, %45 : vector<1x256xf32>
    %47 = arith.addf %38, %46 : vector<1x256xf32>
    %c50 = arith.constant 50 : index
    %c0_25 = arith.constant 0 : index
    %48 = vector.load %arg4[%c50, %c0_25] : memref<98x256xf32, #tpu.memory_space<vmem>>, vector<1x256xf32>
    %49 = vector.extract_strided_slice %43 {offsets = [1, 0], sizes = [1, 256], strides = [1, 1]} : vector<2x256xf32> to vector<1x256xf32>
    %50 = arith.mulf %48, %49 : vector<1x256xf32>
    %51 = arith.addf %42, %50 : vector<1x256xf32>
    %c49_i32 = arith.constant 49 : i32
    %52 = tpu.dynamic_rotate %31 by %c49_i32 dim 1 : vector<2x256xf32>, i32 -> vector<2x256xf32>
    %c2 = arith.constant 2 : index
    %c0_26 = arith.constant 0 : index
    %53 = vector.load %arg4[%c2, %c0_26] : memref<98x256xf32, #tpu.memory_space<vmem>>, vector<1x256xf32>
    %54 = vector.extract_strided_slice %52 {offsets = [0, 0], sizes = [1, 256], strides = [1, 1]} : vector<2x256xf32> to vector<1x256xf32>
    %55 = arith.mulf %53, %54 : vector<1x256xf32>
    %56 = arith.addf %47, %55 : vector<1x256xf32>
    %c51 = arith.constant 51 : index
    %c0_27 = arith.constant 0 : index
    %57 = vector.load %arg4[%c51, %c0_27] : memref<98x256xf32, #tpu.memory_space<vmem>>, vector<1x256xf32>
    %58 = vector.extract_strided_slice %52 {offsets = [1, 0], sizes = [1, 256], strides = [1, 1]} : vector<2x256xf32> to vector<1x256xf32>
    %59 = arith.mulf %57, %58 : vector<1x256xf32>
    %60 = arith.addf %51, %59 : vector<1x256xf32>
    %c48_i32 = arith.constant 48 : i32
    %61 = tpu.dynamic_rotate %31 by %c48_i32 dim 1 : vector<2x256xf32>, i32 -> vector<2x256xf32>
    %c3 = arith.constant 3 : index
    %c0_28 = arith.constant 0 : index
    %62 = vector.load %arg4[%c3, %c0_28] : memref<98x256xf32, #tpu.memory_space<vmem>>, vector<1x256xf32>
    %63 = vector.extract_strided_slice %61 {offsets = [0, 0], sizes = [1, 256], strides = [1, 1]} : vector<2x256xf32> to vector<1x256xf32>
    %64 = arith.mulf %62, %63 : vector<1x256xf32>
    %65 = arith.addf %56, %64 : vector<1x256xf32>
    %c52 = arith.constant 52 : index
    %c0_29 = arith.constant 0 : index
    %66 = vector.load %arg4[%c52, %c0_29] : memref<98x256xf32, #tpu.memory_space<vmem>>, vector<1x256xf32>
    %67 = vector.extract_strided_slice %61 {offsets = [1, 0], sizes = [1, 256], strides = [1, 1]} : vector<2x256xf32> to vector<1x256xf32>
    %68 = arith.mulf %66, %67 : vector<1x256xf32>
    %69 = arith.addf %60, %68 : vector<1x256xf32>
    %c47_i32 = arith.constant 47 : i32
    %70 = tpu.dynamic_rotate %31 by %c47_i32 dim 1 : vector<2x256xf32>, i32 -> vector<2x256xf32>
    %c4 = arith.constant 4 : index
    %c0_30 = arith.constant 0 : index
    %71 = vector.load %arg4[%c4, %c0_30] : memref<98x256xf32, #tpu.memory_space<vmem>>, vector<1x256xf32>
    %72 = vector.extract_strided_slice %70 {offsets = [0, 0], sizes = [1, 256], strides = [1, 1]} : vector<2x256xf32> to vector<1x256xf32>
    %73 = arith.mulf %71, %72 : vector<1x256xf32>
    %74 = arith.addf %65, %73 : vector<1x256xf32>
    %c53 = arith.constant 53 : index
    %c0_31 = arith.constant 0 : index
    %75 = vector.load %arg4[%c53, %c0_31] : memref<98x256xf32, #tpu.memory_space<vmem>>, vector<1x256xf32>
    %76 = vector.extract_strided_slice %70 {offsets = [1, 0], sizes = [1, 256], strides = [1, 1]} : vector<2x256xf32> to vector<1x256xf32>
    %77 = arith.mulf %75, %76 : vector<1x256xf32>
    %78 = arith.addf %69, %77 : vector<1x256xf32>
    %c46_i32 = arith.constant 46 : i32
    %79 = tpu.dynamic_rotate %31 by %c46_i32 dim 1 : vector<2x256xf32>, i32 -> vector<2x256xf32>
    %c5 = arith.constant 5 : index
    %c0_32 = arith.constant 0 : index
    %80 = vector.load %arg4[%c5, %c0_32] : memref<98x256xf32, #tpu.memory_space<vmem>>, vector<1x256xf32>
    %81 = vector.extract_strided_slice %79 {offsets = [0, 0], sizes = [1, 256], strides = [1, 1]} : vector<2x256xf32> to vector<1x256xf32>
    %82 = arith.mulf %80, %81 : vector<1x256xf32>
    %83 = arith.addf %74, %82 : vector<1x256xf32>
    %c54 = arith.constant 54 : index
    %c0_33 = arith.constant 0 : index
    %84 = vector.load %arg4[%c54, %c0_33] : memref<98x256xf32, #tpu.memory_space<vmem>>, vector<1x256xf32>
    %85 = vector.extract_strided_slice %79 {offsets = [1, 0], sizes = [1, 256], strides = [1, 1]} : vector<2x256xf32> to vector<1x256xf32>
    %86 = arith.mulf %84, %85 : vector<1x256xf32>
    %87 = arith.addf %78, %86 : vector<1x256xf32>
    %c45_i32 = arith.constant 45 : i32
    %88 = tpu.dynamic_rotate %31 by %c45_i32 dim 1 : vector<2x256xf32>, i32 -> vector<2x256xf32>
    %c6 = arith.constant 6 : index
    %c0_34 = arith.constant 0 : index
    %89 = vector.load %arg4[%c6, %c0_34] : memref<98x256xf32, #tpu.memory_space<vmem>>, vector<1x256xf32>
    %90 = vector.extract_strided_slice %88 {offsets = [0, 0], sizes = [1, 256], strides = [1, 1]} : vector<2x256xf32> to vector<1x256xf32>
    %91 = arith.mulf %89, %90 : vector<1x256xf32>
    %92 = arith.addf %83, %91 : vector<1x256xf32>
    %c55 = arith.constant 55 : index
    %c0_35 = arith.constant 0 : index
    %93 = vector.load %arg4[%c55, %c0_35] : memref<98x256xf32, #tpu.memory_space<vmem>>, vector<1x256xf32>
    %94 = vector.extract_strided_slice %88 {offsets = [1, 0], sizes = [1, 256], strides = [1, 1]} : vector<2x256xf32> to vector<1x256xf32>
    %95 = arith.mulf %93, %94 : vector<1x256xf32>
    %96 = arith.addf %87, %95 : vector<1x256xf32>
    %c35_i32 = arith.constant 35 : i32
    %97 = tpu.dynamic_rotate %31 by %c35_i32 dim 1 : vector<2x256xf32>, i32 -> vector<2x256xf32>
    %c7 = arith.constant 7 : index
    %c0_36 = arith.constant 0 : index
    %98 = vector.load %arg4[%c7, %c0_36] : memref<98x256xf32, #tpu.memory_space<vmem>>, vector<1x256xf32>
    %99 = vector.extract_strided_slice %97 {offsets = [0, 0], sizes = [1, 256], strides = [1, 1]} : vector<2x256xf32> to vector<1x256xf32>
    %100 = arith.mulf %98, %99 : vector<1x256xf32>
    %101 = arith.addf %92, %100 : vector<1x256xf32>
    %c56 = arith.constant 56 : index
    %c0_37 = arith.constant 0 : index
    %102 = vector.load %arg4[%c56, %c0_37] : memref<98x256xf32, #tpu.memory_space<vmem>>, vector<1x256xf32>
    %103 = vector.extract_strided_slice %97 {offsets = [1, 0], sizes = [1, 256], strides = [1, 1]} : vector<2x256xf32> to vector<1x256xf32>
    %104 = arith.mulf %102, %103 : vector<1x256xf32>
    %105 = arith.addf %96, %104 : vector<1x256xf32>
    %c34_i32 = arith.constant 34 : i32
    %106 = tpu.dynamic_rotate %31 by %c34_i32 dim 1 : vector<2x256xf32>, i32 -> vector<2x256xf32>
    %c8 = arith.constant 8 : index
    %c0_38 = arith.constant 0 : index
    %107 = vector.load %arg4[%c8, %c0_38] : memref<98x256xf32, #tpu.memory_space<vmem>>, vector<1x256xf32>
    %108 = vector.extract_strided_slice %106 {offsets = [0, 0], sizes = [1, 256], strides = [1, 1]} : vector<2x256xf32> to vector<1x256xf32>
    %109 = arith.mulf %107, %108 : vector<1x256xf32>
    %110 = arith.addf %101, %109 : vector<1x256xf32>
    %c57 = arith.constant 57 : index
    %c0_39 = arith.constant 0 : index
    %111 = vector.load %arg4[%c57, %c0_39] : memref<98x256xf32, #tpu.memory_space<vmem>>, vector<1x256xf32>
    %112 = vector.extract_strided_slice %106 {offsets = [1, 0], sizes = [1, 256], strides = [1, 1]} : vector<2x256xf32> to vector<1x256xf32>
    %113 = arith.mulf %111, %112 : vector<1x256xf32>
    %114 = arith.addf %105, %113 : vector<1x256xf32>
    %c33_i32 = arith.constant 33 : i32
    %115 = tpu.dynamic_rotate %31 by %c33_i32 dim 1 : vector<2x256xf32>, i32 -> vector<2x256xf32>
    %c9 = arith.constant 9 : index
    %c0_40 = arith.constant 0 : index
    %116 = vector.load %arg4[%c9, %c0_40] : memref<98x256xf32, #tpu.memory_space<vmem>>, vector<1x256xf32>
    %117 = vector.extract_strided_slice %115 {offsets = [0, 0], sizes = [1, 256], strides = [1, 1]} : vector<2x256xf32> to vector<1x256xf32>
    %118 = arith.mulf %116, %117 : vector<1x256xf32>
    %119 = arith.addf %110, %118 : vector<1x256xf32>
    %c58 = arith.constant 58 : index
    %c0_41 = arith.constant 0 : index
    %120 = vector.load %arg4[%c58, %c0_41] : memref<98x256xf32, #tpu.memory_space<vmem>>, vector<1x256xf32>
    %121 = vector.extract_strided_slice %115 {offsets = [1, 0], sizes = [1, 256], strides = [1, 1]} : vector<2x256xf32> to vector<1x256xf32>
    %122 = arith.mulf %120, %121 : vector<1x256xf32>
    %123 = arith.addf %114, %122 : vector<1x256xf32>
    %c32_i32 = arith.constant 32 : i32
    %124 = tpu.dynamic_rotate %31 by %c32_i32 dim 1 : vector<2x256xf32>, i32 -> vector<2x256xf32>
    %c10 = arith.constant 10 : index
    %c0_42 = arith.constant 0 : index
    %125 = vector.load %arg4[%c10, %c0_42] : memref<98x256xf32, #tpu.memory_space<vmem>>, vector<1x256xf32>
    %126 = vector.extract_strided_slice %124 {offsets = [0, 0], sizes = [1, 256], strides = [1, 1]} : vector<2x256xf32> to vector<1x256xf32>
    %127 = arith.mulf %125, %126 : vector<1x256xf32>
    %128 = arith.addf %119, %127 : vector<1x256xf32>
    %c59 = arith.constant 59 : index
    %c0_43 = arith.constant 0 : index
    %129 = vector.load %arg4[%c59, %c0_43] : memref<98x256xf32, #tpu.memory_space<vmem>>, vector<1x256xf32>
    %130 = vector.extract_strided_slice %124 {offsets = [1, 0], sizes = [1, 256], strides = [1, 1]} : vector<2x256xf32> to vector<1x256xf32>
    %131 = arith.mulf %129, %130 : vector<1x256xf32>
    %132 = arith.addf %123, %131 : vector<1x256xf32>
    %c31_i32 = arith.constant 31 : i32
    %133 = tpu.dynamic_rotate %31 by %c31_i32 dim 1 : vector<2x256xf32>, i32 -> vector<2x256xf32>
    %c11 = arith.constant 11 : index
    %c0_44 = arith.constant 0 : index
    %134 = vector.load %arg4[%c11, %c0_44] : memref<98x256xf32, #tpu.memory_space<vmem>>, vector<1x256xf32>
    %135 = vector.extract_strided_slice %133 {offsets = [0, 0], sizes = [1, 256], strides = [1, 1]} : vector<2x256xf32> to vector<1x256xf32>
    %136 = arith.mulf %134, %135 : vector<1x256xf32>
    %137 = arith.addf %128, %136 : vector<1x256xf32>
    %c60 = arith.constant 60 : index
    %c0_45 = arith.constant 0 : index
    %138 = vector.load %arg4[%c60, %c0_45] : memref<98x256xf32, #tpu.memory_space<vmem>>, vector<1x256xf32>
    %139 = vector.extract_strided_slice %133 {offsets = [1, 0], sizes = [1, 256], strides = [1, 1]} : vector<2x256xf32> to vector<1x256xf32>
    %140 = arith.mulf %138, %139 : vector<1x256xf32>
    %141 = arith.addf %132, %140 : vector<1x256xf32>
    %c30_i32 = arith.constant 30 : i32
    %142 = tpu.dynamic_rotate %31 by %c30_i32 dim 1 : vector<2x256xf32>, i32 -> vector<2x256xf32>
    %c12 = arith.constant 12 : index
    %c0_46 = arith.constant 0 : index
    %143 = vector.load %arg4[%c12, %c0_46] : memref<98x256xf32, #tpu.memory_space<vmem>>, vector<1x256xf32>
    %144 = vector.extract_strided_slice %142 {offsets = [0, 0], sizes = [1, 256], strides = [1, 1]} : vector<2x256xf32> to vector<1x256xf32>
    %145 = arith.mulf %143, %144 : vector<1x256xf32>
    %146 = arith.addf %137, %145 : vector<1x256xf32>
    %c61 = arith.constant 61 : index
    %c0_47 = arith.constant 0 : index
    %147 = vector.load %arg4[%c61, %c0_47] : memref<98x256xf32, #tpu.memory_space<vmem>>, vector<1x256xf32>
    %148 = vector.extract_strided_slice %142 {offsets = [1, 0], sizes = [1, 256], strides = [1, 1]} : vector<2x256xf32> to vector<1x256xf32>
    %149 = arith.mulf %147, %148 : vector<1x256xf32>
    %150 = arith.addf %141, %149 : vector<1x256xf32>
    %c29_i32 = arith.constant 29 : i32
    %151 = tpu.dynamic_rotate %31 by %c29_i32 dim 1 : vector<2x256xf32>, i32 -> vector<2x256xf32>
    %c13 = arith.constant 13 : index
    %c0_48 = arith.constant 0 : index
    %152 = vector.load %arg4[%c13, %c0_48] : memref<98x256xf32, #tpu.memory_space<vmem>>, vector<1x256xf32>
    %153 = vector.extract_strided_slice %151 {offsets = [0, 0], sizes = [1, 256], strides = [1, 1]} : vector<2x256xf32> to vector<1x256xf32>
    %154 = arith.mulf %152, %153 : vector<1x256xf32>
    %155 = arith.addf %146, %154 : vector<1x256xf32>
    %c62 = arith.constant 62 : index
    %c0_49 = arith.constant 0 : index
    %156 = vector.load %arg4[%c62, %c0_49] : memref<98x256xf32, #tpu.memory_space<vmem>>, vector<1x256xf32>
    %157 = vector.extract_strided_slice %151 {offsets = [1, 0], sizes = [1, 256], strides = [1, 1]} : vector<2x256xf32> to vector<1x256xf32>
    %158 = arith.mulf %156, %157 : vector<1x256xf32>
    %159 = arith.addf %150, %158 : vector<1x256xf32>
    %c19_i32 = arith.constant 19 : i32
    %160 = tpu.dynamic_rotate %31 by %c19_i32 dim 1 : vector<2x256xf32>, i32 -> vector<2x256xf32>
    %c14 = arith.constant 14 : index
    %c0_50 = arith.constant 0 : index
    %161 = vector.load %arg4[%c14, %c0_50] : memref<98x256xf32, #tpu.memory_space<vmem>>, vector<1x256xf32>
    %162 = vector.extract_strided_slice %160 {offsets = [0, 0], sizes = [1, 256], strides = [1, 1]} : vector<2x256xf32> to vector<1x256xf32>
    %163 = arith.mulf %161, %162 : vector<1x256xf32>
    %164 = arith.addf %155, %163 : vector<1x256xf32>
    %c63 = arith.constant 63 : index
    %c0_51 = arith.constant 0 : index
    %165 = vector.load %arg4[%c63, %c0_51] : memref<98x256xf32, #tpu.memory_space<vmem>>, vector<1x256xf32>
    %166 = vector.extract_strided_slice %160 {offsets = [1, 0], sizes = [1, 256], strides = [1, 1]} : vector<2x256xf32> to vector<1x256xf32>
    %167 = arith.mulf %165, %166 : vector<1x256xf32>
    %168 = arith.addf %159, %167 : vector<1x256xf32>
    %c18_i32 = arith.constant 18 : i32
    %169 = tpu.dynamic_rotate %31 by %c18_i32 dim 1 : vector<2x256xf32>, i32 -> vector<2x256xf32>
    %c15 = arith.constant 15 : index
    %c0_52 = arith.constant 0 : index
    %170 = vector.load %arg4[%c15, %c0_52] : memref<98x256xf32, #tpu.memory_space<vmem>>, vector<1x256xf32>
    %171 = vector.extract_strided_slice %169 {offsets = [0, 0], sizes = [1, 256], strides = [1, 1]} : vector<2x256xf32> to vector<1x256xf32>
    %172 = arith.mulf %170, %171 : vector<1x256xf32>
    %173 = arith.addf %164, %172 : vector<1x256xf32>
    %c64 = arith.constant 64 : index
    %c0_53 = arith.constant 0 : index
    %174 = vector.load %arg4[%c64, %c0_53] : memref<98x256xf32, #tpu.memory_space<vmem>>, vector<1x256xf32>
    %175 = vector.extract_strided_slice %169 {offsets = [1, 0], sizes = [1, 256], strides = [1, 1]} : vector<2x256xf32> to vector<1x256xf32>
    %176 = arith.mulf %174, %175 : vector<1x256xf32>
    %177 = arith.addf %168, %176 : vector<1x256xf32>
    %c17_i32 = arith.constant 17 : i32
    %178 = tpu.dynamic_rotate %31 by %c17_i32 dim 1 : vector<2x256xf32>, i32 -> vector<2x256xf32>
    %c16 = arith.constant 16 : index
    %c0_54 = arith.constant 0 : index
    %179 = vector.load %arg4[%c16, %c0_54] : memref<98x256xf32, #tpu.memory_space<vmem>>, vector<1x256xf32>
    %180 = vector.extract_strided_slice %178 {offsets = [0, 0], sizes = [1, 256], strides = [1, 1]} : vector<2x256xf32> to vector<1x256xf32>
    %181 = arith.mulf %179, %180 : vector<1x256xf32>
    %182 = arith.addf %173, %181 : vector<1x256xf32>
    %c65 = arith.constant 65 : index
    %c0_55 = arith.constant 0 : index
    %183 = vector.load %arg4[%c65, %c0_55] : memref<98x256xf32, #tpu.memory_space<vmem>>, vector<1x256xf32>
    %184 = vector.extract_strided_slice %178 {offsets = [1, 0], sizes = [1, 256], strides = [1, 1]} : vector<2x256xf32> to vector<1x256xf32>
    %185 = arith.mulf %183, %184 : vector<1x256xf32>
    %186 = arith.addf %177, %185 : vector<1x256xf32>
    %c16_i32 = arith.constant 16 : i32
    %187 = tpu.dynamic_rotate %31 by %c16_i32 dim 1 : vector<2x256xf32>, i32 -> vector<2x256xf32>
    %c17 = arith.constant 17 : index
    %c0_56 = arith.constant 0 : index
    %188 = vector.load %arg4[%c17, %c0_56] : memref<98x256xf32, #tpu.memory_space<vmem>>, vector<1x256xf32>
    %189 = vector.extract_strided_slice %187 {offsets = [0, 0], sizes = [1, 256], strides = [1, 1]} : vector<2x256xf32> to vector<1x256xf32>
    %190 = arith.mulf %188, %189 : vector<1x256xf32>
    %191 = arith.addf %182, %190 : vector<1x256xf32>
    %c66 = arith.constant 66 : index
    %c0_57 = arith.constant 0 : index
    %192 = vector.load %arg4[%c66, %c0_57] : memref<98x256xf32, #tpu.memory_space<vmem>>, vector<1x256xf32>
    %193 = vector.extract_strided_slice %187 {offsets = [1, 0], sizes = [1, 256], strides = [1, 1]} : vector<2x256xf32> to vector<1x256xf32>
    %194 = arith.mulf %192, %193 : vector<1x256xf32>
    %195 = arith.addf %186, %194 : vector<1x256xf32>
    %c15_i32 = arith.constant 15 : i32
    %196 = tpu.dynamic_rotate %31 by %c15_i32 dim 1 : vector<2x256xf32>, i32 -> vector<2x256xf32>
    %c18 = arith.constant 18 : index
    %c0_58 = arith.constant 0 : index
    %197 = vector.load %arg4[%c18, %c0_58] : memref<98x256xf32, #tpu.memory_space<vmem>>, vector<1x256xf32>
    %198 = vector.extract_strided_slice %196 {offsets = [0, 0], sizes = [1, 256], strides = [1, 1]} : vector<2x256xf32> to vector<1x256xf32>
    %199 = arith.mulf %197, %198 : vector<1x256xf32>
    %200 = arith.addf %191, %199 : vector<1x256xf32>
    %c67 = arith.constant 67 : index
    %c0_59 = arith.constant 0 : index
    %201 = vector.load %arg4[%c67, %c0_59] : memref<98x256xf32, #tpu.memory_space<vmem>>, vector<1x256xf32>
    %202 = vector.extract_strided_slice %196 {offsets = [1, 0], sizes = [1, 256], strides = [1, 1]} : vector<2x256xf32> to vector<1x256xf32>
    %203 = arith.mulf %201, %202 : vector<1x256xf32>
    %204 = arith.addf %195, %203 : vector<1x256xf32>
    %c14_i32 = arith.constant 14 : i32
    %205 = tpu.dynamic_rotate %31 by %c14_i32 dim 1 : vector<2x256xf32>, i32 -> vector<2x256xf32>
    %c19 = arith.constant 19 : index
    %c0_60 = arith.constant 0 : index
    %206 = vector.load %arg4[%c19, %c0_60] : memref<98x256xf32, #tpu.memory_space<vmem>>, vector<1x256xf32>
    %207 = vector.extract_strided_slice %205 {offsets = [0, 0], sizes = [1, 256], strides = [1, 1]} : vector<2x256xf32> to vector<1x256xf32>
    %208 = arith.mulf %206, %207 : vector<1x256xf32>
    %209 = arith.addf %200, %208 : vector<1x256xf32>
    %c68 = arith.constant 68 : index
    %c0_61 = arith.constant 0 : index
    %210 = vector.load %arg4[%c68, %c0_61] : memref<98x256xf32, #tpu.memory_space<vmem>>, vector<1x256xf32>
    %211 = vector.extract_strided_slice %205 {offsets = [1, 0], sizes = [1, 256], strides = [1, 1]} : vector<2x256xf32> to vector<1x256xf32>
    %212 = arith.mulf %210, %211 : vector<1x256xf32>
    %213 = arith.addf %204, %212 : vector<1x256xf32>
    %c13_i32 = arith.constant 13 : i32
    %214 = tpu.dynamic_rotate %31 by %c13_i32 dim 1 : vector<2x256xf32>, i32 -> vector<2x256xf32>
    %c20 = arith.constant 20 : index
    %c0_62 = arith.constant 0 : index
    %215 = vector.load %arg4[%c20, %c0_62] : memref<98x256xf32, #tpu.memory_space<vmem>>, vector<1x256xf32>
    %216 = vector.extract_strided_slice %214 {offsets = [0, 0], sizes = [1, 256], strides = [1, 1]} : vector<2x256xf32> to vector<1x256xf32>
    %217 = arith.mulf %215, %216 : vector<1x256xf32>
    %218 = arith.addf %209, %217 : vector<1x256xf32>
    %c69 = arith.constant 69 : index
    %c0_63 = arith.constant 0 : index
    %219 = vector.load %arg4[%c69, %c0_63] : memref<98x256xf32, #tpu.memory_space<vmem>>, vector<1x256xf32>
    %220 = vector.extract_strided_slice %214 {offsets = [1, 0], sizes = [1, 256], strides = [1, 1]} : vector<2x256xf32> to vector<1x256xf32>
    %221 = arith.mulf %219, %220 : vector<1x256xf32>
    %222 = arith.addf %213, %221 : vector<1x256xf32>
    %c3_i32 = arith.constant 3 : i32
    %223 = tpu.dynamic_rotate %31 by %c3_i32 dim 1 : vector<2x256xf32>, i32 -> vector<2x256xf32>
    %c21 = arith.constant 21 : index
    %c0_64 = arith.constant 0 : index
    %224 = vector.load %arg4[%c21, %c0_64] : memref<98x256xf32, #tpu.memory_space<vmem>>, vector<1x256xf32>
    %225 = vector.extract_strided_slice %223 {offsets = [0, 0], sizes = [1, 256], strides = [1, 1]} : vector<2x256xf32> to vector<1x256xf32>
    %226 = arith.mulf %224, %225 : vector<1x256xf32>
    %227 = arith.addf %218, %226 : vector<1x256xf32>
    %c70 = arith.constant 70 : index
    %c0_65 = arith.constant 0 : index
    %228 = vector.load %arg4[%c70, %c0_65] : memref<98x256xf32, #tpu.memory_space<vmem>>, vector<1x256xf32>
    %229 = vector.extract_strided_slice %223 {offsets = [1, 0], sizes = [1, 256], strides = [1, 1]} : vector<2x256xf32> to vector<1x256xf32>
    %230 = arith.mulf %228, %229 : vector<1x256xf32>
    %231 = arith.addf %222, %230 : vector<1x256xf32>
    %c2_i32 = arith.constant 2 : i32
    %232 = tpu.dynamic_rotate %31 by %c2_i32 dim 1 : vector<2x256xf32>, i32 -> vector<2x256xf32>
    %c22 = arith.constant 22 : index
    %c0_66 = arith.constant 0 : index
    %233 = vector.load %arg4[%c22, %c0_66] : memref<98x256xf32, #tpu.memory_space<vmem>>, vector<1x256xf32>
    %234 = vector.extract_strided_slice %232 {offsets = [0, 0], sizes = [1, 256], strides = [1, 1]} : vector<2x256xf32> to vector<1x256xf32>
    %235 = arith.mulf %233, %234 : vector<1x256xf32>
    %236 = arith.addf %227, %235 : vector<1x256xf32>
    %c71 = arith.constant 71 : index
    %c0_67 = arith.constant 0 : index
    %237 = vector.load %arg4[%c71, %c0_67] : memref<98x256xf32, #tpu.memory_space<vmem>>, vector<1x256xf32>
    %238 = vector.extract_strided_slice %232 {offsets = [1, 0], sizes = [1, 256], strides = [1, 1]} : vector<2x256xf32> to vector<1x256xf32>
    %239 = arith.mulf %237, %238 : vector<1x256xf32>
    %240 = arith.addf %231, %239 : vector<1x256xf32>
    %c1_i32 = arith.constant 1 : i32
    %241 = tpu.dynamic_rotate %31 by %c1_i32 dim 1 : vector<2x256xf32>, i32 -> vector<2x256xf32>
    %c23 = arith.constant 23 : index
    %c0_68 = arith.constant 0 : index
    %242 = vector.load %arg4[%c23, %c0_68] : memref<98x256xf32, #tpu.memory_space<vmem>>, vector<1x256xf32>
    %243 = vector.extract_strided_slice %241 {offsets = [0, 0], sizes = [1, 256], strides = [1, 1]} : vector<2x256xf32> to vector<1x256xf32>
    %244 = arith.mulf %242, %243 : vector<1x256xf32>
    %245 = arith.addf %236, %244 : vector<1x256xf32>
    %c72 = arith.constant 72 : index
    %c0_69 = arith.constant 0 : index
    %246 = vector.load %arg4[%c72, %c0_69] : memref<98x256xf32, #tpu.memory_space<vmem>>, vector<1x256xf32>
    %247 = vector.extract_strided_slice %241 {offsets = [1, 0], sizes = [1, 256], strides = [1, 1]} : vector<2x256xf32> to vector<1x256xf32>
    %248 = arith.mulf %246, %247 : vector<1x256xf32>
    %249 = arith.addf %240, %248 : vector<1x256xf32>
    %c24 = arith.constant 24 : index
    %c0_70 = arith.constant 0 : index
    %250 = vector.load %arg4[%c24, %c0_70] : memref<98x256xf32, #tpu.memory_space<vmem>>, vector<1x256xf32>
    %251 = vector.extract_strided_slice %31 {offsets = [0, 0], sizes = [1, 256], strides = [1, 1]} : vector<2x256xf32> to vector<1x256xf32>
    %252 = arith.mulf %250, %251 : vector<1x256xf32>
    %253 = arith.addf %245, %252 : vector<1x256xf32>
    %c73 = arith.constant 73 : index
    %c0_71 = arith.constant 0 : index
    %254 = vector.load %arg4[%c73, %c0_71] : memref<98x256xf32, #tpu.memory_space<vmem>>, vector<1x256xf32>
    %255 = vector.extract_strided_slice %31 {offsets = [1, 0], sizes = [1, 256], strides = [1, 1]} : vector<2x256xf32> to vector<1x256xf32>
    %256 = arith.mulf %254, %255 : vector<1x256xf32>
    %257 = arith.addf %249, %256 : vector<1x256xf32>
    %c255_i32 = arith.constant 255 : i32
    %258 = tpu.dynamic_rotate %31 by %c255_i32 dim 1 : vector<2x256xf32>, i32 -> vector<2x256xf32>
    %c25 = arith.constant 25 : index
    %c0_72 = arith.constant 0 : index
    %259 = vector.load %arg4[%c25, %c0_72] : memref<98x256xf32, #tpu.memory_space<vmem>>, vector<1x256xf32>
    %260 = vector.extract_strided_slice %258 {offsets = [0, 0], sizes = [1, 256], strides = [1, 1]} : vector<2x256xf32> to vector<1x256xf32>
    %261 = arith.mulf %259, %260 : vector<1x256xf32>
    %262 = arith.addf %253, %261 : vector<1x256xf32>
    %c74 = arith.constant 74 : index
    %c0_73 = arith.constant 0 : index
    %263 = vector.load %arg4[%c74, %c0_73] : memref<98x256xf32, #tpu.memory_space<vmem>>, vector<1x256xf32>
    %264 = vector.extract_strided_slice %258 {offsets = [1, 0], sizes = [1, 256], strides = [1, 1]} : vector<2x256xf32> to vector<1x256xf32>
    %265 = arith.mulf %263, %264 : vector<1x256xf32>
    %266 = arith.addf %257, %265 : vector<1x256xf32>
    %c254_i32 = arith.constant 254 : i32
    %267 = tpu.dynamic_rotate %31 by %c254_i32 dim 1 : vector<2x256xf32>, i32 -> vector<2x256xf32>
    %c26 = arith.constant 26 : index
    %c0_74 = arith.constant 0 : index
    %268 = vector.load %arg4[%c26, %c0_74] : memref<98x256xf32, #tpu.memory_space<vmem>>, vector<1x256xf32>
    %269 = vector.extract_strided_slice %267 {offsets = [0, 0], sizes = [1, 256], strides = [1, 1]} : vector<2x256xf32> to vector<1x256xf32>
    %270 = arith.mulf %268, %269 : vector<1x256xf32>
    %271 = arith.addf %262, %270 : vector<1x256xf32>
    %c75 = arith.constant 75 : index
    %c0_75 = arith.constant 0 : index
    %272 = vector.load %arg4[%c75, %c0_75] : memref<98x256xf32, #tpu.memory_space<vmem>>, vector<1x256xf32>
    %273 = vector.extract_strided_slice %267 {offsets = [1, 0], sizes = [1, 256], strides = [1, 1]} : vector<2x256xf32> to vector<1x256xf32>
    %274 = arith.mulf %272, %273 : vector<1x256xf32>
    %275 = arith.addf %266, %274 : vector<1x256xf32>
    %c253_i32 = arith.constant 253 : i32
    %276 = tpu.dynamic_rotate %31 by %c253_i32 dim 1 : vector<2x256xf32>, i32 -> vector<2x256xf32>
    %c27 = arith.constant 27 : index
    %c0_76 = arith.constant 0 : index
    %277 = vector.load %arg4[%c27, %c0_76] : memref<98x256xf32, #tpu.memory_space<vmem>>, vector<1x256xf32>
    %278 = vector.extract_strided_slice %276 {offsets = [0, 0], sizes = [1, 256], strides = [1, 1]} : vector<2x256xf32> to vector<1x256xf32>
    %279 = arith.mulf %277, %278 : vector<1x256xf32>
    %280 = arith.addf %271, %279 : vector<1x256xf32>
    %c76 = arith.constant 76 : index
    %c0_77 = arith.constant 0 : index
    %281 = vector.load %arg4[%c76, %c0_77] : memref<98x256xf32, #tpu.memory_space<vmem>>, vector<1x256xf32>
    %282 = vector.extract_strided_slice %276 {offsets = [1, 0], sizes = [1, 256], strides = [1, 1]} : vector<2x256xf32> to vector<1x256xf32>
    %283 = arith.mulf %281, %282 : vector<1x256xf32>
    %284 = arith.addf %275, %283 : vector<1x256xf32>
    %c243_i32 = arith.constant 243 : i32
    %285 = tpu.dynamic_rotate %31 by %c243_i32 dim 1 : vector<2x256xf32>, i32 -> vector<2x256xf32>
    %c28 = arith.constant 28 : index
    %c0_78 = arith.constant 0 : index
    %286 = vector.load %arg4[%c28, %c0_78] : memref<98x256xf32, #tpu.memory_space<vmem>>, vector<1x256xf32>
    %287 = vector.extract_strided_slice %285 {offsets = [0, 0], sizes = [1, 256], strides = [1, 1]} : vector<2x256xf32> to vector<1x256xf32>
    %288 = arith.mulf %286, %287 : vector<1x256xf32>
    %289 = arith.addf %280, %288 : vector<1x256xf32>
    %c77 = arith.constant 77 : index
    %c0_79 = arith.constant 0 : index
    %290 = vector.load %arg4[%c77, %c0_79] : memref<98x256xf32, #tpu.memory_space<vmem>>, vector<1x256xf32>
    %291 = vector.extract_strided_slice %285 {offsets = [1, 0], sizes = [1, 256], strides = [1, 1]} : vector<2x256xf32> to vector<1x256xf32>
    %292 = arith.mulf %290, %291 : vector<1x256xf32>
    %293 = arith.addf %284, %292 : vector<1x256xf32>
    %c242_i32 = arith.constant 242 : i32
    %294 = tpu.dynamic_rotate %31 by %c242_i32 dim 1 : vector<2x256xf32>, i32 -> vector<2x256xf32>
    %c29 = arith.constant 29 : index
    %c0_80 = arith.constant 0 : index
    %295 = vector.load %arg4[%c29, %c0_80] : memref<98x256xf32, #tpu.memory_space<vmem>>, vector<1x256xf32>
    %296 = vector.extract_strided_slice %294 {offsets = [0, 0], sizes = [1, 256], strides = [1, 1]} : vector<2x256xf32> to vector<1x256xf32>
    %297 = arith.mulf %295, %296 : vector<1x256xf32>
    %298 = arith.addf %289, %297 : vector<1x256xf32>
    %c78 = arith.constant 78 : index
    %c0_81 = arith.constant 0 : index
    %299 = vector.load %arg4[%c78, %c0_81] : memref<98x256xf32, #tpu.memory_space<vmem>>, vector<1x256xf32>
    %300 = vector.extract_strided_slice %294 {offsets = [1, 0], sizes = [1, 256], strides = [1, 1]} : vector<2x256xf32> to vector<1x256xf32>
    %301 = arith.mulf %299, %300 : vector<1x256xf32>
    %302 = arith.addf %293, %301 : vector<1x256xf32>
    %c241_i32 = arith.constant 241 : i32
    %303 = tpu.dynamic_rotate %31 by %c241_i32 dim 1 : vector<2x256xf32>, i32 -> vector<2x256xf32>
    %c30 = arith.constant 30 : index
    %c0_82 = arith.constant 0 : index
    %304 = vector.load %arg4[%c30, %c0_82] : memref<98x256xf32, #tpu.memory_space<vmem>>, vector<1x256xf32>
    %305 = vector.extract_strided_slice %303 {offsets = [0, 0], sizes = [1, 256], strides = [1, 1]} : vector<2x256xf32> to vector<1x256xf32>
    %306 = arith.mulf %304, %305 : vector<1x256xf32>
    %307 = arith.addf %298, %306 : vector<1x256xf32>
    %c79 = arith.constant 79 : index
    %c0_83 = arith.constant 0 : index
    %308 = vector.load %arg4[%c79, %c0_83] : memref<98x256xf32, #tpu.memory_space<vmem>>, vector<1x256xf32>
    %309 = vector.extract_strided_slice %303 {offsets = [1, 0], sizes = [1, 256], strides = [1, 1]} : vector<2x256xf32> to vector<1x256xf32>
    %310 = arith.mulf %308, %309 : vector<1x256xf32>
    %311 = arith.addf %302, %310 : vector<1x256xf32>
    %c240_i32 = arith.constant 240 : i32
    %312 = tpu.dynamic_rotate %31 by %c240_i32 dim 1 : vector<2x256xf32>, i32 -> vector<2x256xf32>
    %c31 = arith.constant 31 : index
    %c0_84 = arith.constant 0 : index
    %313 = vector.load %arg4[%c31, %c0_84] : memref<98x256xf32, #tpu.memory_space<vmem>>, vector<1x256xf32>
    %314 = vector.extract_strided_slice %312 {offsets = [0, 0], sizes = [1, 256], strides = [1, 1]} : vector<2x256xf32> to vector<1x256xf32>
    %315 = arith.mulf %313, %314 : vector<1x256xf32>
    %316 = arith.addf %307, %315 : vector<1x256xf32>
    %c80 = arith.constant 80 : index
    %c0_85 = arith.constant 0 : index
    %317 = vector.load %arg4[%c80, %c0_85] : memref<98x256xf32, #tpu.memory_space<vmem>>, vector<1x256xf32>
    %318 = vector.extract_strided_slice %312 {offsets = [1, 0], sizes = [1, 256], strides = [1, 1]} : vector<2x256xf32> to vector<1x256xf32>
    %319 = arith.mulf %317, %318 : vector<1x256xf32>
    %320 = arith.addf %311, %319 : vector<1x256xf32>
    %c239_i32 = arith.constant 239 : i32
    %321 = tpu.dynamic_rotate %31 by %c239_i32 dim 1 : vector<2x256xf32>, i32 -> vector<2x256xf32>
    %c32 = arith.constant 32 : index
    %c0_86 = arith.constant 0 : index
    %322 = vector.load %arg4[%c32, %c0_86] : memref<98x256xf32, #tpu.memory_space<vmem>>, vector<1x256xf32>
    %323 = vector.extract_strided_slice %321 {offsets = [0, 0], sizes = [1, 256], strides = [1, 1]} : vector<2x256xf32> to vector<1x256xf32>
    %324 = arith.mulf %322, %323 : vector<1x256xf32>
    %325 = arith.addf %316, %324 : vector<1x256xf32>
    %c81 = arith.constant 81 : index
    %c0_87 = arith.constant 0 : index
    %326 = vector.load %arg4[%c81, %c0_87] : memref<98x256xf32, #tpu.memory_space<vmem>>, vector<1x256xf32>
    %327 = vector.extract_strided_slice %321 {offsets = [1, 0], sizes = [1, 256], strides = [1, 1]} : vector<2x256xf32> to vector<1x256xf32>
    %328 = arith.mulf %326, %327 : vector<1x256xf32>
    %329 = arith.addf %320, %328 : vector<1x256xf32>
    %c238_i32 = arith.constant 238 : i32
    %330 = tpu.dynamic_rotate %31 by %c238_i32 dim 1 : vector<2x256xf32>, i32 -> vector<2x256xf32>
    %c33 = arith.constant 33 : index
    %c0_88 = arith.constant 0 : index
    %331 = vector.load %arg4[%c33, %c0_88] : memref<98x256xf32, #tpu.memory_space<vmem>>, vector<1x256xf32>
    %332 = vector.extract_strided_slice %330 {offsets = [0, 0], sizes = [1, 256], strides = [1, 1]} : vector<2x256xf32> to vector<1x256xf32>
    %333 = arith.mulf %331, %332 : vector<1x256xf32>
    %334 = arith.addf %325, %333 : vector<1x256xf32>
    %c82 = arith.constant 82 : index
    %c0_89 = arith.constant 0 : index
    %335 = vector.load %arg4[%c82, %c0_89] : memref<98x256xf32, #tpu.memory_space<vmem>>, vector<1x256xf32>
    %336 = vector.extract_strided_slice %330 {offsets = [1, 0], sizes = [1, 256], strides = [1, 1]} : vector<2x256xf32> to vector<1x256xf32>
    %337 = arith.mulf %335, %336 : vector<1x256xf32>
    %338 = arith.addf %329, %337 : vector<1x256xf32>
    %c237_i32 = arith.constant 237 : i32
    %339 = tpu.dynamic_rotate %31 by %c237_i32 dim 1 : vector<2x256xf32>, i32 -> vector<2x256xf32>
    %c34 = arith.constant 34 : index
    %c0_90 = arith.constant 0 : index
    %340 = vector.load %arg4[%c34, %c0_90] : memref<98x256xf32, #tpu.memory_space<vmem>>, vector<1x256xf32>
    %341 = vector.extract_strided_slice %339 {offsets = [0, 0], sizes = [1, 256], strides = [1, 1]} : vector<2x256xf32> to vector<1x256xf32>
    %342 = arith.mulf %340, %341 : vector<1x256xf32>
    %343 = arith.addf %334, %342 : vector<1x256xf32>
    %c83 = arith.constant 83 : index
    %c0_91 = arith.constant 0 : index
    %344 = vector.load %arg4[%c83, %c0_91] : memref<98x256xf32, #tpu.memory_space<vmem>>, vector<1x256xf32>
    %345 = vector.extract_strided_slice %339 {offsets = [1, 0], sizes = [1, 256], strides = [1, 1]} : vector<2x256xf32> to vector<1x256xf32>
    %346 = arith.mulf %344, %345 : vector<1x256xf32>
    %347 = arith.addf %338, %346 : vector<1x256xf32>
    %c227_i32 = arith.constant 227 : i32
    %348 = tpu.dynamic_rotate %31 by %c227_i32 dim 1 : vector<2x256xf32>, i32 -> vector<2x256xf32>
    %c35 = arith.constant 35 : index
    %c0_92 = arith.constant 0 : index
    %349 = vector.load %arg4[%c35, %c0_92] : memref<98x256xf32, #tpu.memory_space<vmem>>, vector<1x256xf32>
    %350 = vector.extract_strided_slice %348 {offsets = [0, 0], sizes = [1, 256], strides = [1, 1]} : vector<2x256xf32> to vector<1x256xf32>
    %351 = arith.mulf %349, %350 : vector<1x256xf32>
    %352 = arith.addf %343, %351 : vector<1x256xf32>
    %c84 = arith.constant 84 : index
    %c0_93 = arith.constant 0 : index
    %353 = vector.load %arg4[%c84, %c0_93] : memref<98x256xf32, #tpu.memory_space<vmem>>, vector<1x256xf32>
    %354 = vector.extract_strided_slice %348 {offsets = [1, 0], sizes = [1, 256], strides = [1, 1]} : vector<2x256xf32> to vector<1x256xf32>
    %355 = arith.mulf %353, %354 : vector<1x256xf32>
    %356 = arith.addf %347, %355 : vector<1x256xf32>
    %c226_i32 = arith.constant 226 : i32
    %357 = tpu.dynamic_rotate %31 by %c226_i32 dim 1 : vector<2x256xf32>, i32 -> vector<2x256xf32>
    %c36 = arith.constant 36 : index
    %c0_94 = arith.constant 0 : index
    %358 = vector.load %arg4[%c36, %c0_94] : memref<98x256xf32, #tpu.memory_space<vmem>>, vector<1x256xf32>
    %359 = vector.extract_strided_slice %357 {offsets = [0, 0], sizes = [1, 256], strides = [1, 1]} : vector<2x256xf32> to vector<1x256xf32>
    %360 = arith.mulf %358, %359 : vector<1x256xf32>
    %361 = arith.addf %352, %360 : vector<1x256xf32>
    %c85 = arith.constant 85 : index
    %c0_95 = arith.constant 0 : index
    %362 = vector.load %arg4[%c85, %c0_95] : memref<98x256xf32, #tpu.memory_space<vmem>>, vector<1x256xf32>
    %363 = vector.extract_strided_slice %357 {offsets = [1, 0], sizes = [1, 256], strides = [1, 1]} : vector<2x256xf32> to vector<1x256xf32>
    %364 = arith.mulf %362, %363 : vector<1x256xf32>
    %365 = arith.addf %356, %364 : vector<1x256xf32>
    %c225_i32 = arith.constant 225 : i32
    %366 = tpu.dynamic_rotate %31 by %c225_i32 dim 1 : vector<2x256xf32>, i32 -> vector<2x256xf32>
    %c37 = arith.constant 37 : index
    %c0_96 = arith.constant 0 : index
    %367 = vector.load %arg4[%c37, %c0_96] : memref<98x256xf32, #tpu.memory_space<vmem>>, vector<1x256xf32>
    %368 = vector.extract_strided_slice %366 {offsets = [0, 0], sizes = [1, 256], strides = [1, 1]} : vector<2x256xf32> to vector<1x256xf32>
    %369 = arith.mulf %367, %368 : vector<1x256xf32>
    %370 = arith.addf %361, %369 : vector<1x256xf32>
    %c86 = arith.constant 86 : index
    %c0_97 = arith.constant 0 : index
    %371 = vector.load %arg4[%c86, %c0_97] : memref<98x256xf32, #tpu.memory_space<vmem>>, vector<1x256xf32>
    %372 = vector.extract_strided_slice %366 {offsets = [1, 0], sizes = [1, 256], strides = [1, 1]} : vector<2x256xf32> to vector<1x256xf32>
    %373 = arith.mulf %371, %372 : vector<1x256xf32>
    %374 = arith.addf %365, %373 : vector<1x256xf32>
    %c224_i32 = arith.constant 224 : i32
    %375 = tpu.dynamic_rotate %31 by %c224_i32 dim 1 : vector<2x256xf32>, i32 -> vector<2x256xf32>
    %c38 = arith.constant 38 : index
    %c0_98 = arith.constant 0 : index
    %376 = vector.load %arg4[%c38, %c0_98] : memref<98x256xf32, #tpu.memory_space<vmem>>, vector<1x256xf32>
    %377 = vector.extract_strided_slice %375 {offsets = [0, 0], sizes = [1, 256], strides = [1, 1]} : vector<2x256xf32> to vector<1x256xf32>
    %378 = arith.mulf %376, %377 : vector<1x256xf32>
    %379 = arith.addf %370, %378 : vector<1x256xf32>
    %c87 = arith.constant 87 : index
    %c0_99 = arith.constant 0 : index
    %380 = vector.load %arg4[%c87, %c0_99] : memref<98x256xf32, #tpu.memory_space<vmem>>, vector<1x256xf32>
    %381 = vector.extract_strided_slice %375 {offsets = [1, 0], sizes = [1, 256], strides = [1, 1]} : vector<2x256xf32> to vector<1x256xf32>
    %382 = arith.mulf %380, %381 : vector<1x256xf32>
    %383 = arith.addf %374, %382 : vector<1x256xf32>
    %c223_i32 = arith.constant 223 : i32
    %384 = tpu.dynamic_rotate %31 by %c223_i32 dim 1 : vector<2x256xf32>, i32 -> vector<2x256xf32>
    %c39 = arith.constant 39 : index
    %c0_100 = arith.constant 0 : index
    %385 = vector.load %arg4[%c39, %c0_100] : memref<98x256xf32, #tpu.memory_space<vmem>>, vector<1x256xf32>
    %386 = vector.extract_strided_slice %384 {offsets = [0, 0], sizes = [1, 256], strides = [1, 1]} : vector<2x256xf32> to vector<1x256xf32>
    %387 = arith.mulf %385, %386 : vector<1x256xf32>
    %388 = arith.addf %379, %387 : vector<1x256xf32>
    %c88 = arith.constant 88 : index
    %c0_101 = arith.constant 0 : index
    %389 = vector.load %arg4[%c88, %c0_101] : memref<98x256xf32, #tpu.memory_space<vmem>>, vector<1x256xf32>
    %390 = vector.extract_strided_slice %384 {offsets = [1, 0], sizes = [1, 256], strides = [1, 1]} : vector<2x256xf32> to vector<1x256xf32>
    %391 = arith.mulf %389, %390 : vector<1x256xf32>
    %392 = arith.addf %383, %391 : vector<1x256xf32>
    %c222_i32 = arith.constant 222 : i32
    %393 = tpu.dynamic_rotate %31 by %c222_i32 dim 1 : vector<2x256xf32>, i32 -> vector<2x256xf32>
    %c40 = arith.constant 40 : index
    %c0_102 = arith.constant 0 : index
    %394 = vector.load %arg4[%c40, %c0_102] : memref<98x256xf32, #tpu.memory_space<vmem>>, vector<1x256xf32>
    %395 = vector.extract_strided_slice %393 {offsets = [0, 0], sizes = [1, 256], strides = [1, 1]} : vector<2x256xf32> to vector<1x256xf32>
    %396 = arith.mulf %394, %395 : vector<1x256xf32>
    %397 = arith.addf %388, %396 : vector<1x256xf32>
    %c89 = arith.constant 89 : index
    %c0_103 = arith.constant 0 : index
    %398 = vector.load %arg4[%c89, %c0_103] : memref<98x256xf32, #tpu.memory_space<vmem>>, vector<1x256xf32>
    %399 = vector.extract_strided_slice %393 {offsets = [1, 0], sizes = [1, 256], strides = [1, 1]} : vector<2x256xf32> to vector<1x256xf32>
    %400 = arith.mulf %398, %399 : vector<1x256xf32>
    %401 = arith.addf %392, %400 : vector<1x256xf32>
    %c221_i32 = arith.constant 221 : i32
    %402 = tpu.dynamic_rotate %31 by %c221_i32 dim 1 : vector<2x256xf32>, i32 -> vector<2x256xf32>
    %c41 = arith.constant 41 : index
    %c0_104 = arith.constant 0 : index
    %403 = vector.load %arg4[%c41, %c0_104] : memref<98x256xf32, #tpu.memory_space<vmem>>, vector<1x256xf32>
    %404 = vector.extract_strided_slice %402 {offsets = [0, 0], sizes = [1, 256], strides = [1, 1]} : vector<2x256xf32> to vector<1x256xf32>
    %405 = arith.mulf %403, %404 : vector<1x256xf32>
    %406 = arith.addf %397, %405 : vector<1x256xf32>
    %c90 = arith.constant 90 : index
    %c0_105 = arith.constant 0 : index
    %407 = vector.load %arg4[%c90, %c0_105] : memref<98x256xf32, #tpu.memory_space<vmem>>, vector<1x256xf32>
    %408 = vector.extract_strided_slice %402 {offsets = [1, 0], sizes = [1, 256], strides = [1, 1]} : vector<2x256xf32> to vector<1x256xf32>
    %409 = arith.mulf %407, %408 : vector<1x256xf32>
    %410 = arith.addf %401, %409 : vector<1x256xf32>
    %c211_i32 = arith.constant 211 : i32
    %411 = tpu.dynamic_rotate %31 by %c211_i32 dim 1 : vector<2x256xf32>, i32 -> vector<2x256xf32>
    %c42 = arith.constant 42 : index
    %c0_106 = arith.constant 0 : index
    %412 = vector.load %arg4[%c42, %c0_106] : memref<98x256xf32, #tpu.memory_space<vmem>>, vector<1x256xf32>
    %413 = vector.extract_strided_slice %411 {offsets = [0, 0], sizes = [1, 256], strides = [1, 1]} : vector<2x256xf32> to vector<1x256xf32>
    %414 = arith.mulf %412, %413 : vector<1x256xf32>
    %415 = arith.addf %406, %414 : vector<1x256xf32>
    %c91 = arith.constant 91 : index
    %c0_107 = arith.constant 0 : index
    %416 = vector.load %arg4[%c91, %c0_107] : memref<98x256xf32, #tpu.memory_space<vmem>>, vector<1x256xf32>
    %417 = vector.extract_strided_slice %411 {offsets = [1, 0], sizes = [1, 256], strides = [1, 1]} : vector<2x256xf32> to vector<1x256xf32>
    %418 = arith.mulf %416, %417 : vector<1x256xf32>
    %419 = arith.addf %410, %418 : vector<1x256xf32>
    %c210_i32 = arith.constant 210 : i32
    %420 = tpu.dynamic_rotate %31 by %c210_i32 dim 1 : vector<2x256xf32>, i32 -> vector<2x256xf32>
    %c43 = arith.constant 43 : index
    %c0_108 = arith.constant 0 : index
    %421 = vector.load %arg4[%c43, %c0_108] : memref<98x256xf32, #tpu.memory_space<vmem>>, vector<1x256xf32>
    %422 = vector.extract_strided_slice %420 {offsets = [0, 0], sizes = [1, 256], strides = [1, 1]} : vector<2x256xf32> to vector<1x256xf32>
    %423 = arith.mulf %421, %422 : vector<1x256xf32>
    %424 = arith.addf %415, %423 : vector<1x256xf32>
    %c92 = arith.constant 92 : index
    %c0_109 = arith.constant 0 : index
    %425 = vector.load %arg4[%c92, %c0_109] : memref<98x256xf32, #tpu.memory_space<vmem>>, vector<1x256xf32>
    %426 = vector.extract_strided_slice %420 {offsets = [1, 0], sizes = [1, 256], strides = [1, 1]} : vector<2x256xf32> to vector<1x256xf32>
    %427 = arith.mulf %425, %426 : vector<1x256xf32>
    %428 = arith.addf %419, %427 : vector<1x256xf32>
    %c209_i32 = arith.constant 209 : i32
    %429 = tpu.dynamic_rotate %31 by %c209_i32 dim 1 : vector<2x256xf32>, i32 -> vector<2x256xf32>
    %c44 = arith.constant 44 : index
    %c0_110 = arith.constant 0 : index
    %430 = vector.load %arg4[%c44, %c0_110] : memref<98x256xf32, #tpu.memory_space<vmem>>, vector<1x256xf32>
    %431 = vector.extract_strided_slice %429 {offsets = [0, 0], sizes = [1, 256], strides = [1, 1]} : vector<2x256xf32> to vector<1x256xf32>
    %432 = arith.mulf %430, %431 : vector<1x256xf32>
    %433 = arith.addf %424, %432 : vector<1x256xf32>
    %c93 = arith.constant 93 : index
    %c0_111 = arith.constant 0 : index
    %434 = vector.load %arg4[%c93, %c0_111] : memref<98x256xf32, #tpu.memory_space<vmem>>, vector<1x256xf32>
    %435 = vector.extract_strided_slice %429 {offsets = [1, 0], sizes = [1, 256], strides = [1, 1]} : vector<2x256xf32> to vector<1x256xf32>
    %436 = arith.mulf %434, %435 : vector<1x256xf32>
    %437 = arith.addf %428, %436 : vector<1x256xf32>
    %c208_i32 = arith.constant 208 : i32
    %438 = tpu.dynamic_rotate %31 by %c208_i32 dim 1 : vector<2x256xf32>, i32 -> vector<2x256xf32>
    %c45 = arith.constant 45 : index
    %c0_112 = arith.constant 0 : index
    %439 = vector.load %arg4[%c45, %c0_112] : memref<98x256xf32, #tpu.memory_space<vmem>>, vector<1x256xf32>
    %440 = vector.extract_strided_slice %438 {offsets = [0, 0], sizes = [1, 256], strides = [1, 1]} : vector<2x256xf32> to vector<1x256xf32>
    %441 = arith.mulf %439, %440 : vector<1x256xf32>
    %442 = arith.addf %433, %441 : vector<1x256xf32>
    %c94 = arith.constant 94 : index
    %c0_113 = arith.constant 0 : index
    %443 = vector.load %arg4[%c94, %c0_113] : memref<98x256xf32, #tpu.memory_space<vmem>>, vector<1x256xf32>
    %444 = vector.extract_strided_slice %438 {offsets = [1, 0], sizes = [1, 256], strides = [1, 1]} : vector<2x256xf32> to vector<1x256xf32>
    %445 = arith.mulf %443, %444 : vector<1x256xf32>
    %446 = arith.addf %437, %445 : vector<1x256xf32>
    %c207_i32 = arith.constant 207 : i32
    %447 = tpu.dynamic_rotate %31 by %c207_i32 dim 1 : vector<2x256xf32>, i32 -> vector<2x256xf32>
    %c46 = arith.constant 46 : index
    %c0_114 = arith.constant 0 : index
    %448 = vector.load %arg4[%c46, %c0_114] : memref<98x256xf32, #tpu.memory_space<vmem>>, vector<1x256xf32>
    %449 = vector.extract_strided_slice %447 {offsets = [0, 0], sizes = [1, 256], strides = [1, 1]} : vector<2x256xf32> to vector<1x256xf32>
    %450 = arith.mulf %448, %449 : vector<1x256xf32>
    %451 = arith.addf %442, %450 : vector<1x256xf32>
    %c95 = arith.constant 95 : index
    %c0_115 = arith.constant 0 : index
    %452 = vector.load %arg4[%c95, %c0_115] : memref<98x256xf32, #tpu.memory_space<vmem>>, vector<1x256xf32>
    %453 = vector.extract_strided_slice %447 {offsets = [1, 0], sizes = [1, 256], strides = [1, 1]} : vector<2x256xf32> to vector<1x256xf32>
    %454 = arith.mulf %452, %453 : vector<1x256xf32>
    %455 = arith.addf %446, %454 : vector<1x256xf32>
    %c206_i32 = arith.constant 206 : i32
    %456 = tpu.dynamic_rotate %31 by %c206_i32 dim 1 : vector<2x256xf32>, i32 -> vector<2x256xf32>
    %c47 = arith.constant 47 : index
    %c0_116 = arith.constant 0 : index
    %457 = vector.load %arg4[%c47, %c0_116] : memref<98x256xf32, #tpu.memory_space<vmem>>, vector<1x256xf32>
    %458 = vector.extract_strided_slice %456 {offsets = [0, 0], sizes = [1, 256], strides = [1, 1]} : vector<2x256xf32> to vector<1x256xf32>
    %459 = arith.mulf %457, %458 : vector<1x256xf32>
    %460 = arith.addf %451, %459 : vector<1x256xf32>
    %c96 = arith.constant 96 : index
    %c0_117 = arith.constant 0 : index
    %461 = vector.load %arg4[%c96, %c0_117] : memref<98x256xf32, #tpu.memory_space<vmem>>, vector<1x256xf32>
    %462 = vector.extract_strided_slice %456 {offsets = [1, 0], sizes = [1, 256], strides = [1, 1]} : vector<2x256xf32> to vector<1x256xf32>
    %463 = arith.mulf %461, %462 : vector<1x256xf32>
    %464 = arith.addf %455, %463 : vector<1x256xf32>
    %c205_i32 = arith.constant 205 : i32
    %465 = tpu.dynamic_rotate %31 by %c205_i32 dim 1 : vector<2x256xf32>, i32 -> vector<2x256xf32>
    %c48 = arith.constant 48 : index
    %c0_118 = arith.constant 0 : index
    %466 = vector.load %arg4[%c48, %c0_118] : memref<98x256xf32, #tpu.memory_space<vmem>>, vector<1x256xf32>
    %467 = vector.extract_strided_slice %465 {offsets = [0, 0], sizes = [1, 256], strides = [1, 1]} : vector<2x256xf32> to vector<1x256xf32>
    %468 = arith.mulf %466, %467 : vector<1x256xf32>
    %469 = arith.addf %460, %468 : vector<1x256xf32>
    %c97 = arith.constant 97 : index
    %c0_119 = arith.constant 0 : index
    %470 = vector.load %arg4[%c97, %c0_119] : memref<98x256xf32, #tpu.memory_space<vmem>>, vector<1x256xf32>
    %471 = vector.extract_strided_slice %465 {offsets = [1, 0], sizes = [1, 256], strides = [1, 1]} : vector<2x256xf32> to vector<1x256xf32>
    %472 = arith.mulf %470, %471 : vector<1x256xf32>
    %473 = arith.addf %464, %472 : vector<1x256xf32>
    %474 = arith.addf %469, %473 : vector<1x256xf32>
    %cst_120 = arith.constant 0.000000e+00 : f32
    %475 = vector.broadcast %cst_120 : f32 to vector<1x256xf32>
    %476 = arith.subf %475, %474 : vector<1x256xf32>
    %477 = math.exp %476 : vector<1x256xf32>
    %cst_121 = arith.constant 1.000000e+00 : f32
    %478 = vector.broadcast %cst_121 : f32 to vector<1x256xf32>
    %479 = arith.addf %478, %477 : vector<1x256xf32>
    %480 = tpu.reciprocal %479 {approx = true} : vector<1x256xf32> -> vector<1x256xf32>
    %481 = vector.shape_cast %480 : vector<1x256xf32> to vector<1x1x256xf32>
    %482 = vector.broadcast %481 : vector<1x1x256xf32> to vector<1x32x256xf32>
    %483 = arith.mulf %24, %482 : vector<1x32x256xf32>
    %c0_122 = arith.constant 0 : index
    %c0_123 = arith.constant 0 : index
    %c0_124 = arith.constant 0 : index
    %484 = vector.load %arg6[%c0_122, %c0_123, %c0_124] : memref<1x32x256xf32, #tpu.memory_space<vmem>>, vector<1x32x256xf32>
    tpu.vector_store %arg6[%c0_122, %c0_123, %c0_124], %483 {strides = array<i32>} : memref<1x32x256xf32, #tpu.memory_space<vmem>>, vector<1x32x256xf32>,
    return
  }
  func.func @transform_0(%arg0: i32) -> (i32, i32, i32) {
    %c0_i32 = arith.constant 0 : i32
    %c0_i32_0 = arith.constant 0 : i32
    %c0_i32_1 = arith.constant 0 : i32
    return %arg0, %c0_i32, %c0_i32_0 : i32, i32, i32
  }
  func.func @transform_1(%arg0: i32) -> (i32, i32) {
    %c0_i32 = arith.constant 0 : i32
    %c0_i32_0 = arith.constant 0 : i32
    %c0_i32_1 = arith.constant 0 : i32
    return %c0_i32, %c0_i32_0 : i32, i32
  }
  func.func @transform_2(%arg0: i32) -> (i32, i32) {
    %c0_i32 = arith.constant 0 : i32
    %c0_i32_0 = arith.constant 0 : i32
    %c0_i32_1 = arith.constant 0 : i32
    return %c0_i32, %c0_i32_0 : i32, i32
  }
  func.func @transform_3(%arg0: i32) -> (i32, i32) {
    %c0_i32 = arith.constant 0 : i32
    %c0_i32_0 = arith.constant 0 : i32
    %c0_i32_1 = arith.constant 0 : i32
    return %c0_i32, %c0_i32_0 : i32, i32
  }
  func.func @transform_4(%arg0: i32) -> (i32, i32) {
    %c0_i32 = arith.constant 0 : i32
    %c0_i32_0 = arith.constant 0 : i32
    %c0_i32_1 = arith.constant 0 : i32
    return %c0_i32, %c0_i32_0 : i32, i32
  }
  func.func @transform_5(%arg0: i32) -> (i32, i32, i32) {
    %c0_i32 = arith.constant 0 : i32
    %c0_i32_0 = arith.constant 0 : i32
    %c0_i32_1 = arith.constant 0 : i32
    return %arg0, %c0_i32, %c0_i32_0 : i32, i32, i32
  }
}

</mosaic_0001>

<llo_original>
// kernel: mul.9
$region0: #{mul.9}
  %s0 = inlined_call_operand.vmem [shape: f32[7,7], index: 0, kind: input, shape index: {}]
  %s1 = inlined_call_operand.vmem [shape: f32[49], index: 1, kind: output, shape index: {}]
  $region1: #{mul.9} parent=0
    #allocation0 [shape = 'u8[4096]{0}', space=vmem, size = 0x1000, scoped, tag = 'scoped mem for output reshape']
    %v2 = vld [vmem:[%s0] sm:$0x1]
    %vm3 = vcmask 56320
    %4 = vst.msk [vmem:[#allocation0] sm:$0x1] %vm3, %v2
    %s5 = scalar_lea.vmem %s0, 6
    %v6 = vld [vmem:[%s5] sm:$0x1]
    %7 = vrot.lane.b32.xlu0 %v6, 42
    %v8 = vpop.permute.xlu0 %7
    %vm9 = vcmask 400720
    %10 = vst.msk [vmem:[#allocation0] sm:$0x1] %vm9, %v8
    %s11 = scalar_lea.vmem %s0, 5
    %v12 = vld [vmem:[%s11] sm:$0x1]
    %13 = vrot.lane.b32.xlu0 %v12, 35
    %v14 = vpop.permute.xlu0 %13
    %vm15 = vcmask 343320
    %16 = vst.msk [vmem:[#allocation0] sm:$0x1] %vm15, %v14
    %s17 = scalar_lea.vmem %s0, 4
    %v18 = vld [vmem:[%s17] sm:$0x1]
    %19 = vrot.lane.b32.xlu0 %v18, 28
    %v20 = vpop.permute.xlu0 %19
    %vm21 = vcmask 285920
    %22 = vst.msk [vmem:[#allocation0] sm:$0x1] %vm21, %v20
    %s23 = scalar_lea.vmem %s0, 3
    %v24 = vld [vmem:[%s23] sm:$0x1]
    %25 = vrot.lane.b32.xlu0 %v24, 21
    %v26 = vpop.permute.xlu0 %25
    %vm27 = vcmask 228520
    %28 = vst.msk [vmem:[#allocation0] sm:$0x1] %vm27, %v26
    %s29 = scalar_lea.vmem %s0, 2
    %v30 = vld [vmem:[%s29] sm:$0x1]
    %31 = vrot.lane.b32.xlu0 %v30, 14
    %v32 = vpop.permute.xlu0 %31
    %vm33 = vcmask 171120
    %34 = vst.msk [vmem:[#allocation0] sm:$0x1] %vm33, %v32
    %s35 = scalar_lea.vmem %s0, 1
    %v36 = vld [vmem:[%s35] sm:$0x1]
    %37 = vrot.lane.b32.xlu0 %v36, 7
    %v38 = vpop.permute.xlu0 %37
    %vm39 = vcmask 113720
    %40 = vst.msk [vmem:[#allocation0] sm:$0x1] %vm39, %v38
    %s42 = sshllo.u32 0, 1
    %v44 = vld [vmem:[#allocation0] sm:%s42]
    %s45 = sshllo.u32 0, 1
    %46 = vst [vmem:[%s1] sm:%s45] %v44

// kernel: cbam_pallas.1
$region0: #{cbam_pallas.1}
  #allocation0 [shape = 'u32[]', space=smem, size = 0x4, offset = 0x4, fixed_abs, tag = 'smem constant byte address 0x4 - core index']
  #allocation1 [shape = 'u32[144,128]{1,0:T(1,128)}', space=vmem, size = 0x12000, scoped, tag = 'internal scratch']
  %s0 = inlined_call_operand.vmem [shape: f32[2,32,256], index: 0, kind: input, shape index: {}]
  %s1 = inlined_call_operand.vmem [shape: f32[32,2], index: 1, kind: input, shape index: {}]
  %s2 = inlined_call_operand.vmem [shape: f32[2,32], index: 2, kind: input, shape index: {}]
  %s3 = inlined_call_operand.vmem [shape: f32[98,256], index: 3, kind: input, shape index: {}]
  %s4 = inlined_call_operand.vmem [shape: f32[1,32], index: 4, kind: input, shape index: {}]
  %s5 = inlined_call_operand.vmem [shape: f32[2,32,256], index: 5, kind: output, shape index: {}]
  %s6 = sld [smem:[#allocation0]]
  $region53: #{cbam_pallas.1} parent=0
    _
  %s8 = ssub.s32 1, %s6
  %s9 = scalar_select 0, %s8, %s6
  loop: start=0, step=1, limit=4
  $region2: #{cbam_pallas.1} parent=0 // loop_pre_header
    _
  $region3: #{cbam_pallas.1} parent=0 // loop_header
    %s11 = sphi 0, %s15
    %p12 = scmp.ge.s32.totalorder %s11, 4
    %s21 = sphi 0, %s23
    %s24 = sphi 0, %s21
    %s25 = sphi 0, %s24
    %s41 = sphi 0, %s25
    %s45 = sphi 0, %s45
    %s47 = sphi 0, %s45
    %s48 = sphi 0, %s47
    %s62 = sphi 0, %s48
    %s66 = sphi 0, %s66
    %s68 = sphi 0, %s66
    %s69 = sphi 0, %s68
    %s83 = sphi 0, %s69
    %s87 = sphi 0, %s87
    %s89 = sphi 0, %s87
    %s90 = sphi 0, %s89
    %s104 = sphi 0, %s90
    %s108 = sphi 0, %s108
    %s110 = sphi 0, %s108
    %s111 = sphi 0, %s110
    %s125 = sphi 0, %s111
    %s131 = sphi 0, %s133
    %s134 = sphi 0, %s131
    %s135 = sphi 0, %s134
    %s151 = sphi 0, %s135
  $region4: #{cbam_pallas.1} parent=0 // loop_header_branch
    %14 = sbr.rel (%p12) target = $region8
  $region5: #{cbam_pallas.1} parent=0 // loop_body
    %s16 = ssub.s32 %s11, 1
    %s17 = ssub.s32 %s11, 2
    %s18 = sadd.s32 %s11, 1
    %s19 = ssub.s32 %s11, %s18
    %p20 = scmp.eq.s32.totalorder %s19, 0
    %s22 = sadd.s32 %s21, 1
    %s23 = scalar_select %p20, %s21, %s22
    %p26 = pneg %p20
    %p27 = scmp.eq.s32.totalorder %s11, 1
    %p28 = por %p26, %p27
    %p29 = scmp.ne.s32.totalorder %s21, %s24
    %p30 = scmp.eq.s32.totalorder %s11, 0
    %p31 = por %p29, %p30
    %p32 = scmp.ne.s32.totalorder %s21, %s24
    %p33 = scmp.eq.s32.totalorder %s16, 1
    %p34 = por %p32, %p33
    %p35 = scmp.ne.s32.totalorder %s24, %s25
    %p36 = scmp.eq.s32.totalorder %s16, 0
    %p37 = por %p35, %p36
    %p38 = scmp.ne.s32.totalorder %s24, %s25
    %p39 = scmp.eq.s32.totalorder %s17, 1
    %p40 = por %p38, %p39
    %p42 = scmp.ne.s32.totalorder %s25, %s41
    %p43 = scmp.eq.s32.totalorder %s17, 0
    %p44 = por %p42, %p43
    %s46 = sadd.s32 %s45, 1
    %p49 = scmp.eq.s32.totalorder %s11, 1
    %p50 = scmp.ne.s32.totalorder %s45, %s47
    %p51 = scmp.eq.s32.totalorder %s11, 0
    %p52 = por %p50, %p51
    %p53 = scmp.ne.s32.totalorder %s45, %s47
    %p54 = scmp.eq.s32.totalorder %s16, 1
    %p55 = por %p53, %p54
    %p56 = scmp.ne.s32.totalorder %s47, %s48
    %p57 = scmp.eq.s32.totalorder %s16, 0
    %p58 = por %p56, %p57
    %p59 = scmp.ne.s32.totalorder %s47, %s48
    %p60 = scmp.eq.s32.totalorder %s17, 1
    %p61 = por %p59, %p60
    %p63 = scmp.ne.s32.totalorder %s48, %s62
    %p64 = scmp.eq.s32.totalorder %s17, 0
    %p65 = por %p63, %p64
    %s67 = sadd.s32 %s66, 1
    %p70 = scmp.eq.s32.totalorder %s11, 1
    %p71 = scmp.ne.s32.totalorder %s66, %s68
    %p72 = scmp.eq.s32.totalorder %s11, 0
    %p73 = por %p71, %p72
    %p74 = scmp.ne.s32.totalorder %s66, %s68
    %p75 = scmp.eq.s32.totalorder %s16, 1
    %p76 = por %p74, %p75
    %p77 = scmp.ne.s32.totalorder %s68, %s69
    %p78 = scmp.eq.s32.totalorder %s16, 0
    %p79 = por %p77, %p78
    %p80 = scmp.ne.s32.totalorder %s68, %s69
    %p81 = scmp.eq.s32.totalorder %s17, 1
    %p82 = por %p80, %p81
    %p84 = scmp.ne.s32.totalorder %s69, %s83
    %p85 = scmp.eq.s32.totalorder %s17, 0
    %p86 = por %p84, %p85
    %s88 = sadd.s32 %s87, 1
    %p91 = scmp.eq.s32.totalorder %s11, 1
    %p92 = scmp.ne.s32.totalorder %s87, %s89
    %p93 = scmp.eq.s32.totalorder %s11, 0
    %p94 = por %p92, %p93
    %p95 = scmp.ne.s32.totalorder %s87, %s89
    %p96 = scmp.eq.s32.totalorder %s16, 1
    %p97 = por %p95, %p96
    %p98 = scmp.ne.s32.totalorder %s89, %s90
    %p99 = scmp.eq.s32.totalorder %s16, 0
    %p100 = por %p98, %p99
    %p101 = scmp.ne.s32.totalorder %s89, %s90
    %p102 = scmp.eq.s32.totalorder %s17, 1
    %p103 = por %p101, %p102
    %p105 = scmp.ne.s32.totalorder %s90, %s104
    %p106 = scmp.eq.s32.totalorder %s17, 0
    %p107 = por %p105, %p106
    %s109 = sadd.s32 %s108, 1
    %p112 = scmp.eq.s32.totalorder %s11, 1
    %p113 = scmp.ne.s32.totalorder %s108, %s110
    %p114 = scmp.eq.s32.totalorder %s11, 0
    %p115 = por %p113, %p114
    %p116 = scmp.ne.s32.totalorder %s108, %s110
    %p117 = scmp.eq.s32.totalorder %s16, 1
    %p118 = por %p116, %p117
    %p119 = scmp.ne.s32.totalorder %s110, %s111
    %p120 = scmp.eq.s32.totalorder %s16, 0
    %p121 = por %p119, %p120
    %p122 = scmp.ne.s32.totalorder %s110, %s111
    %p123 = scmp.eq.s32.totalorder %s17, 1
    %p124 = por %p122, %p123
    %p126 = scmp.ne.s32.totalorder %s111, %s125
    %p127 = scmp.eq.s32.totalorder %s17, 0
    %p128 = por %p126, %p127
    %s129 = ssub.s32 %s11, %s18
    %p130 = scmp.eq.s32.totalorder %s129, 0
    %s132 = sadd.s32 %s131, 1
    %s133 = scalar_select %p130, %s131, %s132
    %p136 = pneg %p130
    %p137 = scmp.eq.s32.totalorder %s11, 1
    %p138 = por %p136, %p137
    %p139 = scmp.ne.s32.totalorder %s131, %s134
    %p140 = scmp.eq.s32.totalorder %s11, 0
    %p141 = por %p139, %p140
    %p142 = scmp.ne.s32.totalorder %s131, %s134
    %p143 = scmp.eq.s32.totalorder %s16, 1
    %p144 = por %p142, %p143
    %p145 = scmp.ne.s32.totalorder %s134, %s135
    %p146 = scmp.eq.s32.totalorder %s16, 0
    %p147 = por %p145, %p146
    %p148 = scmp.ne.s32.totalorder %s134, %s135
    %p149 = scmp.eq.s32.totalorder %s17, 1
    %p150 = por %p148, %p149
    %p152 = scmp.ne.s32.totalorder %s135, %s151
    %p153 = scmp.eq.s32.totalorder %s17, 0
    %p154 = por %p152, %p153
    %p155 = scmp.le.s32.totalorder 1, %s11
    %p156 = scmp.lt.s32.totalorder %s11, 3
    %p157 = pnand %p155, %p156
    %p158 = pneg %p157
    // Predicated region
    $region9: #{cbam_pallas.1} parent=5 // pred_check
      _
    $region10: #{cbam_pallas.1} parent=5 // pred_check_branch
      %160 = sbr.rel (%p157) target = $region12
    $region11: #{cbam_pallas.1} parent=5 // pred_region
      %s161 = ssub.s32 %s11, 1
      // Predicated region
      $region13: #{cbam_pallas.1} parent=11 // pred_check
        %p162 = pneg %p58
      $region14: #{cbam_pallas.1} parent=11 // pred_check_branch
        %164 = sbr.rel (%p162) target = $region16
      $region15: #{cbam_pallas.1} parent=11 // pred_region
        _
      $region16: #{cbam_pallas.1} parent=11 // pred_fallthru
        _
      // Predicated region
      $region17: #{cbam_pallas.1} parent=11 // pred_check
        %p165 = pneg %p79
      $region18: #{cbam_pallas.1} parent=11 // pred_check_branch
        %167 = sbr.rel (%p165) target = $region20
      $region19: #{cbam_pallas.1} parent=11 // pred_region
        _
      $region20: #{cbam_pallas.1} parent=11 // pred_fallthru
        _
      // Predicated region
      $region21: #{cbam_pallas.1} parent=11 // pred_check
        %p168 = pneg %p100
      $region22: #{cbam_pallas.1} parent=11 // pred_check_branch
        %170 = sbr.rel (%p168) target = $region24
      $region23: #{cbam_pallas.1} parent=11 // pred_region
        _
      $region24: #{cbam_pallas.1} parent=11 // pred_fallthru
        _
      // Predicated region
      $region25: #{cbam_pallas.1} parent=11 // pred_check
        %p171 = pneg %p121
      $region26: #{cbam_pallas.1} parent=11 // pred_check_branch
        %173 = sbr.rel (%p171) target = $region28
      $region27: #{cbam_pallas.1} parent=11 // pred_region
        _
      $region28: #{cbam_pallas.1} parent=11 // pred_fallthru
        _
    $region12: #{cbam_pallas.1} parent=5 // pred_fallthru
      _
    %p174 = scmp.lt.s32.totalorder %s11, 2
    // Predicated region
    $region29: #{cbam_pallas.1} parent=5 // pred_check
      %p175 = pneg %p174
    $region30: #{cbam_pallas.1} parent=5 // pred_check_branch
      %177 = sbr.rel (%p175) target = $region32
    $region31: #{cbam_pallas.1} parent=5 // pred_region
      // Predicated region
      $region33: #{cbam_pallas.1} parent=31 // pred_check
        %p178 = pneg %p31
      $region34: #{cbam_pallas.1} parent=31 // pred_check_branch
        %180 = sbr.rel (%p178) target = $region36
      $region35: #{cbam_pallas.1} parent=31 // pred_region
        %p181 = scmp.lt.s32.totalorder %s11, 1
        %s182 = scalar_select %p181, %s11, 1
        %s183 = smul.addr %s182, 8
        %s184 = smul.addr %s183, 8
        %s185 = scalar_lea.vmem %s0, %s184
      $region36: #{cbam_pallas.1} parent=31 // pred_fallthru
        _
    $region32: #{cbam_pallas.1} parent=5 // pred_fallthru
      _
    %p186 = scmp.le.s32.totalorder 1, %s11
    %p187 = scmp.lt.s32.totalorder %s11, 3
    %p188 = pnand %p186, %p187
    %p189 = pneg %p188
    // Predicated region
    $region37: #{cbam_pallas.1} parent=5 // pred_check
      _
    $region38: #{cbam_pallas.1} parent=5 // pred_check_branch
      %191 = sbr.rel (%p188) target = $region40
    $region39: #{cbam_pallas.1} parent=5 // pred_region
      %s192 = ssub.s32 %s11, 1
      %p193 = scmp.lt.s32.totalorder %s16, 1
      %s194 = scalar_select %p193, %s16, 1
      %s195 = smul.addr %s194, 8
      %s196 = smul.addr %s195, 8
      %s197 = scalar_lea.vmem %s0, %s196
      %p198 = pneg %p37
      %p199 = pneg %p34
      %p200 = pneg %p58
      %p201 = pneg %p55
      %p202 = pneg %p79
      %p203 = pneg %p76
      %p204 = pneg %p100
      %p205 = pneg %p97
      %p206 = pneg %p121
      %p207 = pneg %p118
      %p208 = pneg %p147
      %p209 = pneg %p144
      %p210 = scmp.lt.s32.totalorder %s16, 1
      %s211 = scalar_select %p210, %s16, 1
      %s212 = smul.addr %s211, 8
      %s213 = smul.addr %s212, 8
      %s214 = scalar_lea.vmem %s5, %s213
      %p215 = scmp.lt.s32.totalorder %s16, 1
      %s216 = scalar_select %p215, %s16, 1
      %s217 = smul.addr %s216, 8
      %s218 = smul.addr %s217, 8
      %s219 = scalar_lea.vmem %s0, %s218
      %p220 = scmp.lt.s32.totalorder %s16, 1
      %s221 = scalar_select %p220, %s16, 1
      %s222 = smul.addr %s221, 8
      %s223 = smul.addr %s222, 8
      %s224 = scalar_lea.vmem %s5, %s223
      %v225 = vld [vmem:[%s219] sm:$0xff]
      %v226 = vld [vmem:[%s219 + $0x8] sm:$0xff]
      %v227 = vld [vmem:[%s219 + $0x10] sm:$0xff]
      %v228 = vld [vmem:[%s219 + $0x18] sm:$0xff]
      %v229 = vld [vmem:[%s219 + $0x20] sm:$0xff]
      %v230 = vld [vmem:[%s219 + $0x28] sm:$0xff]
      %v231 = vld [vmem:[%s219 + $0x30] sm:$0xff]
      %v232 = vld [vmem:[%s219 + $0x38] sm:$0xff]
      %v233 = vadd.f32 %v225, %v226
      %234 = vadd.xlane.f32.xlu0 %v233
      %v235 = vpop.xlane.xlu0 %234
      %v236 = vadd.f32 %v227, %v228
      %237 = vadd.xlane.f32.xlu0 %v236
      %v238 = vpop.xlane.xlu0 %237
      %v239 = vadd.f32 %v229, %v230
      %240 = vadd.xlane.f32.xlu0 %v239
      %v241 = vpop.xlane.xlu0 %240
      %v242 = vadd.f32 %v231, %v232
      %243 = vadd.xlane.f32.xlu0 %v242
      %v244 = vpop.xlane.xlu0 %243
      %v245 = vmul.f32 %v235, 0.00390625
      %v246 = vmul.f32 %v238, 0.00390625
      %v247 = vmul.f32 %v241, 0.00390625
      %v248 = vmul.f32 %v244, 0.00390625
      %v249 = vmax.f32 %v225, %v226
      %250 = vmax.xlane.f32.xlu0 %v249
      %v251 = vpop.xlane.xlu0 %250
      %v252 = vmax.f32 %v227, %v228
      %253 = vmax.xlane.f32.xlu0 %v252
      %v254 = vpop.xlane.xlu0 %253
      %v255 = vmax.f32 %v229, %v230
      %256 = vmax.xlane.f32.xlu0 %v255
      %v257 = vpop.xlane.xlu0 %256
      %v258 = vmax.f32 %v231, %v232
      %259 = vmax.xlane.f32.xlu0 %v258
      %v260 = vpop.xlane.xlu0 %259
      %v265 = vlaneseq
      %v266 = vand.u32 %v265, 127
      %v267 = vlaneseq
      %v268 = vshrl.u32 %v267, 7
      %v269 = vsub.s32 %v266, %v268
      %v270 = vrot.slane %v245, %v269
      %v271 = vadd.s32 %v266, 4294967288
      %v272 = vlaneseq
      %v273 = vshrl.u32 %v272, 7
      %v274 = vsub.s32 %v271, %v273
      %v275 = vrot.slane %v246, %v274
      %vm276 = vcmask 130112
      %v277 = vsel %vm276, %v275, %v270
      %v278 = vadd.s32 %v266, 4294967280
      %v279 = vlaneseq
      %v280 = vshrl.u32 %v279, 7
      %v281 = vsub.s32 %v278, %v280
      %v282 = vrot.slane %v247, %v281
      %vm283 = vcmask 195712
      %v284 = vsel %vm283, %v282, %v277
      %v285 = vadd.s32 %v266, 4294967272
      %v286 = vlaneseq
      %v287 = vshrl.u32 %v286, 7
      %v288 = vsub.s32 %v285, %v287
      %v289 = vrot.slane %v248, %v288
      %vm290 = vcmask 261312
      %v291 = vsel %vm290, %v289, %v284
      %v297 = vlaneseq
      %v298 = vshrl.u32 %v297, 7
      %v299 = vsub.s32 %v266, %v298
      %v300 = vrot.slane %v251, %v299
      %v301 = vlaneseq
      %v302 = vshrl.u32 %v301, 7
      %v303 = vsub.s32 %v271, %v302
      %v304 = vrot.slane %v254, %v303
      %v305 = vsel %vm276, %v304, %v300
      %v306 = vlaneseq
      %v307 = vshrl.u32 %v306, 7
      %v308 = vsub.s32 %v278, %v307
      %v309 = vrot.slane %v257, %v308
      %v310 = vsel %vm283, %v309, %v305
      %v311 = vlaneseq
      %v312 = vshrl.u32 %v311, 7
      %v313 = vsub.s32 %v285, %v312
      %v314 = vrot.slane %v260, %v313
      %v315 = vsel %vm290, %v314, %v310
      %vm317 = vcmask 1040384
      %v318 = vsel %vm317, %v291, %v315
      %v319 = vld [vmem:[%s1] sm:$0xff]
      %v320 = vld [vmem:[%s1 + $0x8] sm:$0xff]
      %v321 = vld [vmem:[%s1 + $0x10] sm:$0xff]
      %v322 = vld [vmem:[%s1 + $0x18] sm:$0xff]
      %vm323 = vcmask 261120
      %v325 = vsel %vm323, %v318, 0
      %327 = vmatprep.subr.mxu0 0.0
      %328 = vmatpush1.msra.mxu0 %v319
      %329 = vmatprep.subr.mxu0 0.0
      %330 = vmatpush1.msra.mxu0 %v320
      %331 = vmatprep.subr.mxu0 0.0
      %332 = vmatpush1.msra.mxu0 %v321
      %333 = vmatprep.subr.mxu0 0.0
      %334 = vmatpush1.msra.mxu0 %v322
      %335 = vmatprep.subr.mxu0 0.0
      %336 = vmatpush1.msra.mxu0 0.0
      %337 = vmatprep.subr.mxu0 0.0
      %338 = vmatpush1.msra.mxu0 0.0
      %339 = vmatprep.subr.mxu0 0.0
      %340 = vmatpush1.msra.mxu0 0.0
      %341 = vmatprep.subr.mxu0 0.0
      %342 = vmatpush1.msra.mxu0 0.0
      %343 = vmatprep.subr.mxu0 0.0
      %344 = vmatpush1.msra.mxu0 0.0
      %345 = vmatprep.subr.mxu0 0.0
      %346 = vmatpush1.msra.mxu0 0.0
      %347 = vmatprep.subr.mxu0 0.0
      %348 = vmatpush1.msra.mxu0 0.0
      %349 = vmatprep.subr.mxu0 0.0
      %350 = vmatpush1.msra.mxu0 0.0
      %351 = vmatprep.subr.mxu0 0.0
      %352 = vmatpush1.msra.mxu0 0.0
      %353 = vmatprep.subr.mxu0 0.0
      %354 = vmatpush1.msra.mxu0 0.0
      %355 = vmatprep.subr.mxu0 0.0
      %356 = vmatpush1.msra.mxu0 0.0
      %357 = vmatprep.subr.mxu0 0.0
      %358 = vmatpush1.msra.mxu0 0.0
      %359 = vmatprep.subr.mxu0 0.0
      %360 = vmatpush1.msra.mxu0 0.0
      %361 = vmatprep.subr.mxu0 0.0
      %362 = vmatpush1.msra.mxu0 0.0
      %363 = vmatprep.subr.mxu0 0.0
      %364 = vmatpush1.msra.mxu0 0.0
      %365 = vmatprep.subr.mxu0 0.0
      %366 = vmatpush1.msra.mxu0 0.0
      %367 = vmatprep.subr.mxu0 0.0
      %368 = vmatpush1.msra.mxu0 0.0
      %369 = vmatprep.subr.mxu0 0.0
      %370 = vmatpush1.msra.mxu0 0.0
      %371 = vmatprep.subr.mxu0 0.0
      %372 = vmatpush1.msra.mxu0 0.0
      %373 = vmatprep.subr.mxu0 0.0
      %374 = vmatpush1.msra.mxu0 0.0
      %375 = vmatprep.subr.mxu0 0.0
      %376 = vmatpush1.msra.mxu0 0.0
      %377 = vmatprep.subr.mxu0 0.0
      %378 = vmatpush1.msra.mxu0 0.0
      %379 = vmatprep.subr.mxu0 0.0
      %380 = vmatpush1.msra.mxu0 0.0
      %381 = vmatprep.subr.mxu0 0.0
      %382 = vmatpush1.msra.mxu0 0.0
      %383 = vmatprep.subr.mxu0 0.0
      %384 = vmatpush1.msra.mxu0 0.0
      %385 = vmatprep.subr.mxu0 0.0
      %386 = vmatpush1.msra.mxu0 0.0
      %387 = vmatprep.subr.mxu0 0.0
      %388 = vmatpush1.msra.mxu0 0.0
      %389 = vmatprep.subr.mxu0 0.0
      %390 = vmatpush1.msra.mxu0 0.0
      %391 = vmatprep.mubr.f32.mxu0 0.0
      %392 = vmatmul.mubr.f32.gmra.mrb[0].mxu0 %v325
      %v393 = vpop.f32.mrb[0].mxu0
      %v394 = vadd.f32 0.0, %v393
      %v395 = vpop.f32.mrb[0].mxu0
      %396 = vdwg.mxu0
      %v397 = vmax.f32 %v394, 0.0
      %v398 = vld [vmem:[%s2] sm:$0x3]
      %vm399 = vcmask 15360
      %v401 = vsel %vm399, %v397, 0
      %vm403 = vcmask 1041408
      %v405 = vsel %vm403, %v398, 0
      %407 = vmatprep.subr.mxu0 0.0
      %408 = vmatpush1.msra.mxu0 %v405
      %409 = vmatprep.subr.mxu0 0.0
      %410 = vmatpush1.msra.mxu0 0.0
      %411 = vmatprep.subr.mxu0 0.0
      %412 = vmatpush1.msra.mxu0 0.0
      %413 = vmatprep.subr.mxu0 0.0
      %414 = vmatpush1.msra.mxu0 0.0
      %415 = vmatprep.subr.mxu0 0.0
      %416 = vmatpush1.msra.mxu0 0.0
      %417 = vmatprep.subr.mxu0 0.0
      %418 = vmatpush1.msra.mxu0 0.0
      %419 = vmatprep.subr.mxu0 0.0
      %420 = vmatpush1.msra.mxu0 0.0
      %421 = vmatprep.subr.mxu0 0.0
      %422 = vmatpush1.msra.mxu0 0.0
      %423 = vmatprep.subr.mxu0 0.0
      %424 = vmatpush1.msra.mxu0 0.0
      %425 = vmatprep.subr.mxu0 0.0
      %426 = vmatpush1.msra.mxu0 0.0
      %427 = vmatprep.subr.mxu0 0.0
      %428 = vmatpush1.msra.mxu0 0.0
      %429 = vmatprep.subr.mxu0 0.0
      %430 = vmatpush1.msra.mxu0 0.0
      %431 = vmatprep.subr.mxu0 0.0
      %432 = vmatpush1.msra.mxu0 0.0
      %433 = vmatprep.subr.mxu0 0.0
      %434 = vmatpush1.msra.mxu0 0.0
      %435 = vmatprep.subr.mxu0 0.0
      %436 = vmatpush1.msra.mxu0 0.0
      %437 = vmatprep.subr.mxu0 0.0
      %438 = vmatpush1.msra.mxu0 0.0
      %439 = vmatprep.subr.mxu0 0.0
      %440 = vmatpush1.msra.mxu0 0.0
      %441 = vmatprep.subr.mxu0 0.0
      %442 = vmatpush1.msra.mxu0 0.0
      %443 = vmatprep.subr.mxu0 0.0
      %444 = vmatpush1.msra.mxu0 0.0
      %445 = vmatprep.subr.mxu0 0.0
      %446 = vmatpush1.msra.mxu0 0.0
      %447 = vmatprep.subr.mxu0 0.0
      %448 = vmatpush1.msra.mxu0 0.0
      %449 = vmatprep.subr.mxu0 0.0
      %450 = vmatpush1.msra.mxu0 0.0
      %451 = vmatprep.subr.mxu0 0.0
      %452 = vmatpush1.msra.mxu0 0.0
      %453 = vmatprep.subr.mxu0 0.0
      %454 = vmatpush1.msra.mxu0 0.0
      %455 = vmatprep.subr.mxu0 0.0
      %456 = vmatpush1.msra.mxu0 0.0
      %457 = vmatprep.subr.mxu0 0.0
      %458 = vmatpush1.msra.mxu0 0.0
      %459 = vmatprep.subr.mxu0 0.0
      %460 = vmatpush1.msra.mxu0 0.0
      %461 = vmatprep.subr.mxu0 0.0
      %462 = vmatpush1.msra.mxu0 0.0
      %463 = vmatprep.subr.mxu0 0.0
      %464 = vmatpush1.msra.mxu0 0.0
      %465 = vmatprep.subr.mxu0 0.0
      %466 = vmatpush1.msra.mxu0 0.0
      %467 = vmatprep.subr.mxu0 0.0
      %468 = vmatpush1.msra.mxu0 0.0
      %469 = vmatprep.subr.mxu0 0.0
      %470 = vmatpush1.msra.mxu0 0.0
      %471 = vmatprep.mubr.f32.mxu0 0.0
      %472 = vmatmul.mubr.f32.gmra.mrb[0].mxu0 %v401
      %v473 = vpop.f32.mrb[0].mxu0
      %v474 = vadd.f32 0.0, %v473
      %v475 = vpop.f32.mrb[0].mxu0
      %476 = vdwg.mxu0
      %v478 = vrot.slane %v474, 1
      %v480 = vadd.f32 %v474, %v478
      %v481 = vsub.f32 0.0, %v480
      %v482 = vmul.f32 %v481, 1.442695
      %v483 = vpow.pop %v482
      %v484 = vadd.f32 %v483, 1.0
      %v485 = vrcp.pop %v484
      %v486 = vmul.f32 1.0, %v485
      %v487 = vlaneseq
      %v488 = vshrl.u32 %v487, 7
      %v489 = vsub.s32 0, %v488
      %v490 = vrot.slane %v486, %v489
      %492 = vbcast.lane.b32.xlu0 %v490, 256
      %v493 = vpop.permute.xlu0 %492
      %s495 = sor.u32 256, 8
      %496 = vbcast.lane.b32.xlu0 %v490, %s495
      %v497 = vpop.permute.xlu0 %496
      %s499 = sor.u32 256, 16
      %500 = vbcast.lane.b32.xlu0 %v490, %s499
      %v501 = vpop.permute.xlu0 %500
      %s503 = sor.u32 256, 24
      %504 = vbcast.lane.b32.xlu0 %v490, %s503
      %v505 = vpop.permute.xlu0 %504
      %v506 = vmul.f32 %v225, %v493
      %v507 = vmul.f32 %v226, %v493
      %v508 = vmul.f32 %v227, %v497
      %v509 = vmul.f32 %v228, %v497
      %v510 = vmul.f32 %v229, %v501
      %v511 = vmul.f32 %v230, %v501
      %v512 = vmul.f32 %v231, %v505
      %v513 = vmul.f32 %v232, %v505
      %v514 = vld [vmem:[%s4] sm:$0x1]
      %v516 = vsel %vm323, %v514, 0
      %518 = vmatprep.subr.mxu0 %v507
      %519 = vmatpush1.msra.mxu0 %v506
      %520 = vmatprep.subr.mxu0 %v509
      %521 = vmatpush1.msra.mxu0 %v508
      %522 = vmatprep.subr.mxu0 %v511
      %523 = vmatpush1.msra.mxu0 %v510
      %524 = vmatprep.subr.mxu0 %v513
      %525 = vmatpush1.msra.mxu0 %v512
      %526 = vmatprep.subr.mxu0 0.0
      %527 = vmatpush1.msra.mxu0 0.0
      %528 = vmatprep.subr.mxu0 0.0
      %529 = vmatpush1.msra.mxu0 0.0
      %530 = vmatprep.subr.mxu0 0.0
      %531 = vmatpush1.msra.mxu0 0.0
      %532 = vmatprep.subr.mxu0 0.0
      %533 = vmatpush1.msra.mxu0 0.0
      %534 = vmatprep.subr.mxu0 0.0
      %535 = vmatpush1.msra.mxu0 0.0
      %536 = vmatprep.subr.mxu0 0.0
      %537 = vmatpush1.msra.mxu0 0.0
      %538 = vmatprep.subr.mxu0 0.0
      %539 = vmatpush1.msra.mxu0 0.0
      %540 = vmatprep.subr.mxu0 0.0
      %541 = vmatpush1.msra.mxu0 0.0
      %542 = vmatprep.subr.mxu0 0.0
      %543 = vmatpush1.msra.mxu0 0.0
      %544 = vmatprep.subr.mxu0 0.0
      %545 = vmatpush1.msra.mxu0 0.0
      %546 = vmatprep.subr.mxu0 0.0
      %547 = vmatpush1.msra.mxu0 0.0
      %548 = vmatprep.subr.mxu0 0.0
      %549 = vmatpush1.msra.mxu0 0.0
      %550 = vmatprep.subr.mxu0 0.0
      %551 = vmatpush1.msra.mxu0 0.0
      %552 = vmatprep.subr.mxu0 0.0
      %553 = vmatpush1.msra.mxu0 0.0
      %554 = vmatprep.subr.mxu0 0.0
      %555 = vmatpush1.msra.mxu0 0.0
      %556 = vmatprep.subr.mxu0 0.0
      %557 = vmatpush1.msra.mxu0 0.0
      %558 = vmatprep.subr.mxu0 0.0
      %559 = vmatpush1.msra.mxu0 0.0
      %560 = vmatprep.subr.mxu0 0.0
      %561 = vmatpush1.msra.mxu0 0.0
      %562 = vmatprep.subr.mxu0 0.0
      %563 = vmatpush1.msra.mxu0 0.0
      %564 = vmatprep.subr.mxu0 0.0
      %565 = vmatpush1.msra.mxu0 0.0
      %566 = vmatprep.subr.mxu0 0.0
      %567 = vmatpush1.msra.mxu0 0.0
      %568 = vmatprep.subr.mxu0 0.0
      %569 = vmatpush1.msra.mxu0 0.0
      %570 = vmatprep.subr.mxu0 0.0
      %571 = vmatpush1.msra.mxu0 0.0
      %572 = vmatprep.subr.mxu0 0.0
      %573 = vmatpush1.msra.mxu0 0.0
      %574 = vmatprep.subr.mxu0 0.0
      %575 = vmatpush1.msra.mxu0 0.0
      %576 = vmatprep.subr.mxu0 0.0
      %577 = vmatpush1.msra.mxu0 0.0
      %578 = vmatprep.subr.mxu0 0.0
      %579 = vmatpush1.msra.mxu0 0.0
      %580 = vmatprep.subr.mxu0 0.0
      %581 = vmatpush1.msra.mxu0 0.0
      %582 = vmatprep.mubr.f32.mxu0 0.0
      %583 = vmatmul.mubr.f32.gmra.mrb[0].mxu0 %v516
      %v584 = vpop.f32.mrb[0].mxu0
      %v585 = vadd.f32 0.0, %v584
      %v586 = vpop.f32.mrb[0].mxu0
      %v587 = vadd.f32 0.0, %v586
      %588 = vdwg.mxu0
      %v589 = vmul.f32 %v585, 0.03125
      %v590 = vmul.f32 %v587, 0.03125
      %v591 = vmax.f32 %v506, %v510
      %v592 = vmax.f32 %v508, %v512
      %v593 = vmax.f32 %v591, %v592
      %v594 = vrot.slane %v593, 4
      %v595 = vmax.f32 %v593, %v594
      %v596 = vrot.slane %v595, 2
      %v597 = vmax.f32 %v595, %v596
      %v598 = vrot.slane %v597, 1
      %v599 = vmax.f32 %v597, %v598
      %v600 = vmax.f32 %v507, %v511
      %v601 = vmax.f32 %v509, %v513
      %v602 = vmax.f32 %v600, %v601
      %v603 = vrot.slane %v602, 4
      %v604 = vmax.f32 %v602, %v603
      %v605 = vrot.slane %v604, 2
      %v606 = vmax.f32 %v604, %v605
      %v607 = vrot.slane %v606, 1
      %v608 = vmax.f32 %v606, %v607
      %v609 = vsel %vm317, %v589, %v599
      %v610 = vsel %vm317, %v590, %v608
      %611 = vrot.lane.b32.xlu0 %v609, 51
      %v612 = vpop.permute.xlu0 %611
      %613 = vrot.lane.b32.xlu0 %v610, 51
      %v614 = vpop.permute.xlu0 %613
      %vm615 = vcmp.lt.s32.totalorder %v266, 51
      %v616 = vsel %vm615, %v612, %v614
      %v617 = vsel %vm615, %v614, %v612
      %v618 = vld [vmem:[%s3] ss:$8 sm:$0x3]
      %v621 = vcombine.low %v617, %v616
      %v623 = vunpack.c.l.s4 1966171168
      %v624 = vunpack.c.0.s8 %v623
      %v625 = vlaneseq
      %v626 = vshrl.u32 %v625, 7
      %v627 = vsub.s32 %v624, %v626
      %v628 = vrot.slane %v621, %v627
      %v630 = vunpack.c.l.s4 1966171168
      %v631 = vunpack.c.0.s8 %v630
      %v632 = vlaneseq
      %v633 = vshrl.u32 %v632, 7
      %v634 = vsub.s32 %v631, %v633
      %v635 = vrot.slane %v628, %v634
      %v637 = vmul.f32 %v618, %v635
      %v638 = vadd.f32 %v637, 0.0
      %s639 = scalar_lea.vmem %s3, 97
      %v640 = vld [vmem:[%s639] ss:$8 sm:$0x3]
      %v641 = vcombine.high %v628, %v628
      %v643 = vunpack.c.l.s4 1966171168
      %v644 = vunpack.c.0.s8 %v643
      %v645 = vlaneseq
      %v646 = vshrl.u32 %v645, 7
      %v647 = vsub.s32 %v644, %v646
      %v648 = vrot.slane %v641, %v647
      %v650 = vmul.f32 %v640, %v648
      %v651 = vadd.f32 %v650, 0.0
      %652 = vrot.lane.b32.xlu0 %v609, 50
      %v653 = vpop.permute.xlu0 %652
      %654 = vrot.lane.b32.xlu0 %v610, 50
      %v655 = vpop.permute.xlu0 %654
      %vm656 = vcmp.lt.s32.totalorder %v266, 50
      %v657 = vsel %vm656, %v653, %v655
      %v658 = vsel %vm656, %v655, %v653
      %s659 = scalar_lea.vmem %s3, 1
      %v660 = vld [vmem:[%s659] ss:$8 sm:$0x3]
      %v663 = vcombine.low %v658, %v657
      %v665 = vunpack.c.l.s4 1966171168
      %v666 = vunpack.c.0.s8 %v665
      %v667 = vlaneseq
      %v668 = vshrl.u32 %v667, 7
      %v669 = vsub.s32 %v666, %v668
      %v670 = vrot.slane %v663, %v669
      %v672 = vunpack.c.l.s4 1966171168
      %v673 = vunpack.c.0.s8 %v672
      %v674 = vlaneseq
      %v675 = vshrl.u32 %v674, 7
      %v676 = vsub.s32 %v673, %v675
      %v677 = vrot.slane %v670, %v676
      %v679 = vmul.f32 %v660, %v677
      %v680 = vadd.f32 %v638, %v679
      %s681 = scalar_lea.vmem %s3, 98
      %v682 = vld [vmem:[%s681] ss:$8 sm:$0x3]
      %v683 = vcombine.high %v670, %v670
      %v685 = vunpack.c.l.s4 1966171168
      %v686 = vunpack.c.0.s8 %v685
      %v687 = vlaneseq
      %v688 = vshrl.u32 %v687, 7
      %v689 = vsub.s32 %v686, %v688
      %v690 = vrot.slane %v683, %v689
      %v692 = vmul.f32 %v682, %v690
      %v693 = vadd.f32 %v651, %v692
      %694 = vrot.lane.b32.xlu0 %v609, 49
      %v695 = vpop.permute.xlu0 %694
      %696 = vrot.lane.b32.xlu0 %v610, 49
      %v697 = vpop.permute.xlu0 %696
      %vm698 = vcmp.lt.s32.totalorder %v266, 49
      %v699 = vsel %vm698, %v695, %v697
      %v700 = vsel %vm698, %v697, %v695
      %s701 = scalar_lea.vmem %s3, 2
      %v702 = vld [vmem:[%s701] ss:$8 sm:$0x3]
      %v705 = vcombine.low %v700, %v699
      %v707 = vunpack.c.l.s4 1966171168
      %v708 = vunpack.c.0.s8 %v707
      %v709 = vlaneseq
      %v710 = vshrl.u32 %v709, 7
      %v711 = vsub.s32 %v708, %v710
      %v712 = vrot.slane %v705, %v711
      %v714 = vunpack.c.l.s4 1966171168
      %v715 = vunpack.c.0.s8 %v714
      %v716 = vlaneseq
      %v717 = vshrl.u32 %v716, 7
      %v718 = vsub.s32 %v715, %v717
      %v719 = vrot.slane %v712, %v718
      %v721 = vmul.f32 %v702, %v719
      %v722 = vadd.f32 %v680, %v721
      %s723 = scalar_lea.vmem %s3, 99
      %v724 = vld [vmem:[%s723] ss:$8 sm:$0x3]
      %v725 = vcombine.high %v712, %v712
      %v727 = vunpack.c.l.s4 1966171168
      %v728 = vunpack.c.0.s8 %v727
      %v729 = vlaneseq
      %v730 = vshrl.u32 %v729, 7
      %v731 = vsub.s32 %v728, %v730
      %v732 = vrot.slane %v725, %v731
      %v734 = vmul.f32 %v724, %v732
      %v735 = vadd.f32 %v693, %v734
      %736 = vrot.lane.b32.xlu0 %v609, 48
      %v737 = vpop.permute.xlu0 %736
      %738 = vrot.lane.b32.xlu0 %v610, 48
      %v739 = vpop.permute.xlu0 %738
      %vm740 = vcmp.lt.s32.totalorder %v266, 48
      %v741 = vsel %vm740, %v737, %v739
      %v742 = vsel %vm740, %v739, %v737
      %s743 = scalar_lea.vmem %s3, 3
      %v744 = vld [vmem:[%s743] ss:$8 sm:$0x3]
      %v747 = vcombine.low %v742, %v741
      %v749 = vunpack.c.l.s4 1966171168
      %v750 = vunpack.c.0.s8 %v749
      %v751 = vlaneseq
      %v752 = vshrl.u32 %v751, 7
      %v753 = vsub.s32 %v750, %v752
      %v754 = vrot.slane %v747, %v753
      %v756 = vunpack.c.l.s4 1966171168
      %v757 = vunpack.c.0.s8 %v756
      %v758 = vlaneseq
      %v759 = vshrl.u32 %v758, 7
      %v760 = vsub.s32 %v757, %v759
      %v761 = vrot.slane %v754, %v760
      %v763 = vmul.f32 %v744, %v761
      %v764 = vadd.f32 %v722, %v763
      %s765 = scalar_lea.vmem %s3, 100
      %v766 = vld [vmem:[%s765] ss:$8 sm:$0x3]
      %v767 = vcombine.high %v754, %v754
      %v769 = vunpack.c.l.s4 1966171168
      %v770 = vunpack.c.0.s8 %v769
      %v771 = vlaneseq
      %v772 = vshrl.u32 %v771, 7
      %v773 = vsub.s32 %v770, %v772
      %v774 = vrot.slane %v767, %v773
      %v776 = vmul.f32 %v766, %v774
      %v777 = vadd.f32 %v735, %v776
      %778 = vrot.lane.b32.xlu0 %v609, 47
      %v779 = vpop.permute.xlu0 %778
      %780 = vrot.lane.b32.xlu0 %v610, 47
      %v781 = vpop.permute.xlu0 %780
      %vm782 = vcmp.lt.s32.totalorder %v266, 47
      %v783 = vsel %vm782, %v779, %v781
      %v784 = vsel %vm782, %v781, %v779
      %s785 = scalar_lea.vmem %s3, 4
      %v786 = vld [vmem:[%s785] ss:$8 sm:$0x3]
      %v789 = vcombine.low %v784, %v783
      %v791 = vunpack.c.l.s4 1966171168
      %v792 = vunpack.c.0.s8 %v791
      %v793 = vlaneseq
      %v794 = vshrl.u32 %v793, 7
      %v795 = vsub.s32 %v792, %v794
      %v796 = vrot.slane %v789, %v795
      %v798 = vunpack.c.l.s4 1966171168
      %v799 = vunpack.c.0.s8 %v798
      %v800 = vlaneseq
      %v801 = vshrl.u32 %v800, 7
      %v802 = vsub.s32 %v799, %v801
      %v803 = vrot.slane %v796, %v802
      %v805 = vmul.f32 %v786, %v803
      %v806 = vadd.f32 %v764, %v805
      %s807 = scalar_lea.vmem %s3, 101
      %v808 = vld [vmem:[%s807] ss:$8 sm:$0x3]
      %v809 = vcombine.high %v796, %v796
      %v811 = vunpack.c.l.s4 1966171168
      %v812 = vunpack.c.0.s8 %v811
      %v813 = vlaneseq
      %v814 = vshrl.u32 %v813, 7
      %v815 = vsub.s32 %v812, %v814
      %v816 = vrot.slane %v809, %v815
      %v818 = vmul.f32 %v808, %v816
      %v819 = vadd.f32 %v777, %v818
      %820 = vrot.lane.b32.xlu0 %v609, 46
      %v821 = vpop.permute.xlu0 %820
      %822 = vrot.lane.b32.xlu0 %v610, 46
      %v823 = vpop.permute.xlu0 %822
      %vm824 = vcmp.lt.s32.totalorder %v266, 46
      %v825 = vsel %vm824, %v821, %v823
      %v826 = vsel %vm824, %v823, %v821
      %s827 = scalar_lea.vmem %s3, 5
      %v828 = vld [vmem:[%s827] ss:$8 sm:$0x3]
      %v831 = vcombine.low %v826, %v825
      %v833 = vunpack.c.l.s4 1966171168
      %v834 = vunpack.c.0.s8 %v833
      %v835 = vlaneseq
      %v836 = vshrl.u32 %v835, 7
      %v837 = vsub.s32 %v834, %v836
      %v838 = vrot.slane %v831, %v837
      %v840 = vunpack.c.l.s4 1966171168
      %v841 = vunpack.c.0.s8 %v840
      %v842 = vlaneseq
      %v843 = vshrl.u32 %v842, 7
      %v844 = vsub.s32 %v841, %v843
      %v845 = vrot.slane %v838, %v844
      %v847 = vmul.f32 %v828, %v845
      %v848 = vadd.f32 %v806, %v847
      %s849 = scalar_lea.vmem %s3, 102
      %v850 = vld [vmem:[%s849] ss:$8 sm:$0x3]
      %v851 = vcombine.high %v838, %v838
      %v853 = vunpack.c.l.s4 1966171168
      %v854 = vunpack.c.0.s8 %v853
      %v855 = vlaneseq
      %v856 = vshrl.u32 %v855, 7
      %v857 = vsub.s32 %v854, %v856
      %v858 = vrot.slane %v851, %v857
      %v860 = vmul.f32 %v850, %v858
      %v861 = vadd.f32 %v819, %v860
      %862 = vrot.lane.b32.xlu0 %v609, 45
      %v863 = vpop.permute.xlu0 %862
      %864 = vrot.lane.b32.xlu0 %v610, 45
      %v865 = vpop.permute.xlu0 %864
      %vm866 = vcmp.lt.s32.totalorder %v266, 45
      %v867 = vsel %vm866, %v863, %v865
      %v868 = vsel %vm866, %v865, %v863
      %s869 = scalar_lea.vmem %s3, 6
      %v870 = vld [vmem:[%s869] ss:$8 sm:$0x3]
      %v873 = vcombine.low %v868, %v867
      %v875 = vunpack.c.l.s4 1966171168
      %v876 = vunpack.c.0.s8 %v875
      %v877 = vlaneseq
      %v878 = vshrl.u32 %v877, 7
      %v879 = vsub.s32 %v876, %v878
      %v880 = vrot.slane %v873, %v879
      %v882 = vunpack.c.l.s4 1966171168
      %v883 = vunpack.c.0.s8 %v882
      %v884 = vlaneseq
      %v885 = vshrl.u32 %v884, 7
      %v886 = vsub.s32 %v883, %v885
      %v887 = vrot.slane %v880, %v886
      %v889 = vmul.f32 %v870, %v887
      %v890 = vadd.f32 %v848, %v889
      %s891 = scalar_lea.vmem %s3, 103
      %v892 = vld [vmem:[%s891] ss:$8 sm:$0x3]
      %v893 = vcombine.high %v880, %v880
      %v895 = vunpack.c.l.s4 1966171168
      %v896 = vunpack.c.0.s8 %v895
      %v897 = vlaneseq
      %v898 = vshrl.u32 %v897, 7
      %v899 = vsub.s32 %v896, %v898
      %v900 = vrot.slane %v893, %v899
      %v902 = vmul.f32 %v892, %v900
      %v903 = vadd.f32 %v861, %v902
      %904 = vrot.lane.b32.xlu0 %v609, 35
      %v905 = vpop.permute.xlu0 %904
      %906 = vrot.lane.b32.xlu0 %v610, 35
      %v907 = vpop.permute.xlu0 %906
      %vm908 = vcmp.lt.s32.totalorder %v266, 35
      %v909 = vsel %vm908, %v905, %v907
      %v910 = vsel %vm908, %v907, %v905
      %s911 = scalar_lea.vmem %s3, 7
      %v912 = vld [vmem:[%s911] ss:$8 sm:$0x3]
      %v915 = vcombine.low %v910, %v909
      %v917 = vunpack.c.l.s4 1966171168
      %v918 = vunpack.c.0.s8 %v917
      %v919 = vlaneseq
      %v920 = vshrl.u32 %v919, 7
      %v921 = vsub.s32 %v918, %v920
      %v922 = vrot.slane %v915, %v921
      %v924 = vunpack.c.l.s4 1966171168
      %v925 = vunpack.c.0.s8 %v924
      %v926 = vlaneseq
      %v927 = vshrl.u32 %v926, 7
      %v928 = vsub.s32 %v925, %v927
      %v929 = vrot.slane %v922, %v928
      %v931 = vmul.f32 %v912, %v929
      %v932 = vadd.f32 %v890, %v931
      %s933 = scalar_lea.vmem %s3, 112
      %v934 = vld [vmem:[%s933] ss:$8 sm:$0x3]
      %v935 = vcombine.high %v922, %v922
      %v937 = vunpack.c.l.s4 1966171168
      %v938 = vunpack.c.0.s8 %v937
      %v939 = vlaneseq
      %v940 = vshrl.u32 %v939, 7
      %v941 = vsub.s32 %v938, %v940
      %v942 = vrot.slane %v935, %v941
      %v944 = vmul.f32 %v934, %v942
      %v945 = vadd.f32 %v903, %v944
      %946 = vrot.lane.b32.xlu0 %v609, 34
      %v947 = vpop.permute.xlu0 %946
      %948 = vrot.lane.b32.xlu0 %v610, 34
      %v949 = vpop.permute.xlu0 %948
      %vm950 = vcmp.lt.s32.totalorder %v266, 34
      %v951 = vsel %vm950, %v947, %v949
      %v952 = vsel %vm950, %v949, %v947
      %s953 = scalar_lea.vmem %s3, 16
      %v954 = vld [vmem:[%s953] ss:$8 sm:$0x3]
      %v957 = vcombine.low %v952, %v951
      %v959 = vunpack.c.l.s4 1966171168
      %v960 = vunpack.c.0.s8 %v959
      %v961 = vlaneseq
      %v962 = vshrl.u32 %v961, 7
      %v963 = vsub.s32 %v960, %v962
      %v964 = vrot.slane %v957, %v963
      %v966 = vunpack.c.l.s4 1966171168
      %v967 = vunpack.c.0.s8 %v966
      %v968 = vlaneseq
      %v969 = vshrl.u32 %v968, 7
      %v970 = vsub.s32 %v967, %v969
      %v971 = vrot.slane %v964, %v970
      %v973 = vmul.f32 %v954, %v971
      %v974 = vadd.f32 %v932, %v973
      %s975 = scalar_lea.vmem %s3, 113
      %v976 = vld [vmem:[%s975] ss:$8 sm:$0x3]
      %v977 = vcombine.high %v964, %v964
      %v979 = vunpack.c.l.s4 1966171168
      %v980 = vunpack.c.0.s8 %v979
      %v981 = vlaneseq
      %v982 = vshrl.u32 %v981, 7
      %v983 = vsub.s32 %v980, %v982
      %v984 = vrot.slane %v977, %v983
      %v986 = vmul.f32 %v976, %v984
      %v987 = vadd.f32 %v945, %v986
      %988 = vrot.lane.b32.xlu0 %v609, 33
      %v989 = vpop.permute.xlu0 %988
      %990 = vrot.lane.b32.xlu0 %v610, 33
      %v991 = vpop.permute.xlu0 %990
      %vm992 = vcmp.lt.s32.totalorder %v266, 33
      %v993 = vsel %vm992, %v989, %v991
      %v994 = vsel %vm992, %v991, %v989
      %s995 = scalar_lea.vmem %s3, 17
      %v996 = vld [vmem:[%s995] ss:$8 sm:$0x3]
      %v999 = vcombine.low %v994, %v993
      %v1001 = vunpack.c.l.s4 1966171168
      %v1002 = vunpack.c.0.s8 %v1001
      %v1003 = vlaneseq
      %v1004 = vshrl.u32 %v1003, 7
      %v1005 = vsub.s32 %v1002, %v1004
      %v1006 = vrot.slane %v999, %v1005
      %v1008 = vunpack.c.l.s4 1966171168
      %v1009 = vunpack.c.0.s8 %v1008
      %v1010 = vlaneseq
      %v1011 = vshrl.u32 %v1010, 7
      %v1012 = vsub.s32 %v1009, %v1011
      %v1013 = vrot.slane %v1006, %v1012
      %v1015 = vmul.f32 %v996, %v1013
      %v1016 = vadd.f32 %v974, %v1015
      %s1017 = scalar_lea.vmem %s3, 114
      %v1018 = vld [vmem:[%s1017] ss:$8 sm:$0x3]
      %v1019 = vcombine.high %v1006, %v1006
      %v1021 = vunpack.c.l.s4 1966171168
      %v1022 = vunpack.c.0.s8 %v1021
      %v1023 = vlaneseq
      %v1024 = vshrl.u32 %v1023, 7
      %v1025 = vsub.s32 %v1022, %v1024
      %v1026 = vrot.slane %v1019, %v1025
      %v1028 = vmul.f32 %v1018, %v1026
      %v1029 = vadd.f32 %v987, %v1028
      %1030 = vrot.lane.b32.xlu0 %v609, 32
      %v1031 = vpop.permute.xlu0 %1030
      %1032 = vrot.lane.b32.xlu0 %v610, 32
      %v1033 = vpop.permute.xlu0 %1032
      %vm1034 = vcmp.lt.s32.totalorder %v266, 32
      %v1035 = vsel %vm1034, %v1031, %v1033
      %v1036 = vsel %vm1034, %v1033, %v1031
      %s1037 = scalar_lea.vmem %s3, 18
      %v1038 = vld [vmem:[%s1037] ss:$8 sm:$0x3]
      %v1041 = vcombine.low %v1036, %v1035
      %v1043 = vunpack.c.l.s4 1966171168
      %v1044 = vunpack.c.0.s8 %v1043
      %v1045 = vlaneseq
      %v1046 = vshrl.u32 %v1045, 7
      %v1047 = vsub.s32 %v1044, %v1046
      %v1048 = vrot.slane %v1041, %v1047
      %v1050 = vunpack.c.l.s4 1966171168
      %v1051 = vunpack.c.0.s8 %v1050
      %v1052 = vlaneseq
      %v1053 = vshrl.u32 %v1052, 7
      %v1054 = vsub.s32 %v1051, %v1053
      %v1055 = vrot.slane %v1048, %v1054
      %v1057 = vmul.f32 %v1038, %v1055
      %v1058 = vadd.f32 %v1016, %v1057
      %s1059 = scalar_lea.vmem %s3, 115
      %v1060 = vld [vmem:[%s1059] ss:$8 sm:$0x3]
      %v1061 = vcombine.high %v1048, %v1048
      %v1063 = vunpack.c.l.s4 1966171168
      %v1064 = vunpack.c.0.s8 %v1063
      %v1065 = vlaneseq
      %v1066 = vshrl.u32 %v1065, 7
      %v1067 = vsub.s32 %v1064, %v1066
      %v1068 = vrot.slane %v1061, %v1067
      %v1070 = vmul.f32 %v1060, %v1068
      %v1071 = vadd.f32 %v1029, %v1070
      %1072 = vrot.lane.b32.xlu0 %v609, 31
      %v1073 = vpop.permute.xlu0 %1072
      %1074 = vrot.lane.b32.xlu0 %v610, 31
      %v1075 = vpop.permute.xlu0 %1074
      %vm1076 = vcmp.lt.s32.totalorder %v266, 31
      %v1077 = vsel %vm1076, %v1073, %v1075
      %v1078 = vsel %vm1076, %v1075, %v1073
      %s1079 = scalar_lea.vmem %s3, 19
      %v1080 = vld [vmem:[%s1079] ss:$8 sm:$0x3]
      %v1083 = vcombine.low %v1078, %v1077
      %v1085 = vunpack.c.l.s4 1966171168
      %v1086 = vunpack.c.0.s8 %v1085
      %v1087 = vlaneseq
      %v1088 = vshrl.u32 %v1087, 7
      %v1089 = vsub.s32 %v1086, %v1088
      %v1090 = vrot.slane %v1083, %v1089
      %v1092 = vunpack.c.l.s4 1966171168
      %v1093 = vunpack.c.0.s8 %v1092
      %v1094 = vlaneseq
      %v1095 = vshrl.u32 %v1094, 7
      %v1096 = vsub.s32 %v1093, %v1095
      %v1097 = vrot.slane %v1090, %v1096
      %v1099 = vmul.f32 %v1080, %v1097
      %v1100 = vadd.f32 %v1058, %v1099
      %s1101 = scalar_lea.vmem %s3, 116
      %v1102 = vld [vmem:[%s1101] ss:$8 sm:$0x3]
      %v1103 = vcombine.high %v1090, %v1090
      %v1105 = vunpack.c.l.s4 1966171168
      %v1106 = vunpack.c.0.s8 %v1105
      %v1107 = vlaneseq
      %v1108 = vshrl.u32 %v1107, 7
      %v1109 = vsub.s32 %v1106, %v1108
      %v1110 = vrot.slane %v1103, %v1109
      %v1112 = vmul.f32 %v1102, %v1110
      %v1113 = vadd.f32 %v1071, %v1112
      %1114 = vrot.lane.b32.xlu0 %v609, 30
      %v1115 = vpop.permute.xlu0 %1114
      %1116 = vrot.lane.b32.xlu0 %v610, 30
      %v1117 = vpop.permute.xlu0 %1116
      %vm1118 = vcmp.lt.s32.totalorder %v266, 30
      %v1119 = vsel %vm1118, %v1115, %v1117
      %v1120 = vsel %vm1118, %v1117, %v1115
      %s1121 = scalar_lea.vmem %s3, 20
      %v1122 = vld [vmem:[%s1121] ss:$8 sm:$0x3]
      %v1125 = vcombine.low %v1120, %v1119
      %v1127 = vunpack.c.l.s4 1966171168
      %v1128 = vunpack.c.0.s8 %v1127
      %v1129 = vlaneseq
      %v1130 = vshrl.u32 %v1129, 7
      %v1131 = vsub.s32 %v1128, %v1130
      %v1132 = vrot.slane %v1125, %v1131
      %v1134 = vunpack.c.l.s4 1966171168
      %v1135 = vunpack.c.0.s8 %v1134
      %v1136 = vlaneseq
      %v1137 = vshrl.u32 %v1136, 7
      %v1138 = vsub.s32 %v1135, %v1137
      %v1139 = vrot.slane %v1132, %v1138
      %v1141 = vmul.f32 %v1122, %v1139
      %v1142 = vadd.f32 %v1100, %v1141
      %s1143 = scalar_lea.vmem %s3, 117
      %v1144 = vld [vmem:[%s1143] ss:$8 sm:$0x3]
      %v1145 = vcombine.high %v1132, %v1132
      %v1147 = vunpack.c.l.s4 1966171168
      %v1148 = vunpack.c.0.s8 %v1147
      %v1149 = vlaneseq
      %v1150 = vshrl.u32 %v1149, 7
      %v1151 = vsub.s32 %v1148, %v1150
      %v1152 = vrot.slane %v1145, %v1151
      %v1154 = vmul.f32 %v1144, %v1152
      %v1155 = vadd.f32 %v1113, %v1154
      %1156 = vrot.lane.b32.xlu0 %v609, 29
      %v1157 = vpop.permute.xlu0 %1156
      %1158 = vrot.lane.b32.xlu0 %v610, 29
      %v1159 = vpop.permute.xlu0 %1158
      %vm1160 = vcmp.lt.s32.totalorder %v266, 29
      %v1161 = vsel %vm1160, %v1157, %v1159
      %v1162 = vsel %vm1160, %v1159, %v1157
      %s1163 = scalar_lea.vmem %s3, 21
      %v1164 = vld [vmem:[%s1163] ss:$8 sm:$0x3]
      %v1167 = vcombine.low %v1162, %v1161
      %v1169 = vunpack.c.l.s4 1966171168
      %v1170 = vunpack.c.0.s8 %v1169
      %v1171 = vlaneseq
      %v1172 = vshrl.u32 %v1171, 7
      %v1173 = vsub.s32 %v1170, %v1172
      %v1174 = vrot.slane %v1167, %v1173
      %v1176 = vunpack.c.l.s4 1966171168
      %v1177 = vunpack.c.0.s8 %v1176
      %v1178 = vlaneseq
      %v1179 = vshrl.u32 %v1178, 7
      %v1180 = vsub.s32 %v1177, %v1179
      %v1181 = vrot.slane %v1174, %v1180
      %v1183 = vmul.f32 %v1164, %v1181
      %v1184 = vadd.f32 %v1142, %v1183
      %s1185 = scalar_lea.vmem %s3, 118
      %v1186 = vld [vmem:[%s1185] ss:$8 sm:$0x3]
      %v1187 = vcombine.high %v1174, %v1174
      %v1189 = vunpack.c.l.s4 1966171168
      %v1190 = vunpack.c.0.s8 %v1189
      %v1191 = vlaneseq
      %v1192 = vshrl.u32 %v1191, 7
      %v1193 = vsub.s32 %v1190, %v1192
      %v1194 = vrot.slane %v1187, %v1193
      %v1196 = vmul.f32 %v1186, %v1194
      %v1197 = vadd.f32 %v1155, %v1196
      %1198 = vrot.lane.b32.xlu0 %v609, 19
      %v1199 = vpop.permute.xlu0 %1198
      %1200 = vrot.lane.b32.xlu0 %v610, 19
      %v1201 = vpop.permute.xlu0 %1200
      %vm1202 = vcmp.lt.s32.totalorder %v266, 19
      %v1203 = vsel %vm1202, %v1199, %v1201
      %v1204 = vsel %vm1202, %v1201, %v1199
      %s1205 = scalar_lea.vmem %s3, 22
      %v1206 = vld [vmem:[%s1205] ss:$8 sm:$0x3]
      %v1209 = vcombine.low %v1204, %v1203
      %v1211 = vunpack.c.l.s4 1966171168
      %v1212 = vunpack.c.0.s8 %v1211
      %v1213 = vlaneseq
      %v1214 = vshrl.u32 %v1213, 7
      %v1215 = vsub.s32 %v1212, %v1214
      %v1216 = vrot.slane %v1209, %v1215
      %v1218 = vunpack.c.l.s4 1966171168
      %v1219 = vunpack.c.0.s8 %v1218
      %v1220 = vlaneseq
      %v1221 = vshrl.u32 %v1220, 7
      %v1222 = vsub.s32 %v1219, %v1221
      %v1223 = vrot.slane %v1216, %v1222
      %v1225 = vmul.f32 %v1206, %v1223
      %v1226 = vadd.f32 %v1184, %v1225
      %s1227 = scalar_lea.vmem %s3, 119
      %v1228 = vld [vmem:[%s1227] ss:$8 sm:$0x3]
      %v1229 = vcombine.high %v1216, %v1216
      %v1231 = vunpack.c.l.s4 1966171168
      %v1232 = vunpack.c.0.s8 %v1231
      %v1233 = vlaneseq
      %v1234 = vshrl.u32 %v1233, 7
      %v1235 = vsub.s32 %v1232, %v1234
      %v1236 = vrot.slane %v1229, %v1235
      %v1238 = vmul.f32 %v1228, %v1236
      %v1239 = vadd.f32 %v1197, %v1238
      %1240 = vrot.lane.b32.xlu0 %v609, 18
      %v1241 = vpop.permute.xlu0 %1240
      %1242 = vrot.lane.b32.xlu0 %v610, 18
      %v1243 = vpop.permute.xlu0 %1242
      %vm1244 = vcmp.lt.s32.totalorder %v266, 18
      %v1245 = vsel %vm1244, %v1241, %v1243
      %v1246 = vsel %vm1244, %v1243, %v1241
      %s1247 = scalar_lea.vmem %s3, 23
      %v1248 = vld [vmem:[%s1247] ss:$8 sm:$0x3]
      %v1251 = vcombine.low %v1246, %v1245
      %v1253 = vunpack.c.l.s4 1966171168
      %v1254 = vunpack.c.0.s8 %v1253
      %v1255 = vlaneseq
      %v1256 = vshrl.u32 %v1255, 7
      %v1257 = vsub.s32 %v1254, %v1256
      %v1258 = vrot.slane %v1251, %v1257
      %v1260 = vunpack.c.l.s4 1966171168
      %v1261 = vunpack.c.0.s8 %v1260
      %v1262 = vlaneseq
      %v1263 = vshrl.u32 %v1262, 7
      %v1264 = vsub.s32 %v1261, %v1263
      %v1265 = vrot.slane %v1258, %v1264
      %v1267 = vmul.f32 %v1248, %v1265
      %v1268 = vadd.f32 %v1226, %v1267
      %s1269 = scalar_lea.vmem %s3, 128
      %v1270 = vld [vmem:[%s1269] ss:$8 sm:$0x3]
      %v1271 = vcombine.high %v1258, %v1258
      %v1273 = vunpack.c.l.s4 1966171168
      %v1274 = vunpack.c.0.s8 %v1273
      %v1275 = vlaneseq
      %v1276 = vshrl.u32 %v1275, 7
      %v1277 = vsub.s32 %v1274, %v1276
      %v1278 = vrot.slane %v1271, %v1277
      %v1280 = vmul.f32 %v1270, %v1278
      %v1281 = vadd.f32 %v1239, %v1280
      %1282 = vrot.lane.b32.xlu0 %v609, 17
      %v1283 = vpop.permute.xlu0 %1282
      %1284 = vrot.lane.b32.xlu0 %v610, 17
      %v1285 = vpop.permute.xlu0 %1284
      %vm1286 = vcmp.lt.s32.totalorder %v266, 17
      %v1287 = vsel %vm1286, %v1283, %v1285
      %v1288 = vsel %vm1286, %v1285, %v1283
      %s1289 = scalar_lea.vmem %s3, 32
      %v1290 = vld [vmem:[%s1289] ss:$8 sm:$0x3]
      %v1293 = vcombine.low %v1288, %v1287
      %v1295 = vunpack.c.l.s4 1966171168
      %v1296 = vunpack.c.0.s8 %v1295
      %v1297 = vlaneseq
      %v1298 = vshrl.u32 %v1297, 7
      %v1299 = vsub.s32 %v1296, %v1298
      %v1300 = vrot.slane %v1293, %v1299
      %v1302 = vunpack.c.l.s4 1966171168
      %v1303 = vunpack.c.0.s8 %v1302
      %v1304 = vlaneseq
      %v1305 = vshrl.u32 %v1304, 7
      %v1306 = vsub.s32 %v1303, %v1305
      %v1307 = vrot.slane %v1300, %v1306
      %v1309 = vmul.f32 %v1290, %v1307
      %v1310 = vadd.f32 %v1268, %v1309
      %s1311 = scalar_lea.vmem %s3, 129
      %v1312 = vld [vmem:[%s1311] ss:$8 sm:$0x3]
      %v1313 = vcombine.high %v1300, %v1300
      %v1315 = vunpack.c.l.s4 1966171168
      %v1316 = vunpack.c.0.s8 %v1315
      %v1317 = vlaneseq
      %v1318 = vshrl.u32 %v1317, 7
      %v1319 = vsub.s32 %v1316, %v1318
      %v1320 = vrot.slane %v1313, %v1319
      %v1322 = vmul.f32 %v1312, %v1320
      %v1323 = vadd.f32 %v1281, %v1322
      %1324 = vrot.lane.b32.xlu0 %v609, 16
      %v1325 = vpop.permute.xlu0 %1324
      %1326 = vrot.lane.b32.xlu0 %v610, 16
      %v1327 = vpop.permute.xlu0 %1326
      %vm1328 = vcmp.lt.s32.totalorder %v266, 16
      %v1329 = vsel %vm1328, %v1325, %v1327
      %v1330 = vsel %vm1328, %v1327, %v1325
      %s1331 = scalar_lea.vmem %s3, 33
      %v1332 = vld [vmem:[%s1331] ss:$8 sm:$0x3]
      %v1335 = vcombine.low %v1330, %v1329
      %v1337 = vunpack.c.l.s4 1966171168
      %v1338 = vunpack.c.0.s8 %v1337
      %v1339 = vlaneseq
      %v1340 = vshrl.u32 %v1339, 7
      %v1341 = vsub.s32 %v1338, %v1340
      %v1342 = vrot.slane %v1335, %v1341
      %v1344 = vunpack.c.l.s4 1966171168
      %v1345 = vunpack.c.0.s8 %v1344
      %v1346 = vlaneseq
      %v1347 = vshrl.u32 %v1346, 7
      %v1348 = vsub.s32 %v1345, %v1347
      %v1349 = vrot.slane %v1342, %v1348
      %v1351 = vmul.f32 %v1332, %v1349
      %v1352 = vadd.f32 %v1310, %v1351
      %s1353 = scalar_lea.vmem %s3, 130
      %v1354 = vld [vmem:[%s1353] ss:$8 sm:$0x3]
      %v1355 = vcombine.high %v1342, %v1342
      %v1357 = vunpack.c.l.s4 1966171168
      %v1358 = vunpack.c.0.s8 %v1357
      %v1359 = vlaneseq
      %v1360 = vshrl.u32 %v1359, 7
      %v1361 = vsub.s32 %v1358, %v1360
      %v1362 = vrot.slane %v1355, %v1361
      %v1364 = vmul.f32 %v1354, %v1362
      %v1365 = vadd.f32 %v1323, %v1364
      %1366 = vrot.lane.b32.xlu0 %v609, 15
      %v1367 = vpop.permute.xlu0 %1366
      %1368 = vrot.lane.b32.xlu0 %v610, 15
      %v1369 = vpop.permute.xlu0 %1368
      %vm1370 = vcmp.lt.s32.totalorder %v266, 15
      %v1371 = vsel %vm1370, %v1367, %v1369
      %v1372 = vsel %vm1370, %v1369, %v1367
      %s1373 = scalar_lea.vmem %s3, 34
      %v1374 = vld [vmem:[%s1373] ss:$8 sm:$0x3]
      %v1377 = vcombine.low %v1372, %v1371
      %v1379 = vunpack.c.l.s4 1966171168
      %v1380 = vunpack.c.0.s8 %v1379
      %v1381 = vlaneseq
      %v1382 = vshrl.u32 %v1381, 7
      %v1383 = vsub.s32 %v1380, %v1382
      %v1384 = vrot.slane %v1377, %v1383
      %v1386 = vunpack.c.l.s4 1966171168
      %v1387 = vunpack.c.0.s8 %v1386
      %v1388 = vlaneseq
      %v1389 = vshrl.u32 %v1388, 7
      %v1390 = vsub.s32 %v1387, %v1389
      %v1391 = vrot.slane %v1384, %v1390
      %v1393 = vmul.f32 %v1374, %v1391
      %v1394 = vadd.f32 %v1352, %v1393
      %s1395 = scalar_lea.vmem %s3, 131
      %v1396 = vld [vmem:[%s1395] ss:$8 sm:$0x3]
      %v1397 = vcombine.high %v1384, %v1384
      %v1399 = vunpack.c.l.s4 1966171168
      %v1400 = vunpack.c.0.s8 %v1399
      %v1401 = vlaneseq
      %v1402 = vshrl.u32 %v1401, 7
      %v1403 = vsub.s32 %v1400, %v1402
      %v1404 = vrot.slane %v1397, %v1403
      %v1406 = vmul.f32 %v1396, %v1404
      %v1407 = vadd.f32 %v1365, %v1406
      %1408 = vrot.lane.b32.xlu0 %v609, 14
      %v1409 = vpop.permute.xlu0 %1408
      %1410 = vrot.lane.b32.xlu0 %v610, 14
      %v1411 = vpop.permute.xlu0 %1410
      %vm1412 = vcmp.lt.s32.totalorder %v266, 14
      %v1413 = vsel %vm1412, %v1409, %v1411
      %v1414 = vsel %vm1412, %v1411, %v1409
      %s1415 = scalar_lea.vmem %s3, 35
      %v1416 = vld [vmem:[%s1415] ss:$8 sm:$0x3]
      %v1419 = vcombine.low %v1414, %v1413
      %v1421 = vunpack.c.l.s4 1966171168
      %v1422 = vunpack.c.0.s8 %v1421
      %v1423 = vlaneseq
      %v1424 = vshrl.u32 %v1423, 7
      %v1425 = vsub.s32 %v1422, %v1424
      %v1426 = vrot.slane %v1419, %v1425
      %v1428 = vunpack.c.l.s4 1966171168
      %v1429 = vunpack.c.0.s8 %v1428
      %v1430 = vlaneseq
      %v1431 = vshrl.u32 %v1430, 7
      %v1432 = vsub.s32 %v1429, %v1431
      %v1433 = vrot.slane %v1426, %v1432
      %v1435 = vmul.f32 %v1416, %v1433
      %v1436 = vadd.f32 %v1394, %v1435
      %s1437 = scalar_lea.vmem %s3, 132
      %v1438 = vld [vmem:[%s1437] ss:$8 sm:$0x3]
      %v1439 = vcombine.high %v1426, %v1426
      %v1441 = vunpack.c.l.s4 1966171168
      %v1442 = vunpack.c.0.s8 %v1441
      %v1443 = vlaneseq
      %v1444 = vshrl.u32 %v1443, 7
      %v1445 = vsub.s32 %v1442, %v1444
      %v1446 = vrot.slane %v1439, %v1445
      %v1448 = vmul.f32 %v1438, %v1446
      %v1449 = vadd.f32 %v1407, %v1448
      %1450 = vrot.lane.b32.xlu0 %v609, 13
      %v1451 = vpop.permute.xlu0 %1450
      %1452 = vrot.lane.b32.xlu0 %v610, 13
      %v1453 = vpop.permute.xlu0 %1452
      %vm1454 = vcmp.lt.s32.totalorder %v266, 13
      %v1455 = vsel %vm1454, %v1451, %v1453
      %v1456 = vsel %vm1454, %v1453, %v1451
      %s1457 = scalar_lea.vmem %s3, 36
      %v1458 = vld [vmem:[%s1457] ss:$8 sm:$0x3]
      %v1461 = vcombine.low %v1456, %v1455
      %v1463 = vunpack.c.l.s4 1966171168
      %v1464 = vunpack.c.0.s8 %v1463
      %v1465 = vlaneseq
      %v1466 = vshrl.u32 %v1465, 7
      %v1467 = vsub.s32 %v1464, %v1466
      %v1468 = vrot.slane %v1461, %v1467
      %v1470 = vunpack.c.l.s4 1966171168
      %v1471 = vunpack.c.0.s8 %v1470
      %v1472 = vlaneseq
      %v1473 = vshrl.u32 %v1472, 7
      %v1474 = vsub.s32 %v1471, %v1473
      %v1475 = vrot.slane %v1468, %v1474
      %v1477 = vmul.f32 %v1458, %v1475
      %v1478 = vadd.f32 %v1436, %v1477
      %s1479 = scalar_lea.vmem %s3, 133
      %v1480 = vld [vmem:[%s1479] ss:$8 sm:$0x3]
      %v1481 = vcombine.high %v1468, %v1468
      %v1483 = vunpack.c.l.s4 1966171168
      %v1484 = vunpack.c.0.s8 %v1483
      %v1485 = vlaneseq
      %v1486 = vshrl.u32 %v1485, 7
      %v1487 = vsub.s32 %v1484, %v1486
      %v1488 = vrot.slane %v1481, %v1487
      %v1490 = vmul.f32 %v1480, %v1488
      %v1491 = vadd.f32 %v1449, %v1490
      %1492 = vrot.lane.b32.xlu0 %v609, 3
      %v1493 = vpop.permute.xlu0 %1492
      %1494 = vrot.lane.b32.xlu0 %v610, 3
      %v1495 = vpop.permute.xlu0 %1494
      %vm1496 = vcmp.lt.s32.totalorder %v266, 3
      %v1497 = vsel %vm1496, %v1493, %v1495
      %v1498 = vsel %vm1496, %v1495, %v1493
      %s1499 = scalar_lea.vmem %s3, 37
      %v1500 = vld [vmem:[%s1499] ss:$8 sm:$0x3]
      %v1503 = vcombine.low %v1498, %v1497
      %v1505 = vunpack.c.l.s4 1966171168
      %v1506 = vunpack.c.0.s8 %v1505
      %v1507 = vlaneseq
      %v1508 = vshrl.u32 %v1507, 7
      %v1509 = vsub.s32 %v1506, %v1508
      %v1510 = vrot.slane %v1503, %v1509
      %v1512 = vunpack.c.l.s4 1966171168
      %v1513 = vunpack.c.0.s8 %v1512
      %v1514 = vlaneseq
      %v1515 = vshrl.u32 %v1514, 7
      %v1516 = vsub.s32 %v1513, %v1515
      %v1517 = vrot.slane %v1510, %v1516
      %v1519 = vmul.f32 %v1500, %v1517
      %v1520 = vadd.f32 %v1478, %v1519
      %s1521 = scalar_lea.vmem %s3, 134
      %v1522 = vld [vmem:[%s1521] ss:$8 sm:$0x3]
      %v1523 = vcombine.high %v1510, %v1510
      %v1525 = vunpack.c.l.s4 1966171168
      %v1526 = vunpack.c.0.s8 %v1525
      %v1527 = vlaneseq
      %v1528 = vshrl.u32 %v1527, 7
      %v1529 = vsub.s32 %v1526, %v1528
      %v1530 = vrot.slane %v1523, %v1529
      %v1532 = vmul.f32 %v1522, %v1530
      %v1533 = vadd.f32 %v1491, %v1532
      %1534 = vrot.lane.b32.xlu0 %v609, 2
      %v1535 = vpop.permute.xlu0 %1534
      %1536 = vrot.lane.b32.xlu0 %v610, 2
      %v1537 = vpop.permute.xlu0 %1536
      %vm1538 = vcmp.lt.s32.totalorder %v266, 2
      %v1539 = vsel %vm1538, %v1535, %v1537
      %v1540 = vsel %vm1538, %v1537, %v1535
      %s1541 = scalar_lea.vmem %s3, 38
      %v1542 = vld [vmem:[%s1541] ss:$8 sm:$0x3]
      %v1545 = vcombine.low %v1540, %v1539
      %v1547 = vunpack.c.l.s4 1966171168
      %v1548 = vunpack.c.0.s8 %v1547
      %v1549 = vlaneseq
      %v1550 = vshrl.u32 %v1549, 7
      %v1551 = vsub.s32 %v1548, %v1550
      %v1552 = vrot.slane %v1545, %v1551
      %v1554 = vunpack.c.l.s4 1966171168
      %v1555 = vunpack.c.0.s8 %v1554
      %v1556 = vlaneseq
      %v1557 = vshrl.u32 %v1556, 7
      %v1558 = vsub.s32 %v1555, %v1557
      %v1559 = vrot.slane %v1552, %v1558
      %v1561 = vmul.f32 %v1542, %v1559
      %v1562 = vadd.f32 %v1520, %v1561
      %s1563 = scalar_lea.vmem %s3, 135
      %v1564 = vld [vmem:[%s1563] ss:$8 sm:$0x3]
      %v1565 = vcombine.high %v1552, %v1552
      %v1567 = vunpack.c.l.s4 1966171168
      %v1568 = vunpack.c.0.s8 %v1567
      %v1569 = vlaneseq
      %v1570 = vshrl.u32 %v1569, 7
      %v1571 = vsub.s32 %v1568, %v1570
      %v1572 = vrot.slane %v1565, %v1571
      %v1574 = vmul.f32 %v1564, %v1572
      %v1575 = vadd.f32 %v1533, %v1574
      %1576 = vrot.lane.b32.xlu0 %v609, 1
      %v1577 = vpop.permute.xlu0 %1576
      %1578 = vrot.lane.b32.xlu0 %v610, 1
      %v1579 = vpop.permute.xlu0 %1578
      %vm1580 = vcmp.lt.s32.totalorder %v266, 1
      %v1581 = vsel %vm1580, %v1577, %v1579
      %v1582 = vsel %vm1580, %v1579, %v1577
      %s1583 = scalar_lea.vmem %s3, 39
      %v1584 = vld [vmem:[%s1583] ss:$8 sm:$0x3]
      %v1587 = vcombine.low %v1582, %v1581
      %v1589 = vunpack.c.l.s4 1966171168
      %v1590 = vunpack.c.0.s8 %v1589
      %v1591 = vlaneseq
      %v1592 = vshrl.u32 %v1591, 7
      %v1593 = vsub.s32 %v1590, %v1592
      %v1594 = vrot.slane %v1587, %v1593
      %v1596 = vunpack.c.l.s4 1966171168
      %v1597 = vunpack.c.0.s8 %v1596
      %v1598 = vlaneseq
      %v1599 = vshrl.u32 %v1598, 7
      %v1600 = vsub.s32 %v1597, %v1599
      %v1601 = vrot.slane %v1594, %v1600
      %v1603 = vmul.f32 %v1584, %v1601
      %v1604 = vadd.f32 %v1562, %v1603
      %s1605 = scalar_lea.vmem %s3, 144
      %v1606 = vld [vmem:[%s1605] ss:$8 sm:$0x3]
      %v1607 = vcombine.high %v1594, %v1594
      %v1609 = vunpack.c.l.s4 1966171168
      %v1610 = vunpack.c.0.s8 %v1609
      %v1611 = vlaneseq
      %v1612 = vshrl.u32 %v1611, 7
      %v1613 = vsub.s32 %v1610, %v1612
      %v1614 = vrot.slane %v1607, %v1613
      %v1616 = vmul.f32 %v1606, %v1614
      %v1617 = vadd.f32 %v1575, %v1616
      %s1618 = scalar_lea.vmem %s3, 48
      %v1619 = vld [vmem:[%s1618] ss:$8 sm:$0x3]
      %v1622 = vcombine.low %v609, %v610
      %v1624 = vunpack.c.l.s4 1966171168
      %v1625 = vunpack.c.0.s8 %v1624
      %v1626 = vlaneseq
      %v1627 = vshrl.u32 %v1626, 7
      %v1628 = vsub.s32 %v1625, %v1627
      %v1629 = vrot.slane %v1622, %v1628
      %v1631 = vunpack.c.l.s4 1966171168
      %v1632 = vunpack.c.0.s8 %v1631
      %v1633 = vlaneseq
      %v1634 = vshrl.u32 %v1633, 7
      %v1635 = vsub.s32 %v1632, %v1634
      %v1636 = vrot.slane %v1629, %v1635
      %v1638 = vmul.f32 %v1619, %v1636
      %v1639 = vadd.f32 %v1604, %v1638
      %s1640 = scalar_lea.vmem %s3, 145
      %v1641 = vld [vmem:[%s1640] ss:$8 sm:$0x3]
      %v1642 = vcombine.high %v1629, %v1629
      %v1644 = vunpack.c.l.s4 1966171168
      %v1645 = vunpack.c.0.s8 %v1644
      %v1646 = vlaneseq
      %v1647 = vshrl.u32 %v1646, 7
      %v1648 = vsub.s32 %v1645, %v1647
      %v1649 = vrot.slane %v1642, %v1648
      %v1651 = vmul.f32 %v1641, %v1649
      %v1652 = vadd.f32 %v1617, %v1651
      %1653 = vrot.lane.b32.xlu0 %v609, 127
      %v1654 = vpop.permute.xlu0 %1653
      %1655 = vrot.lane.b32.xlu0 %v610, 127
      %v1656 = vpop.permute.xlu0 %1655
      %vm1657 = vcmp.lt.s32.totalorder %v266, 127
      %v1658 = vsel %vm1657, %v1654, %v1656
      %v1659 = vsel %vm1657, %v1656, %v1654
      %s1660 = scalar_lea.vmem %s3, 49
      %v1661 = vld [vmem:[%s1660] ss:$8 sm:$0x3]
      %v1664 = vcombine.low %v1658, %v1659
      %v1666 = vunpack.c.l.s4 1966171168
      %v1667 = vunpack.c.0.s8 %v1666
      %v1668 = vlaneseq
      %v1669 = vshrl.u32 %v1668, 7
      %v1670 = vsub.s32 %v1667, %v1669
      %v1671 = vrot.slane %v1664, %v1670
      %v1673 = vunpack.c.l.s4 1966171168
      %v1674 = vunpack.c.0.s8 %v1673
      %v1675 = vlaneseq
      %v1676 = vshrl.u32 %v1675, 7
      %v1677 = vsub.s32 %v1674, %v1676
      %v1678 = vrot.slane %v1671, %v1677
      %v1680 = vmul.f32 %v1661, %v1678
      %v1681 = vadd.f32 %v1639, %v1680
      %s1682 = scalar_lea.vmem %s3, 146
      %v1683 = vld [vmem:[%s1682] ss:$8 sm:$0x3]
      %v1684 = vcombine.high %v1671, %v1671
      %v1686 = vunpack.c.l.s4 1966171168
      %v1687 = vunpack.c.0.s8 %v1686
      %v1688 = vlaneseq
      %v1689 = vshrl.u32 %v1688, 7
      %v1690 = vsub.s32 %v1687, %v1689
      %v1691 = vrot.slane %v1684, %v1690
      %v1693 = vmul.f32 %v1683, %v1691
      %v1694 = vadd.f32 %v1652, %v1693
      %1695 = vrot.lane.b32.xlu0 %v609, 126
      %v1696 = vpop.permute.xlu0 %1695
      %1697 = vrot.lane.b32.xlu0 %v610, 126
      %v1698 = vpop.permute.xlu0 %1697
      %vm1699 = vcmp.lt.s32.totalorder %v266, 126
      %v1700 = vsel %vm1699, %v1696, %v1698
      %v1701 = vsel %vm1699, %v1698, %v1696
      %s1702 = scalar_lea.vmem %s3, 50
      %v1703 = vld [vmem:[%s1702] ss:$8 sm:$0x3]
      %v1706 = vcombine.low %v1700, %v1701
      %v1708 = vunpack.c.l.s4 1966171168
      %v1709 = vunpack.c.0.s8 %v1708
      %v1710 = vlaneseq
      %v1711 = vshrl.u32 %v1710, 7
      %v1712 = vsub.s32 %v1709, %v1711
      %v1713 = vrot.slane %v1706, %v1712
      %v1715 = vunpack.c.l.s4 1966171168
      %v1716 = vunpack.c.0.s8 %v1715
      %v1717 = vlaneseq
      %v1718 = vshrl.u32 %v1717, 7
      %v1719 = vsub.s32 %v1716, %v1718
      %v1720 = vrot.slane %v1713, %v1719
      %v1722 = vmul.f32 %v1703, %v1720
      %v1723 = vadd.f32 %v1681, %v1722
      %s1724 = scalar_lea.vmem %s3, 147
      %v1725 = vld [vmem:[%s1724] ss:$8 sm:$0x3]
      %v1726 = vcombine.high %v1713, %v1713
      %v1728 = vunpack.c.l.s4 1966171168
      %v1729 = vunpack.c.0.s8 %v1728
      %v1730 = vlaneseq
      %v1731 = vshrl.u32 %v1730, 7
      %v1732 = vsub.s32 %v1729, %v1731
      %v1733 = vrot.slane %v1726, %v1732
      %v1735 = vmul.f32 %v1725, %v1733
      %v1736 = vadd.f32 %v1694, %v1735
      %1737 = vrot.lane.b32.xlu0 %v609, 125
      %v1738 = vpop.permute.xlu0 %1737
      %1739 = vrot.lane.b32.xlu0 %v610, 125
      %v1740 = vpop.permute.xlu0 %1739
      %vm1741 = vcmp.lt.s32.totalorder %v266, 125
      %v1742 = vsel %vm1741, %v1738, %v1740
      %v1743 = vsel %vm1741, %v1740, %v1738
      %s1744 = scalar_lea.vmem %s3, 51
      %v1745 = vld [vmem:[%s1744] ss:$8 sm:$0x3]
      %v1748 = vcombine.low %v1742, %v1743
      %v1750 = vunpack.c.l.s4 1966171168
      %v1751 = vunpack.c.0.s8 %v1750
      %v1752 = vlaneseq
      %v1753 = vshrl.u32 %v1752, 7
      %v1754 = vsub.s32 %v1751, %v1753
      %v1755 = vrot.slane %v1748, %v1754
      %v1757 = vunpack.c.l.s4 1966171168
      %v1758 = vunpack.c.0.s8 %v1757
      %v1759 = vlaneseq
      %v1760 = vshrl.u32 %v1759, 7
      %v1761 = vsub.s32 %v1758, %v1760
      %v1762 = vrot.slane %v1755, %v1761
      %v1764 = vmul.f32 %v1745, %v1762
      %v1765 = vadd.f32 %v1723, %v1764
      %s1766 = scalar_lea.vmem %s3, 148
      %v1767 = vld [vmem:[%s1766] ss:$8 sm:$0x3]
      %v1768 = vcombine.high %v1755, %v1755
      %v1770 = vunpack.c.l.s4 1966171168
      %v1771 = vunpack.c.0.s8 %v1770
      %v1772 = vlaneseq
      %v1773 = vshrl.u32 %v1772, 7
      %v1774 = vsub.s32 %v1771, %v1773
      %v1775 = vrot.slane %v1768, %v1774
      %v1777 = vmul.f32 %v1767, %v1775
      %v1778 = vadd.f32 %v1736, %v1777
      %1779 = vrot.lane.b32.xlu0 %v609, 115
      %v1780 = vpop.permute.xlu0 %1779
      %1781 = vrot.lane.b32.xlu0 %v610, 115
      %v1782 = vpop.permute.xlu0 %1781
      %vm1783 = vcmp.lt.s32.totalorder %v266, 115
      %v1784 = vsel %vm1783, %v1780, %v1782
      %v1785 = vsel %vm1783, %v1782, %v1780
      %s1786 = scalar_lea.vmem %s3, 52
      %v1787 = vld [vmem:[%s1786] ss:$8 sm:$0x3]
      %v1790 = vcombine.low %v1784, %v1785
      %v1792 = vunpack.c.l.s4 1966171168
      %v1793 = vunpack.c.0.s8 %v1792
      %v1794 = vlaneseq
      %v1795 = vshrl.u32 %v1794, 7
      %v1796 = vsub.s32 %v1793, %v1795
      %v1797 = vrot.slane %v1790, %v1796
      %v1799 = vunpack.c.l.s4 1966171168
      %v1800 = vunpack.c.0.s8 %v1799
      %v1801 = vlaneseq
      %v1802 = vshrl.u32 %v1801, 7
      %v1803 = vsub.s32 %v1800, %v1802
      %v1804 = vrot.slane %v1797, %v1803
      %v1806 = vmul.f32 %v1787, %v1804
      %v1807 = vadd.f32 %v1765, %v1806
      %s1808 = scalar_lea.vmem %s3, 149
      %v1809 = vld [vmem:[%s1808] ss:$8 sm:$0x3]
      %v1810 = vcombine.high %v1797, %v1797
      %v1812 = vunpack.c.l.s4 1966171168
      %v1813 = vunpack.c.0.s8 %v1812
      %v1814 = vlaneseq
      %v1815 = vshrl.u32 %v1814, 7
      %v1816 = vsub.s32 %v1813, %v1815
      %v1817 = vrot.slane %v1810, %v1816
      %v1819 = vmul.f32 %v1809, %v1817
      %v1820 = vadd.f32 %v1778, %v1819
      %1821 = vrot.lane.b32.xlu0 %v609, 114
      %v1822 = vpop.permute.xlu0 %1821
      %1823 = vrot.lane.b32.xlu0 %v610, 114
      %v1824 = vpop.permute.xlu0 %1823
      %vm1825 = vcmp.lt.s32.totalorder %v266, 114
      %v1826 = vsel %vm1825, %v1822, %v1824
      %v1827 = vsel %vm1825, %v1824, %v1822
      %s1828 = scalar_lea.vmem %s3, 53
      %v1829 = vld [vmem:[%s1828] ss:$8 sm:$0x3]
      %v1832 = vcombine.low %v1826, %v1827
      %v1834 = vunpack.c.l.s4 1966171168
      %v1835 = vunpack.c.0.s8 %v1834
      %v1836 = vlaneseq
      %v1837 = vshrl.u32 %v1836, 7
      %v1838 = vsub.s32 %v1835, %v1837
      %v1839 = vrot.slane %v1832, %v1838
      %v1841 = vunpack.c.l.s4 1966171168
      %v1842 = vunpack.c.0.s8 %v1841
      %v1843 = vlaneseq
      %v1844 = vshrl.u32 %v1843, 7
      %v1845 = vsub.s32 %v1842, %v1844
      %v1846 = vrot.slane %v1839, %v1845
      %v1848 = vmul.f32 %v1829, %v1846
      %v1849 = vadd.f32 %v1807, %v1848
      %s1850 = scalar_lea.vmem %s3, 150
      %v1851 = vld [vmem:[%s1850] ss:$8 sm:$0x3]
      %v1852 = vcombine.high %v1839, %v1839
      %v1854 = vunpack.c.l.s4 1966171168
      %v1855 = vunpack.c.0.s8 %v1854
      %v1856 = vlaneseq
      %v1857 = vshrl.u32 %v1856, 7
      %v1858 = vsub.s32 %v1855, %v1857
      %v1859 = vrot.slane %v1852, %v1858
      %v1861 = vmul.f32 %v1851, %v1859
      %v1862 = vadd.f32 %v1820, %v1861
      %1863 = vrot.lane.b32.xlu0 %v609, 113
      %v1864 = vpop.permute.xlu0 %1863
      %1865 = vrot.lane.b32.xlu0 %v610, 113
      %v1866 = vpop.permute.xlu0 %1865
      %vm1867 = vcmp.lt.s32.totalorder %v266, 113
      %v1868 = vsel %vm1867, %v1864, %v1866
      %v1869 = vsel %vm1867, %v1866, %v1864
      %s1870 = scalar_lea.vmem %s3, 54
      %v1871 = vld [vmem:[%s1870] ss:$8 sm:$0x3]
      %v1874 = vcombine.low %v1868, %v1869
      %v1876 = vunpack.c.l.s4 1966171168
      %v1877 = vunpack.c.0.s8 %v1876
      %v1878 = vlaneseq
      %v1879 = vshrl.u32 %v1878, 7
      %v1880 = vsub.s32 %v1877, %v1879
      %v1881 = vrot.slane %v1874, %v1880
      %v1883 = vunpack.c.l.s4 1966171168
      %v1884 = vunpack.c.0.s8 %v1883
      %v1885 = vlaneseq
      %v1886 = vshrl.u32 %v1885, 7
      %v1887 = vsub.s32 %v1884, %v1886
      %v1888 = vrot.slane %v1881, %v1887
      %v1890 = vmul.f32 %v1871, %v1888
      %v1891 = vadd.f32 %v1849, %v1890
      %s1892 = scalar_lea.vmem %s3, 151
      %v1893 = vld [vmem:[%s1892] ss:$8 sm:$0x3]
      %v1894 = vcombine.high %v1881, %v1881
      %v1896 = vunpack.c.l.s4 1966171168
      %v1897 = vunpack.c.0.s8 %v1896
      %v1898 = vlaneseq
      %v1899 = vshrl.u32 %v1898, 7
      %v1900 = vsub.s32 %v1897, %v1899
      %v1901 = vrot.slane %v1894, %v1900
      %v1903 = vmul.f32 %v1893, %v1901
      %v1904 = vadd.f32 %v1862, %v1903
      %1905 = vrot.lane.b32.xlu0 %v609, 112
      %v1906 = vpop.permute.xlu0 %1905
      %1907 = vrot.lane.b32.xlu0 %v610, 112
      %v1908 = vpop.permute.xlu0 %1907
      %vm1909 = vcmp.lt.s32.totalorder %v266, 112
      %v1910 = vsel %vm1909, %v1906, %v1908
      %v1911 = vsel %vm1909, %v1908, %v1906
      %s1912 = scalar_lea.vmem %s3, 55
      %v1913 = vld [vmem:[%s1912] ss:$8 sm:$0x3]
      %v1916 = vcombine.low %v1910, %v1911
      %v1918 = vunpack.c.l.s4 1966171168
      %v1919 = vunpack.c.0.s8 %v1918
      %v1920 = vlaneseq
      %v1921 = vshrl.u32 %v1920, 7
      %v1922 = vsub.s32 %v1919, %v1921
      %v1923 = vrot.slane %v1916, %v1922
      %v1925 = vunpack.c.l.s4 1966171168
      %v1926 = vunpack.c.0.s8 %v1925
      %v1927 = vlaneseq
      %v1928 = vshrl.u32 %v1927, 7
      %v1929 = vsub.s32 %v1926, %v1928
      %v1930 = vrot.slane %v1923, %v1929
      %v1932 = vmul.f32 %v1913, %v1930
      %v1933 = vadd.f32 %v1891, %v1932
      %s1934 = scalar_lea.vmem %s3, 160
      %v1935 = vld [vmem:[%s1934] ss:$8 sm:$0x3]
      %v1936 = vcombine.high %v1923, %v1923
      %v1938 = vunpack.c.l.s4 1966171168
      %v1939 = vunpack.c.0.s8 %v1938
      %v1940 = vlaneseq
      %v1941 = vshrl.u32 %v1940, 7
      %v1942 = vsub.s32 %v1939, %v1941
      %v1943 = vrot.slane %v1936, %v1942
      %v1945 = vmul.f32 %v1935, %v1943
      %v1946 = vadd.f32 %v1904, %v1945
      %1947 = vrot.lane.b32.xlu0 %v609, 111
      %v1948 = vpop.permute.xlu0 %1947
      %1949 = vrot.lane.b32.xlu0 %v610, 111
      %v1950 = vpop.permute.xlu0 %1949
      %vm1951 = vcmp.lt.s32.totalorder %v266, 111
      %v1952 = vsel %vm1951, %v1948, %v1950
      %v1953 = vsel %vm1951, %v1950, %v1948
      %s1954 = scalar_lea.vmem %s3, 64
      %v1955 = vld [vmem:[%s1954] ss:$8 sm:$0x3]
      %v1958 = vcombine.low %v1952, %v1953
      %v1960 = vunpack.c.l.s4 1966171168
      %v1961 = vunpack.c.0.s8 %v1960
      %v1962 = vlaneseq
      %v1963 = vshrl.u32 %v1962, 7
      %v1964 = vsub.s32 %v1961, %v1963
      %v1965 = vrot.slane %v1958, %v1964
      %v1967 = vunpack.c.l.s4 1966171168
      %v1968 = vunpack.c.0.s8 %v1967
      %v1969 = vlaneseq
      %v1970 = vshrl.u32 %v1969, 7
      %v1971 = vsub.s32 %v1968, %v1970
      %v1972 = vrot.slane %v1965, %v1971
      %v1974 = vmul.f32 %v1955, %v1972
      %v1975 = vadd.f32 %v1933, %v1974
      %s1976 = scalar_lea.vmem %s3, 161
      %v1977 = vld [vmem:[%s1976] ss:$8 sm:$0x3]
      %v1978 = vcombine.high %v1965, %v1965
      %v1980 = vunpack.c.l.s4 1966171168
      %v1981 = vunpack.c.0.s8 %v1980
      %v1982 = vlaneseq
      %v1983 = vshrl.u32 %v1982, 7
      %v1984 = vsub.s32 %v1981, %v1983
      %v1985 = vrot.slane %v1978, %v1984
      %v1987 = vmul.f32 %v1977, %v1985
      %v1988 = vadd.f32 %v1946, %v1987
      %1989 = vrot.lane.b32.xlu0 %v609, 110
      %v1990 = vpop.permute.xlu0 %1989
      %1991 = vrot.lane.b32.xlu0 %v610, 110
      %v1992 = vpop.permute.xlu0 %1991
      %vm1993 = vcmp.lt.s32.totalorder %v266, 110
      %v1994 = vsel %vm1993, %v1990, %v1992
      %v1995 = vsel %vm1993, %v1992, %v1990
      %s1996 = scalar_lea.vmem %s3, 65
      %v1997 = vld [vmem:[%s1996] ss:$8 sm:$0x3]
      %v2000 = vcombine.low %v1994, %v1995
      %v2002 = vunpack.c.l.s4 1966171168
      %v2003 = vunpack.c.0.s8 %v2002
      %v2004 = vlaneseq
      %v2005 = vshrl.u32 %v2004, 7
      %v2006 = vsub.s32 %v2003, %v2005
      %v2007 = vrot.slane %v2000, %v2006
      %v2009 = vunpack.c.l.s4 1966171168
      %v2010 = vunpack.c.0.s8 %v2009
      %v2011 = vlaneseq
      %v2012 = vshrl.u32 %v2011, 7
      %v2013 = vsub.s32 %v2010, %v2012
      %v2014 = vrot.slane %v2007, %v2013
      %v2016 = vmul.f32 %v1997, %v2014
      %v2017 = vadd.f32 %v1975, %v2016
      %s2018 = scalar_lea.vmem %s3, 162
      %v2019 = vld [vmem:[%s2018] ss:$8 sm:$0x3]
      %v2020 = vcombine.high %v2007, %v2007
      %v2022 = vunpack.c.l.s4 1966171168
      %v2023 = vunpack.c.0.s8 %v2022
      %v2024 = vlaneseq
      %v2025 = vshrl.u32 %v2024, 7
      %v2026 = vsub.s32 %v2023, %v2025
      %v2027 = vrot.slane %v2020, %v2026
      %v2029 = vmul.f32 %v2019, %v2027
      %v2030 = vadd.f32 %v1988, %v2029
      %2031 = vrot.lane.b32.xlu0 %v609, 109
      %v2032 = vpop.permute.xlu0 %2031
      %2033 = vrot.lane.b32.xlu0 %v610, 109
      %v2034 = vpop.permute.xlu0 %2033
      %vm2035 = vcmp.lt.s32.totalorder %v266, 109
      %v2036 = vsel %vm2035, %v2032, %v2034
      %v2037 = vsel %vm2035, %v2034, %v2032
      %s2038 = scalar_lea.vmem %s3, 66
      %v2039 = vld [vmem:[%s2038] ss:$8 sm:$0x3]
      %v2042 = vcombine.low %v2036, %v2037
      %v2044 = vunpack.c.l.s4 1966171168
      %v2045 = vunpack.c.0.s8 %v2044
      %v2046 = vlaneseq
      %v2047 = vshrl.u32 %v2046, 7
      %v2048 = vsub.s32 %v2045, %v2047
      %v2049 = vrot.slane %v2042, %v2048
      %v2051 = vunpack.c.l.s4 1966171168
      %v2052 = vunpack.c.0.s8 %v2051
      %v2053 = vlaneseq
      %v2054 = vshrl.u32 %v2053, 7
      %v2055 = vsub.s32 %v2052, %v2054
      %v2056 = vrot.slane %v2049, %v2055
      %v2058 = vmul.f32 %v2039, %v2056
      %v2059 = vadd.f32 %v2017, %v2058
      %s2060 = scalar_lea.vmem %s3, 163
      %v2061 = vld [vmem:[%s2060] ss:$8 sm:$0x3]
      %v2062 = vcombine.high %v2049, %v2049
      %v2064 = vunpack.c.l.s4 1966171168
      %v2065 = vunpack.c.0.s8 %v2064
      %v2066 = vlaneseq
      %v2067 = vshrl.u32 %v2066, 7
      %v2068 = vsub.s32 %v2065, %v2067
      %v2069 = vrot.slane %v2062, %v2068
      %v2071 = vmul.f32 %v2061, %v2069
      %v2072 = vadd.f32 %v2030, %v2071
      %2073 = vrot.lane.b32.xlu0 %v609, 99
      %v2074 = vpop.permute.xlu0 %2073
      %2075 = vrot.lane.b32.xlu0 %v610, 99
      %v2076 = vpop.permute.xlu0 %2075
      %vm2077 = vcmp.lt.s32.totalorder %v266, 99
      %v2078 = vsel %vm2077, %v2074, %v2076
      %v2079 = vsel %vm2077, %v2076, %v2074
      %s2080 = scalar_lea.vmem %s3, 67
      %v2081 = vld [vmem:[%s2080] ss:$8 sm:$0x3]
      %v2084 = vcombine.low %v2078, %v2079
      %v2086 = vunpack.c.l.s4 1966171168
      %v2087 = vunpack.c.0.s8 %v2086
      %v2088 = vlaneseq
      %v2089 = vshrl.u32 %v2088, 7
      %v2090 = vsub.s32 %v2087, %v2089
      %v2091 = vrot.slane %v2084, %v2090
      %v2093 = vunpack.c.l.s4 1966171168
      %v2094 = vunpack.c.0.s8 %v2093
      %v2095 = vlaneseq
      %v2096 = vshrl.u32 %v2095, 7
      %v2097 = vsub.s32 %v2094, %v2096
      %v2098 = vrot.slane %v2091, %v2097
      %v2100 = vmul.f32 %v2081, %v2098
      %v2101 = vadd.f32 %v2059, %v2100
      %s2102 = scalar_lea.vmem %s3, 164
      %v2103 = vld [vmem:[%s2102] ss:$8 sm:$0x3]
      %v2104 = vcombine.high %v2091, %v2091
      %v2106 = vunpack.c.l.s4 1966171168
      %v2107 = vunpack.c.0.s8 %v2106
      %v2108 = vlaneseq
      %v2109 = vshrl.u32 %v2108, 7
      %v2110 = vsub.s32 %v2107, %v2109
      %v2111 = vrot.slane %v2104, %v2110
      %v2113 = vmul.f32 %v2103, %v2111
      %v2114 = vadd.f32 %v2072, %v2113
      %2115 = vrot.lane.b32.xlu0 %v609, 98
      %v2116 = vpop.permute.xlu0 %2115
      %2117 = vrot.lane.b32.xlu0 %v610, 98
      %v2118 = vpop.permute.xlu0 %2117
      %vm2119 = vcmp.lt.s32.totalorder %v266, 98
      %v2120 = vsel %vm2119, %v2116, %v2118
      %v2121 = vsel %vm2119, %v2118, %v2116
      %s2122 = scalar_lea.vmem %s3, 68
      %v2123 = vld [vmem:[%s2122] ss:$8 sm:$0x3]
      %v2126 = vcombine.low %v2120, %v2121
      %v2128 = vunpack.c.l.s4 1966171168
      %v2129 = vunpack.c.0.s8 %v2128
      %v2130 = vlaneseq
      %v2131 = vshrl.u32 %v2130, 7
      %v2132 = vsub.s32 %v2129, %v2131
      %v2133 = vrot.slane %v2126, %v2132
      %v2135 = vunpack.c.l.s4 1966171168
      %v2136 = vunpack.c.0.s8 %v2135
      %v2137 = vlaneseq
      %v2138 = vshrl.u32 %v2137, 7
      %v2139 = vsub.s32 %v2136, %v2138
      %v2140 = vrot.slane %v2133, %v2139
      %v2142 = vmul.f32 %v2123, %v2140
      %v2143 = vadd.f32 %v2101, %v2142
      %s2144 = scalar_lea.vmem %s3, 165
      %v2145 = vld [vmem:[%s2144] ss:$8 sm:$0x3]
      %v2146 = vcombine.high %v2133, %v2133
      %v2148 = vunpack.c.l.s4 1966171168
      %v2149 = vunpack.c.0.s8 %v2148
      %v2150 = vlaneseq
      %v2151 = vshrl.u32 %v2150, 7
      %v2152 = vsub.s32 %v2149, %v2151
      %v2153 = vrot.slane %v2146, %v2152
      %v2155 = vmul.f32 %v2145, %v2153
      %v2156 = vadd.f32 %v2114, %v2155
      %2157 = vrot.lane.b32.xlu0 %v609, 97
      %v2158 = vpop.permute.xlu0 %2157
      %2159 = vrot.lane.b32.xlu0 %v610, 97
      %v2160 = vpop.permute.xlu0 %2159
      %vm2161 = vcmp.lt.s32.totalorder %v266, 97
      %v2162 = vsel %vm2161, %v2158, %v2160
      %v2163 = vsel %vm2161, %v2160, %v2158
      %s2164 = scalar_lea.vmem %s3, 69
      %v2165 = vld [vmem:[%s2164] ss:$8 sm:$0x3]
      %v2168 = vcombine.low %v2162, %v2163
      %v2170 = vunpack.c.l.s4 1966171168
      %v2171 = vunpack.c.0.s8 %v2170
      %v2172 = vlaneseq
      %v2173 = vshrl.u32 %v2172, 7
      %v2174 = vsub.s32 %v2171, %v2173
      %v2175 = vrot.slane %v2168, %v2174
      %v2177 = vunpack.c.l.s4 1966171168
      %v2178 = vunpack.c.0.s8 %v2177
      %v2179 = vlaneseq
      %v2180 = vshrl.u32 %v2179, 7
      %v2181 = vsub.s32 %v2178, %v2180
      %v2182 = vrot.slane %v2175, %v2181
      %v2184 = vmul.f32 %v2165, %v2182
      %v2185 = vadd.f32 %v2143, %v2184
      %s2186 = scalar_lea.vmem %s3, 166
      %v2187 = vld [vmem:[%s2186] ss:$8 sm:$0x3]
      %v2188 = vcombine.high %v2175, %v2175
      %v2190 = vunpack.c.l.s4 1966171168
      %v2191 = vunpack.c.0.s8 %v2190
      %v2192 = vlaneseq
      %v2193 = vshrl.u32 %v2192, 7
      %v2194 = vsub.s32 %v2191, %v2193
      %v2195 = vrot.slane %v2188, %v2194
      %v2197 = vmul.f32 %v2187, %v2195
      %v2198 = vadd.f32 %v2156, %v2197
      %2199 = vrot.lane.b32.xlu0 %v609, 96
      %v2200 = vpop.permute.xlu0 %2199
      %2201 = vrot.lane.b32.xlu0 %v610, 96
      %v2202 = vpop.permute.xlu0 %2201
      %vm2203 = vcmp.lt.s32.totalorder %v266, 96
      %v2204 = vsel %vm2203, %v2200, %v2202
      %v2205 = vsel %vm2203, %v2202, %v2200
      %s2206 = scalar_lea.vmem %s3, 70
      %v2207 = vld [vmem:[%s2206] ss:$8 sm:$0x3]
      %v2210 = vcombine.low %v2204, %v2205
      %v2212 = vunpack.c.l.s4 1966171168
      %v2213 = vunpack.c.0.s8 %v2212
      %v2214 = vlaneseq
      %v2215 = vshrl.u32 %v2214, 7
      %v2216 = vsub.s32 %v2213, %v2215
      %v2217 = vrot.slane %v2210, %v2216
      %v2219 = vunpack.c.l.s4 1966171168
      %v2220 = vunpack.c.0.s8 %v2219
      %v2221 = vlaneseq
      %v2222 = vshrl.u32 %v2221, 7
      %v2223 = vsub.s32 %v2220, %v2222
      %v2224 = vrot.slane %v2217, %v2223
      %v2226 = vmul.f32 %v2207, %v2224
      %v2227 = vadd.f32 %v2185, %v2226
      %s2228 = scalar_lea.vmem %s3, 167
      %v2229 = vld [vmem:[%s2228] ss:$8 sm:$0x3]
      %v2230 = vcombine.high %v2217, %v2217
      %v2232 = vunpack.c.l.s4 1966171168
      %v2233 = vunpack.c.0.s8 %v2232
      %v2234 = vlaneseq
      %v2235 = vshrl.u32 %v2234, 7
      %v2236 = vsub.s32 %v2233, %v2235
      %v2237 = vrot.slane %v2230, %v2236
      %v2239 = vmul.f32 %v2229, %v2237
      %v2240 = vadd.f32 %v2198, %v2239
      %2241 = vrot.lane.b32.xlu0 %v609, 95
      %v2242 = vpop.permute.xlu0 %2241
      %2243 = vrot.lane.b32.xlu0 %v610, 95
      %v2244 = vpop.permute.xlu0 %2243
      %vm2245 = vcmp.lt.s32.totalorder %v266, 95
      %v2246 = vsel %vm2245, %v2242, %v2244
      %v2247 = vsel %vm2245, %v2244, %v2242
      %s2248 = scalar_lea.vmem %s3, 71
      %v2249 = vld [vmem:[%s2248] ss:$8 sm:$0x3]
      %v2252 = vcombine.low %v2246, %v2247
      %v2254 = vunpack.c.l.s4 1966171168
      %v2255 = vunpack.c.0.s8 %v2254
      %v2256 = vlaneseq
      %v2257 = vshrl.u32 %v2256, 7
      %v2258 = vsub.s32 %v2255, %v2257
      %v2259 = vrot.slane %v2252, %v2258
      %v2261 = vunpack.c.l.s4 1966171168
      %v2262 = vunpack.c.0.s8 %v2261
      %v2263 = vlaneseq
      %v2264 = vshrl.u32 %v2263, 7
      %v2265 = vsub.s32 %v2262, %v2264
      %v2266 = vrot.slane %v2259, %v2265
      %v2268 = vmul.f32 %v2249, %v2266
      %v2269 = vadd.f32 %v2227, %v2268
      %s2270 = scalar_lea.vmem %s3, 176
      %v2271 = vld [vmem:[%s2270] ss:$8 sm:$0x3]
      %v2272 = vcombine.high %v2259, %v2259
      %v2274 = vunpack.c.l.s4 1966171168
      %v2275 = vunpack.c.0.s8 %v2274
      %v2276 = vlaneseq
      %v2277 = vshrl.u32 %v2276, 7
      %v2278 = vsub.s32 %v2275, %v2277
      %v2279 = vrot.slane %v2272, %v2278
      %v2281 = vmul.f32 %v2271, %v2279
      %v2282 = vadd.f32 %v2240, %v2281
      %2283 = vrot.lane.b32.xlu0 %v609, 94
      %v2284 = vpop.permute.xlu0 %2283
      %2285 = vrot.lane.b32.xlu0 %v610, 94
      %v2286 = vpop.permute.xlu0 %2285
      %vm2287 = vcmp.lt.s32.totalorder %v266, 94
      %v2288 = vsel %vm2287, %v2284, %v2286
      %v2289 = vsel %vm2287, %v2286, %v2284
      %s2290 = scalar_lea.vmem %s3, 80
      %v2291 = vld [vmem:[%s2290] ss:$8 sm:$0x3]
      %v2294 = vcombine.low %v2288, %v2289
      %v2296 = vunpack.c.l.s4 1966171168
      %v2297 = vunpack.c.0.s8 %v2296
      %v2298 = vlaneseq
      %v2299 = vshrl.u32 %v2298, 7
      %v2300 = vsub.s32 %v2297, %v2299
      %v2301 = vrot.slane %v2294, %v2300
      %v2303 = vunpack.c.l.s4 1966171168
      %v2304 = vunpack.c.0.s8 %v2303
      %v2305 = vlaneseq
      %v2306 = vshrl.u32 %v2305, 7
      %v2307 = vsub.s32 %v2304, %v2306
      %v2308 = vrot.slane %v2301, %v2307
      %v2310 = vmul.f32 %v2291, %v2308
      %v2311 = vadd.f32 %v2269, %v2310
      %s2312 = scalar_lea.vmem %s3, 177
      %v2313 = vld [vmem:[%s2312] ss:$8 sm:$0x3]
      %v2314 = vcombine.high %v2301, %v2301
      %v2316 = vunpack.c.l.s4 1966171168
      %v2317 = vunpack.c.0.s8 %v2316
      %v2318 = vlaneseq
      %v2319 = vshrl.u32 %v2318, 7
      %v2320 = vsub.s32 %v2317, %v2319
      %v2321 = vrot.slane %v2314, %v2320
      %v2323 = vmul.f32 %v2313, %v2321
      %v2324 = vadd.f32 %v2282, %v2323
      %2325 = vrot.lane.b32.xlu0 %v609, 93
      %v2326 = vpop.permute.xlu0 %2325
      %2327 = vrot.lane.b32.xlu0 %v610, 93
      %v2328 = vpop.permute.xlu0 %2327
      %vm2329 = vcmp.lt.s32.totalorder %v266, 93
      %v2330 = vsel %vm2329, %v2326, %v2328
      %v2331 = vsel %vm2329, %v2328, %v2326
      %s2332 = scalar_lea.vmem %s3, 81
      %v2333 = vld [vmem:[%s2332] ss:$8 sm:$0x3]
      %v2336 = vcombine.low %v2330, %v2331
      %v2338 = vunpack.c.l.s4 1966171168
      %v2339 = vunpack.c.0.s8 %v2338
      %v2340 = vlaneseq
      %v2341 = vshrl.u32 %v2340, 7
      %v2342 = vsub.s32 %v2339, %v2341
      %v2343 = vrot.slane %v2336, %v2342
      %v2345 = vunpack.c.l.s4 1966171168
      %v2346 = vunpack.c.0.s8 %v2345
      %v2347 = vlaneseq
      %v2348 = vshrl.u32 %v2347, 7
      %v2349 = vsub.s32 %v2346, %v2348
      %v2350 = vrot.slane %v2343, %v2349
      %v2352 = vmul.f32 %v2333, %v2350
      %v2353 = vadd.f32 %v2311, %v2352
      %s2354 = scalar_lea.vmem %s3, 178
      %v2355 = vld [vmem:[%s2354] ss:$8 sm:$0x3]
      %v2356 = vcombine.high %v2343, %v2343
      %v2358 = vunpack.c.l.s4 1966171168
      %v2359 = vunpack.c.0.s8 %v2358
      %v2360 = vlaneseq
      %v2361 = vshrl.u32 %v2360, 7
      %v2362 = vsub.s32 %v2359, %v2361
      %v2363 = vrot.slane %v2356, %v2362
      %v2365 = vmul.f32 %v2355, %v2363
      %v2366 = vadd.f32 %v2324, %v2365
      %2367 = vrot.lane.b32.xlu0 %v609, 83
      %v2368 = vpop.permute.xlu0 %2367
      %2369 = vrot.lane.b32.xlu0 %v610, 83
      %v2370 = vpop.permute.xlu0 %2369
      %vm2371 = vcmp.lt.s32.totalorder %v266, 83
      %v2372 = vsel %vm2371, %v2368, %v2370
      %v2373 = vsel %vm2371, %v2370, %v2368
      %s2374 = scalar_lea.vmem %s3, 82
      %v2375 = vld [vmem:[%s2374] ss:$8 sm:$0x3]
      %v2378 = vcombine.low %v2372, %v2373
      %v2380 = vunpack.c.l.s4 1966171168
      %v2381 = vunpack.c.0.s8 %v2380
      %v2382 = vlaneseq
      %v2383 = vshrl.u32 %v2382, 7
      %v2384 = vsub.s32 %v2381, %v2383
      %v2385 = vrot.slane %v2378, %v2384
      %v2387 = vunpack.c.l.s4 1966171168
      %v2388 = vunpack.c.0.s8 %v2387
      %v2389 = vlaneseq
      %v2390 = vshrl.u32 %v2389, 7
      %v2391 = vsub.s32 %v2388, %v2390
      %v2392 = vrot.slane %v2385, %v2391
      %v2394 = vmul.f32 %v2375, %v2392
      %v2395 = vadd.f32 %v2353, %v2394
      %s2396 = scalar_lea.vmem %s3, 179
      %v2397 = vld [vmem:[%s2396] ss:$8 sm:$0x3]
      %v2398 = vcombine.high %v2385, %v2385
      %v2400 = vunpack.c.l.s4 1966171168
      %v2401 = vunpack.c.0.s8 %v2400
      %v2402 = vlaneseq
      %v2403 = vshrl.u32 %v2402, 7
      %v2404 = vsub.s32 %v2401, %v2403
      %v2405 = vrot.slane %v2398, %v2404
      %v2407 = vmul.f32 %v2397, %v2405
      %v2408 = vadd.f32 %v2366, %v2407
      %2409 = vrot.lane.b32.xlu0 %v609, 82
      %v2410 = vpop.permute.xlu0 %2409
      %2411 = vrot.lane.b32.xlu0 %v610, 82
      %v2412 = vpop.permute.xlu0 %2411
      %vm2413 = vcmp.lt.s32.totalorder %v266, 82
      %v2414 = vsel %vm2413, %v2410, %v2412
      %v2415 = vsel %vm2413, %v2412, %v2410
      %s2416 = scalar_lea.vmem %s3, 83
      %v2417 = vld [vmem:[%s2416] ss:$8 sm:$0x3]
      %v2420 = vcombine.low %v2414, %v2415
      %v2422 = vunpack.c.l.s4 1966171168
      %v2423 = vunpack.c.0.s8 %v2422
      %v2424 = vlaneseq
      %v2425 = vshrl.u32 %v2424, 7
      %v2426 = vsub.s32 %v2423, %v2425
      %v2427 = vrot.slane %v2420, %v2426
      %v2429 = vunpack.c.l.s4 1966171168
      %v2430 = vunpack.c.0.s8 %v2429
      %v2431 = vlaneseq
      %v2432 = vshrl.u32 %v2431, 7
      %v2433 = vsub.s32 %v2430, %v2432
      %v2434 = vrot.slane %v2427, %v2433
      %v2436 = vmul.f32 %v2417, %v2434
      %v2437 = vadd.f32 %v2395, %v2436
      %s2438 = scalar_lea.vmem %s3, 180
      %v2439 = vld [vmem:[%s2438] ss:$8 sm:$0x3]
      %v2440 = vcombine.high %v2427, %v2427
      %v2442 = vunpack.c.l.s4 1966171168
      %v2443 = vunpack.c.0.s8 %v2442
      %v2444 = vlaneseq
      %v2445 = vshrl.u32 %v2444, 7
      %v2446 = vsub.s32 %v2443, %v2445
      %v2447 = vrot.slane %v2440, %v2446
      %v2449 = vmul.f32 %v2439, %v2447
      %v2450 = vadd.f32 %v2408, %v2449
      %2451 = vrot.lane.b32.xlu0 %v609, 81
      %v2452 = vpop.permute.xlu0 %2451
      %2453 = vrot.lane.b32.xlu0 %v610, 81
      %v2454 = vpop.permute.xlu0 %2453
      %vm2455 = vcmp.lt.s32.totalorder %v266, 81
      %v2456 = vsel %vm2455, %v2452, %v2454
      %v2457 = vsel %vm2455, %v2454, %v2452
      %s2458 = scalar_lea.vmem %s3, 84
      %v2459 = vld [vmem:[%s2458] ss:$8 sm:$0x3]
      %v2462 = vcombine.low %v2456, %v2457
      %v2464 = vunpack.c.l.s4 1966171168
      %v2465 = vunpack.c.0.s8 %v2464
      %v2466 = vlaneseq
      %v2467 = vshrl.u32 %v2466, 7
      %v2468 = vsub.s32 %v2465, %v2467
      %v2469 = vrot.slane %v2462, %v2468
      %v2471 = vunpack.c.l.s4 1966171168
      %v2472 = vunpack.c.0.s8 %v2471
      %v2473 = vlaneseq
      %v2474 = vshrl.u32 %v2473, 7
      %v2475 = vsub.s32 %v2472, %v2474
      %v2476 = vrot.slane %v2469, %v2475
      %v2478 = vmul.f32 %v2459, %v2476
      %v2479 = vadd.f32 %v2437, %v2478
      %s2480 = scalar_lea.vmem %s3, 181
      %v2481 = vld [vmem:[%s2480] ss:$8 sm:$0x3]
      %v2482 = vcombine.high %v2469, %v2469
      %v2484 = vunpack.c.l.s4 1966171168
      %v2485 = vunpack.c.0.s8 %v2484
      %v2486 = vlaneseq
      %v2487 = vshrl.u32 %v2486, 7
      %v2488 = vsub.s32 %v2485, %v2487
      %v2489 = vrot.slane %v2482, %v2488
      %v2491 = vmul.f32 %v2481, %v2489
      %v2492 = vadd.f32 %v2450, %v2491
      %2493 = vrot.lane.b32.xlu0 %v609, 80
      %v2494 = vpop.permute.xlu0 %2493
      %2495 = vrot.lane.b32.xlu0 %v610, 80
      %v2496 = vpop.permute.xlu0 %2495
      %vm2497 = vcmp.lt.s32.totalorder %v266, 80
      %v2498 = vsel %vm2497, %v2494, %v2496
      %v2499 = vsel %vm2497, %v2496, %v2494
      %s2500 = scalar_lea.vmem %s3, 85
      %v2501 = vld [vmem:[%s2500] ss:$8 sm:$0x3]
      %v2504 = vcombine.low %v2498, %v2499
      %v2506 = vunpack.c.l.s4 1966171168
      %v2507 = vunpack.c.0.s8 %v2506
      %v2508 = vlaneseq
      %v2509 = vshrl.u32 %v2508, 7
      %v2510 = vsub.s32 %v2507, %v2509
      %v2511 = vrot.slane %v2504, %v2510
      %v2513 = vunpack.c.l.s4 1966171168
      %v2514 = vunpack.c.0.s8 %v2513
      %v2515 = vlaneseq
      %v2516 = vshrl.u32 %v2515, 7
      %v2517 = vsub.s32 %v2514, %v2516
      %v2518 = vrot.slane %v2511, %v2517
      %v2520 = vmul.f32 %v2501, %v2518
      %v2521 = vadd.f32 %v2479, %v2520
      %s2522 = scalar_lea.vmem %s3, 182
      %v2523 = vld [vmem:[%s2522] ss:$8 sm:$0x3]
      %v2524 = vcombine.high %v2511, %v2511
      %v2526 = vunpack.c.l.s4 1966171168
      %v2527 = vunpack.c.0.s8 %v2526
      %v2528 = vlaneseq
      %v2529 = vshrl.u32 %v2528, 7
      %v2530 = vsub.s32 %v2527, %v2529
      %v2531 = vrot.slane %v2524, %v2530
      %v2533 = vmul.f32 %v2523, %v2531
      %v2534 = vadd.f32 %v2492, %v2533
      %2535 = vrot.lane.b32.xlu0 %v609, 79
      %v2536 = vpop.permute.xlu0 %2535
      %2537 = vrot.lane.b32.xlu0 %v610, 79
      %v2538 = vpop.permute.xlu0 %2537
      %vm2539 = vcmp.lt.s32.totalorder %v266, 79
      %v2540 = vsel %vm2539, %v2536, %v2538
      %v2541 = vsel %vm2539, %v2538, %v2536
      %s2542 = scalar_lea.vmem %s3, 86
      %v2543 = vld [vmem:[%s2542] ss:$8 sm:$0x3]
      %v2546 = vcombine.low %v2540, %v2541
      %v2548 = vunpack.c.l.s4 1966171168
      %v2549 = vunpack.c.0.s8 %v2548
      %v2550 = vlaneseq
      %v2551 = vshrl.u32 %v2550, 7
      %v2552 = vsub.s32 %v2549, %v2551
      %v2553 = vrot.slane %v2546, %v2552
      %v2555 = vunpack.c.l.s4 1966171168
      %v2556 = vunpack.c.0.s8 %v2555
      %v2557 = vlaneseq
      %v2558 = vshrl.u32 %v2557, 7
      %v2559 = vsub.s32 %v2556, %v2558
      %v2560 = vrot.slane %v2553, %v2559
      %v2562 = vmul.f32 %v2543, %v2560
      %v2563 = vadd.f32 %v2521, %v2562
      %s2564 = scalar_lea.vmem %s3, 183
      %v2565 = vld [vmem:[%s2564] ss:$8 sm:$0x3]
      %v2566 = vcombine.high %v2553, %v2553
      %v2568 = vunpack.c.l.s4 1966171168
      %v2569 = vunpack.c.0.s8 %v2568
      %v2570 = vlaneseq
      %v2571 = vshrl.u32 %v2570, 7
      %v2572 = vsub.s32 %v2569, %v2571
      %v2573 = vrot.slane %v2566, %v2572
      %v2575 = vmul.f32 %v2565, %v2573
      %v2576 = vadd.f32 %v2534, %v2575
      %2577 = vrot.lane.b32.xlu0 %v609, 78
      %v2578 = vpop.permute.xlu0 %2577
      %2579 = vrot.lane.b32.xlu0 %v610, 78
      %v2580 = vpop.permute.xlu0 %2579
      %vm2581 = vcmp.lt.s32.totalorder %v266, 78
      %v2582 = vsel %vm2581, %v2578, %v2580
      %v2583 = vsel %vm2581, %v2580, %v2578
      %s2584 = scalar_lea.vmem %s3, 87
      %v2585 = vld [vmem:[%s2584] ss:$8 sm:$0x3]
      %v2588 = vcombine.low %v2582, %v2583
      %v2590 = vunpack.c.l.s4 1966171168
      %v2591 = vunpack.c.0.s8 %v2590
      %v2592 = vlaneseq
      %v2593 = vshrl.u32 %v2592, 7
      %v2594 = vsub.s32 %v2591, %v2593
      %v2595 = vrot.slane %v2588, %v2594
      %v2597 = vunpack.c.l.s4 1966171168
      %v2598 = vunpack.c.0.s8 %v2597
      %v2599 = vlaneseq
      %v2600 = vshrl.u32 %v2599, 7
      %v2601 = vsub.s32 %v2598, %v2600
      %v2602 = vrot.slane %v2595, %v2601
      %v2604 = vmul.f32 %v2585, %v2602
      %v2605 = vadd.f32 %v2563, %v2604
      %s2606 = scalar_lea.vmem %s3, 192
      %v2607 = vld [vmem:[%s2606] ss:$8 sm:$0x3]
      %v2608 = vcombine.high %v2595, %v2595
      %v2610 = vunpack.c.l.s4 1966171168
      %v2611 = vunpack.c.0.s8 %v2610
      %v2612 = vlaneseq
      %v2613 = vshrl.u32 %v2612, 7
      %v2614 = vsub.s32 %v2611, %v2613
      %v2615 = vrot.slane %v2608, %v2614
      %v2617 = vmul.f32 %v2607, %v2615
      %v2618 = vadd.f32 %v2576, %v2617
      %2619 = vrot.lane.b32.xlu0 %v609, 77
      %v2620 = vpop.permute.xlu0 %2619
      %2621 = vrot.lane.b32.xlu0 %v610, 77
      %v2622 = vpop.permute.xlu0 %2621
      %vm2623 = vcmp.lt.s32.totalorder %v266, 77
      %v2624 = vsel %vm2623, %v2620, %v2622
      %v2625 = vsel %vm2623, %v2622, %v2620
      %s2626 = scalar_lea.vmem %s3, 96
      %v2627 = vld [vmem:[%s2626] ss:$8 sm:$0x3]
      %v2630 = vcombine.low %v2624, %v2625
      %v2632 = vunpack.c.l.s4 1966171168
      %v2633 = vunpack.c.0.s8 %v2632
      %v2634 = vlaneseq
      %v2635 = vshrl.u32 %v2634, 7
      %v2636 = vsub.s32 %v2633, %v2635
      %v2637 = vrot.slane %v2630, %v2636
      %v2639 = vunpack.c.l.s4 1966171168
      %v2640 = vunpack.c.0.s8 %v2639
      %v2641 = vlaneseq
      %v2642 = vshrl.u32 %v2641, 7
      %v2643 = vsub.s32 %v2640, %v2642
      %v2644 = vrot.slane %v2637, %v2643
      %v2646 = vmul.f32 %v2627, %v2644
      %v2647 = vadd.f32 %v2605, %v2646
      %s2648 = scalar_lea.vmem %s3, 193
      %v2649 = vld [vmem:[%s2648] ss:$8 sm:$0x3]
      %v2650 = vcombine.high %v2637, %v2637
      %v2652 = vunpack.c.l.s4 1966171168
      %v2653 = vunpack.c.0.s8 %v2652
      %v2654 = vlaneseq
      %v2655 = vshrl.u32 %v2654, 7
      %v2656 = vsub.s32 %v2653, %v2655
      %v2657 = vrot.slane %v2650, %v2656
      %v2659 = vmul.f32 %v2649, %v2657
      %v2660 = vadd.f32 %v2618, %v2659
      %v2661 = vadd.f32 %v2647, %v2660
      %v2662 = vsub.f32 0.0, %v2661
      %v2663 = vmul.f32 %v2662, 1.442695
      %v2664 = vpow.pop %v2663
      %v2665 = vadd.f32 %v2664, 1.0
      %v2666 = vrcp.pop %v2665
      %v2668 = vlaneseq
      %v2669 = vshrl.u32 %v2668, 7
      %v2670 = vsub.s32 0, %v2669
      %v2671 = vrot.slane %v2666, %v2670
      %v2672 = vlaneseq
      %v2673 = vshrl.u32 %v2672, 7
      %v2674 = vsub.s32 1, %v2673
      %v2675 = vrot.slane %v2666, %v2674
      %v2678 = vmul.f32 %v506, %v2671
      %v2679 = vmul.f32 %v507, %v2675
      %v2680 = vmul.f32 %v508, %v2671
      %v2681 = vmul.f32 %v509, %v2675
      %v2682 = vmul.f32 %v510, %v2671
      %v2683 = vmul.f32 %v511, %v2675
      %v2684 = vmul.f32 %v512, %v2671
      %v2685 = vmul.f32 %v513, %v2675
      %2686 = vst [vmem:[%s224] sm:$0xff] %v2678
      %2687 = vst [vmem:[%s224 + $0x8] sm:$0xff] %v2679
      %2688 = vst [vmem:[%s224 + $0x10] sm:$0xff] %v2680
      %2689 = vst [vmem:[%s224 + $0x18] sm:$0xff] %v2681
      %2690 = vst [vmem:[%s224 + $0x20] sm:$0xff] %v2682
      %2691 = vst [vmem:[%s224 + $0x28] sm:$0xff] %v2683
      %2692 = vst [vmem:[%s224 + $0x30] sm:$0xff] %v2684
      %2693 = vst [vmem:[%s224 + $0x38] sm:$0xff] %v2685
      %p2694 = scmp.lt.s32.totalorder %s16, 1
      %s2695 = scalar_select %p2694, %s16, 1
      %s2696 = smul.addr %s2695, 8
      %s2697 = smul.addr %s2696, 8
      %s2698 = scalar_lea.vmem %s5, %s2697
      // Predicated region
      $region41: #{cbam_pallas.1} parent=39 // pred_check
        %p2699 = pneg %p144
      $region42: #{cbam_pallas.1} parent=39 // pred_check_branch
        %2701 = sbr.rel (%p2699) target = $region44
      $region43: #{cbam_pallas.1} parent=39 // pred_region
        _
      $region44: #{cbam_pallas.1} parent=39 // pred_fallthru
        _
    $region40: #{cbam_pallas.1} parent=5 // pred_fallthru
      _
    %p2702 = scmp.le.s32.totalorder 2, %s11
    // Predicated region
    $region45: #{cbam_pallas.1} parent=5 // pred_check
      %p2703 = pneg %p2702
    $region46: #{cbam_pallas.1} parent=5 // pred_check_branch
      %2705 = sbr.rel (%p2703) target = $region48
    $region47: #{cbam_pallas.1} parent=5 // pred_region
      %s2706 = ssub.s32 %s11, 2
      // Predicated region
      $region49: #{cbam_pallas.1} parent=47 // pred_check
        %p2707 = pneg %p150
      $region50: #{cbam_pallas.1} parent=47 // pred_check_branch
        %2709 = sbr.rel (%p2707) target = $region52
      $region51: #{cbam_pallas.1} parent=47 // pred_region
        %p2710 = scmp.lt.s32.totalorder %s17, 1
        %s2711 = scalar_select %p2710, %s17, 1
        %s2712 = smul.addr %s2711, 8
        %s2713 = smul.addr %s2712, 8
        %s2714 = scalar_lea.vmem %s5, %s2713
      $region52: #{cbam_pallas.1} parent=47 // pred_fallthru
        _
    $region48: #{cbam_pallas.1} parent=5 // pred_fallthru
      _
  $region6: #{cbam_pallas.1} parent=0 // loop_footer
    %s15 = sadd.s32 1, %s11
  $region7: #{cbam_pallas.1} parent=0 // loop_footer_branch
    %10 = sbr.rel target = $region3
  $region8: #{cbam_pallas.1} parent=0 // loop_exit
    _

</llo_original>
